<compile_context>
chip_gen: v5e
topology: v5e:2x2
jax: 0.10.0
libtpu: 0.0.40
codegen_flags: <defaults>
</compile_context>

<pallas_src>
import jax
import jax.numpy as jnp
from jax import lax
from jax.experimental import pallas as pl
from jax.experimental.pallas import tpu as pltpu


# ---------------------------------------------------------------------------
# Pallas kernels
# ---------------------------------------------------------------------------
def _conv_relu_pool_kernel(p_ref, w_ref, b_ref, o_ref):
    """Fused conv(as matmul) + bias + relu + 2x2 maxpool for one row tile.

    p_ref: (4, tile, K) bf16 -- im2col patches, leading axis = pool-window pos.
    w_ref: (K, Cout) bf16, b_ref: (1, Cout) f32, o_ref: (tile, Cout) bf16.
    """
    w = w_ref[...]
    y = jnp.dot(p_ref[0], w, preferred_element_type=jnp.float32)
    y = jnp.maximum(y, jnp.dot(p_ref[1], w, preferred_element_type=jnp.float32))
    y = jnp.maximum(y, jnp.dot(p_ref[2], w, preferred_element_type=jnp.float32))
    y = jnp.maximum(y, jnp.dot(p_ref[3], w, preferred_element_type=jnp.float32))
    # bias is identical across the 4 window positions -> add once, after max;
    # relu(max(x_i) + b) == max(relu(x_i + b)) since relu is monotone.
    y = jnp.maximum(y + b_ref[...], 0.0)
    o_ref[...] = y.astype(o_ref.dtype)


def _fc_head_kernel(x_ref, w1_ref, b1_ref, w2_ref, b2_ref, o_ref):
    """Fused fc1 + relu + fc2 + sigmoid; (B,128) hidden stays in VMEM/vregs."""
    h = jnp.dot(x_ref[...], w1_ref[...], preferred_element_type=jnp.float32)
    h = jnp.maximum(h + b1_ref[...], 0.0)                       # f32 epilogue
    y = jnp.dot(h.astype(jnp.bfloat16), w2_ref[...],
                preferred_element_type=jnp.float32)
    y = y + b2_ref[...]
    o_ref[...] = pl.reciprocal(1.0 + jnp.exp(-y), approx=True)  # sigmoid


# ---------------------------------------------------------------------------
# Glue (pure layout plumbing) + Pallas wrappers
# ---------------------------------------------------------------------------
def _round_up(x, m):
    return ((x + m - 1) // m) * m


def _pool_ordered_patches(x_nhwc, cin_pad=None):
    """SAME-pad 3x3 im2col in bf16, rows reordered to (pool_pos, b, h2, w2).

    Returns (4, B*H/2*W/2, 9*C) so the conv kernel can maxpool by taking the
    elementwise max over the leading axis of its 4 matmul results.
    """
    x = x_nhwc.astype(jnp.bfloat16)
    b, h, w, c = x.shape
    if cin_pad is not None and cin_pad > c:
        x = jnp.pad(x, ((0, 0), (0, 0), (0, 0), (0, cin_pad - c)))
        c = cin_pad
    xp = jnp.pad(x, ((0, 0), (1, 1), (1, 1), (0, 0)))
    taps = [xp[:, ky:ky + h, kx:kx + w, :] for ky in range(3) for kx in range(3)]
    p = jnp.concatenate(taps, axis=-1)                       # (B, H, W, 9C)
    p = p.reshape(b, h // 2, 2, w // 2, 2, 9 * c)
    p = jnp.transpose(p, (2, 4, 0, 1, 3, 5))                 # (py,px,B,H2,W2,9C)
    return p.reshape(4, b * (h // 2) * (w // 2), 9 * c)


def conv_relu_pool(x_nhwc, w_mat, bias, *, cin_pad=None, grid_n=2):
    """One fused conv(3x3, SAME) + bias + relu + 2x2 maxpool stage."""
    b, h, w, _ = x_nhwc.shape
    h2, w2 = h // 2, w // 2
    cout = w_mat.shape[1]

    patches = _pool_ordered_patches(x_nhwc, cin_pad)         # (4, n, K) bf16
    n, k = patches.shape[1], patches.shape[2]
    # grid_n parallel steps (v7x megacore); tiles multiple of 16 (bf16 sublanes)
    tile = _round_up(-(-n // grid_n), 16)
    n_pad = tile * grid_n
    if n_pad != n:
        patches = jnp.pad(patches, ((0, 0), (0, n_pad - n), (0, 0)))

    out = pl.pallas_call(
        _conv_relu_pool_kernel,
        out_shape=jax.ShapeDtypeStruct((n_pad, cout), jnp.bfloat16),
        grid=(grid_n,),
        in_specs=[
            pl.BlockSpec((4, tile, k), lambda i: (0, i, 0)),
            pl.BlockSpec((k, cout), lambda i: (0, 0)),
            pl.BlockSpec((1, cout), lambda i: (0, 0)),
        ],
        out_specs=pl.BlockSpec((tile, cout), lambda i: (i, 0)),
        compiler_params=pltpu.CompilerParams(dimension_semantics=("parallel",)),
    )(patches, w_mat, bias.reshape(1, cout).astype(jnp.float32))

    return out[:n].reshape(b, h2, w2, cout)                  # NHWC, bf16


def fc_head(feat, w1, b1, w2, b2):
    """Fused fc1 + relu + fc2 + sigmoid. feat: (B, 3136) NHWC-flat."""
    m = feat.shape[0]
    return pl.pallas_call(
        _fc_head_kernel,
        out_shape=jax.ShapeDtypeStruct((m, 1), jnp.float32),
    )(feat.astype(jnp.bfloat16), w1, b1.reshape(1, -1).astype(jnp.float32),
      w2, b2.reshape(1, -1).astype(jnp.float32))


# ---------------------------------------------------------------------------
# Full forward pass (matches D_curr.forward)
# ---------------------------------------------------------------------------
def d_curr_forward(x_nchw, params):
    b = x_nchw.shape[0]
    x = jnp.transpose(x_nchw, (0, 2, 3, 1))                          # NHWC

    # conv1 (3->32) + relu + pool   /   conv2 (32->64) + relu + pool
    y1 = conv_relu_pool(x, params["w1m"], params["conv1_b"], cin_pad=4)   # (B,14,14,32)
    y2 = conv_relu_pool(y1, params["w2m"], params["conv2_b"])             # (B,7,7,64)

    # fc1 weight rows are pre-permuted to NHWC order, so the NHWC flatten here
    # is equivalent to PyTorch's NCHW view(-1, 64*7*7) + original fc1 weights.
    feat = y2.reshape(b, 7 * 7 * 64)
    return fc_head(feat, params["fc1_wp"], params["fc1_b"],
                   params["fc2_wb"], params["fc2_b"])                     # (B,1)


# Pure-JAX f32 reference (same math as the PyTorch module) for correctness.
def reference_forward(x_nchw, params):
    dn = ("NCHW", "OIHW", "NCHW")
    y = lax.conv_general_dilated(x_nchw, params["conv1_w"], (1, 1), "SAME",
                                 dimension_numbers=dn)
    y = jax.nn.relu(y + params["conv1_b"][None, :, None, None])
    y = lax.reduce_window(y, -jnp.inf, lax.max, (1, 1, 2, 2), (1, 1, 2, 2), "VALID")
    y = lax.conv_general_dilated(y, params["conv2_w"], (1, 1), "SAME",
                                 dimension_numbers=dn)
    y = jax.nn.relu(y + params["conv2_b"][None, :, None, None])
    y = lax.reduce_window(y, -jnp.inf, lax.max, (1, 1, 2, 2), (1, 1, 2, 2), "VALID")
    y = y.reshape(y.shape[0], 64 * 7 * 7)
    y = jax.nn.relu(y @ params["fc1_w"] + params["fc1_b"])
    y = y @ params["fc2_w"] + params["fc2_b"]
    return jax.nn.sigmoid(y)


def init_params(key):
    ks = jax.random.split(key, 8)
    conv1_w = jax.random.normal(ks[0], (32, 3, 3, 3), jnp.float32) * 0.1   # OIHW
    conv1_b = jax.random.normal(ks[1], (32,), jnp.float32) * 0.05
    conv2_w = jax.random.normal(ks[2], (64, 32, 3, 3), jnp.float32) * 0.05
    conv2_b = jax.random.normal(ks[3], (64,), jnp.float32) * 0.05
    fc1_w = jax.random.normal(ks[4], (64 * 7 * 7, 128), jnp.float32) * 0.02
    fc1_b = jax.random.normal(ks[5], (128,), jnp.float32) * 0.05
    fc2_w = jax.random.normal(ks[6], (128, 1), jnp.float32) * 0.05
    fc2_b = jax.random.normal(ks[7], (1,), jnp.float32) * 0.05
    params = dict(conv1_w=conv1_w, conv1_b=conv1_b,
                  conv2_w=conv2_w, conv2_b=conv2_b,
                  fc1_w=fc1_w, fc1_b=fc1_b,
                  fc2_w=fc2_w, fc2_b=fc2_b)

    # conv1 im2col weights, (ky, kx, cin) feature order, Cin padded 3->4, bf16.
    w1 = jnp.pad(conv1_w.transpose(2, 3, 1, 0), ((0, 0), (0, 0), (0, 1), (0, 0)))
    params["w1m"] = w1.reshape(9 * 4, 32).astype(jnp.bfloat16)
    params["w2m"] = conv2_w.transpose(2, 3, 1, 0).reshape(9 * 32, 64).astype(jnp.bfloat16)
    # fc1 weights with rows permuted from NCHW-flat to NHWC-flat feature order.
    params["fc1_wp"] = (fc1_w.reshape(64, 7, 7, 128)
                        .transpose(1, 2, 0, 3)
                        .reshape(64 * 7 * 7, 128)
                        .astype(jnp.bfloat16))
    params["fc2_wb"] = fc2_w.astype(jnp.bfloat16)
    return params


if __name__ == "__main__":
    key = jax.random.PRNGKey(0)
    pkey, xkey = jax.random.split(key)
    params = init_params(pkey)

    # fc1 expects 64*7*7 features -> 28x28 spatial input, 3 channels, batch 2.
    x = jax.random.normal(xkey, (2, 3, 28, 28), jnp.float32)

    out = jax.block_until_ready(jax.jit(d_curr_forward)(x, params))
    ref = jax.block_until_ready(jax.jit(reference_forward)(x, params))

    assert out.shape == (2, 1), out.shape
    max_err = float(jnp.max(jnp.abs(out - ref)))
    assert max_err < 3e-2, f"mismatch vs reference: {max_err}"
    print("KERNEL_OK")
</pallas_src>

<mosaic_0001>
module attributes {stable_mosaic.version = 11 : i64} {
  func.func @_conv_relu_pool_kernel(%arg0: i32, %arg1: memref<4x208x36xbf16, #tpu.memory_space<vmem>>, %arg2: memref<36x32xbf16, #tpu.memory_space<vmem>>, %arg3: memref<1x32xf32, #tpu.memory_space<vmem>>, %arg4: memref<208x32xbf16, #tpu.memory_space<vmem>>) attributes {dimension_semantics = [#tpu.dimension_semantics<parallel>], iteration_bounds = array<i64: 2>, scalar_prefetch = 0 : i64, scratch_operands = 0 : i64, tpu.core_type = #tpu.core_type<tc>, window_params = [{transform_indices = @transform_0, window_bounds = array<i64: 4, 208, 36>}, {pipeline_mode = #tpu.pipeline_mode<synchronous>, transform_indices = @transform_1, window_bounds = array<i64: 36, 32>}, {pipeline_mode = #tpu.pipeline_mode<synchronous>, transform_indices = @transform_2, window_bounds = array<i64: 1, 32>}, {transform_indices = @transform_3, window_bounds = array<i64: 208, 32>}]} {
    %c0 = arith.constant 0 : index
    %c0_0 = arith.constant 0 : index
    %0 = vector.load %arg2[%c0, %c0_0] : memref<36x32xbf16, #tpu.memory_space<vmem>>, vector<36x32xbf16>
    %c0_1 = arith.constant 0 : index
    %c0_2 = arith.constant 0 : index
    %c0_3 = arith.constant 0 : index
    %1 = vector.load %arg1[%c0_1, %c0_2, %c0_3] : memref<4x208x36xbf16, #tpu.memory_space<vmem>>, vector<1x208x36xbf16>
    %2 = vector.shape_cast %1 : vector<1x208x36xbf16> to vector<208x36xbf16>
    %cst = arith.constant dense<0.000000e+00> : vector<208x32xf32>
    %3 = tpu.matmul %2, %0, %cst {dimension_numbers = #tpu.dot_dimension_numbers<[1], [0], [0], [1], [0, 0, 1, 1], [], []>} : vector<208x36xbf16>, vector<36x32xbf16>, vector<208x32xf32> -> vector<208x32xf32>
    %c1 = arith.constant 1 : index
    %c0_4 = arith.constant 0 : index
    %c0_5 = arith.constant 0 : index
    %4 = vector.load %arg1[%c1, %c0_4, %c0_5] : memref<4x208x36xbf16, #tpu.memory_space<vmem>>, vector<1x208x36xbf16>
    %5 = vector.shape_cast %4 : vector<1x208x36xbf16> to vector<208x36xbf16>
    %cst_6 = arith.constant dense<0.000000e+00> : vector<208x32xf32>
    %6 = tpu.matmul %5, %0, %cst_6 {dimension_numbers = #tpu.dot_dimension_numbers<[1], [0], [0], [1], [0, 0, 1, 1], [], []>} : vector<208x36xbf16>, vector<36x32xbf16>, vector<208x32xf32> -> vector<208x32xf32>
    %7 = arith.maximumf %3, %6 : vector<208x32xf32>
    %c2 = arith.constant 2 : index
    %c0_7 = arith.constant 0 : index
    %c0_8 = arith.constant 0 : index
    %8 = vector.load %arg1[%c2, %c0_7, %c0_8] : memref<4x208x36xbf16, #tpu.memory_space<vmem>>, vector<1x208x36xbf16>
    %9 = vector.shape_cast %8 : vector<1x208x36xbf16> to vector<208x36xbf16>
    %cst_9 = arith.constant dense<0.000000e+00> : vector<208x32xf32>
    %10 = tpu.matmul %9, %0, %cst_9 {dimension_numbers = #tpu.dot_dimension_numbers<[1], [0], [0], [1], [0, 0, 1, 1], [], []>} : vector<208x36xbf16>, vector<36x32xbf16>, vector<208x32xf32> -> vector<208x32xf32>
    %11 = arith.maximumf %7, %10 : vector<208x32xf32>
    %c3 = arith.constant 3 : index
    %c0_10 = arith.constant 0 : index
    %c0_11 = arith.constant 0 : index
    %12 = vector.load %arg1[%c3, %c0_10, %c0_11] : memref<4x208x36xbf16, #tpu.memory_space<vmem>>, vector<1x208x36xbf16>
    %13 = vector.shape_cast %12 : vector<1x208x36xbf16> to vector<208x36xbf16>
    %cst_12 = arith.constant dense<0.000000e+00> : vector<208x32xf32>
    %14 = tpu.matmul %13, %0, %cst_12 {dimension_numbers = #tpu.dot_dimension_numbers<[1], [0], [0], [1], [0, 0, 1, 1], [], []>} : vector<208x36xbf16>, vector<36x32xbf16>, vector<208x32xf32> -> vector<208x32xf32>
    %15 = arith.maximumf %11, %14 : vector<208x32xf32>
    %c0_13 = arith.constant 0 : index
    %c0_14 = arith.constant 0 : index
    %16 = vector.load %arg3[%c0_13, %c0_14] : memref<1x32xf32, #tpu.memory_space<vmem>>, vector<1x32xf32>
    %17 = vector.broadcast %16 : vector<1x32xf32> to vector<208x32xf32>
    %18 = arith.addf %15, %17 : vector<208x32xf32>
    %cst_15 = arith.constant 0.000000e+00 : f32
    %19 = vector.broadcast %cst_15 : f32 to vector<208x32xf32>
    %20 = arith.maximumf %18, %19 : vector<208x32xf32>
    %21 = arith.truncf %20 : vector<208x32xf32> to vector<208x32xbf16>
    %c0_16 = arith.constant 0 : index
    %c0_17 = arith.constant 0 : index
    %22 = vector.load %arg4[%c0_16, %c0_17] : memref<208x32xbf16, #tpu.memory_space<vmem>>, vector<208x32xbf16>
    tpu.vector_store %arg4[%c0_16, %c0_17], %21 {strides = array<i32>} : memref<208x32xbf16, #tpu.memory_space<vmem>>, vector<208x32xbf16>,
    return
  }
  func.func @transform_0(%arg0: i32) -> (i32, i32, i32) {
    %c0_i32 = arith.constant 0 : i32
    %c0_i32_0 = arith.constant 0 : i32
    %c0_i32_1 = arith.constant 0 : i32
    return %c0_i32, %arg0, %c0_i32_0 : i32, i32, i32
  }
  func.func @transform_1(%arg0: i32) -> (i32, i32) {
    %c0_i32 = arith.constant 0 : i32
    %c0_i32_0 = arith.constant 0 : i32
    %c0_i32_1 = arith.constant 0 : i32
    return %c0_i32, %c0_i32_0 : i32, i32
  }
  func.func @transform_2(%arg0: i32) -> (i32, i32) {
    %c0_i32 = arith.constant 0 : i32
    %c0_i32_0 = arith.constant 0 : i32
    %c0_i32_1 = arith.constant 0 : i32
    return %c0_i32, %c0_i32_0 : i32, i32
  }
  func.func @transform_3(%arg0: i32) -> (i32, i32) {
    %c0_i32 = arith.constant 0 : i32
    %c0_i32_0 = arith.constant 0 : i32
    return %arg0, %c0_i32 : i32, i32
  }
}

module attributes {stable_mosaic.version = 11 : i64} {
  func.func @_conv_relu_pool_kernel(%arg0: i32, %arg1: memref<4x64x288xbf16, #tpu.memory_space<vmem>>, %arg2: memref<288x64xbf16, #tpu.memory_space<vmem>>, %arg3: memref<1x64xf32, #tpu.memory_space<vmem>>, %arg4: memref<64x64xbf16, #tpu.memory_space<vmem>>) attributes {dimension_semantics = [#tpu.dimension_semantics<parallel>], iteration_bounds = array<i64: 2>, scalar_prefetch = 0 : i64, scratch_operands = 0 : i64, tpu.core_type = #tpu.core_type<tc>, window_params = [{transform_indices = @transform_0, window_bounds = array<i64: 4, 64, 288>}, {pipeline_mode = #tpu.pipeline_mode<synchronous>, transform_indices = @transform_1, window_bounds = array<i64: 288, 64>}, {pipeline_mode = #tpu.pipeline_mode<synchronous>, transform_indices = @transform_2, window_bounds = array<i64: 1, 64>}, {transform_indices = @transform_3, window_bounds = array<i64: 64, 64>}]} {
    %c0 = arith.constant 0 : index
    %c0_0 = arith.constant 0 : index
    %0 = vector.load %arg2[%c0, %c0_0] : memref<288x64xbf16, #tpu.memory_space<vmem>>, vector<288x64xbf16>
    %c0_1 = arith.constant 0 : index
    %c0_2 = arith.constant 0 : index
    %c0_3 = arith.constant 0 : index
    %1 = vector.load %arg1[%c0_1, %c0_2, %c0_3] : memref<4x64x288xbf16, #tpu.memory_space<vmem>>, vector<1x64x288xbf16>
    %2 = vector.shape_cast %1 : vector<1x64x288xbf16> to vector<64x288xbf16>
    %cst = arith.constant dense<0.000000e+00> : vector<64x64xf32>
    %3 = tpu.matmul %2, %0, %cst {dimension_numbers = #tpu.dot_dimension_numbers<[1], [0], [0], [1], [0, 0, 1, 1], [], []>} : vector<64x288xbf16>, vector<288x64xbf16>, vector<64x64xf32> -> vector<64x64xf32>
    %c1 = arith.constant 1 : index
    %c0_4 = arith.constant 0 : index
    %c0_5 = arith.constant 0 : index
    %4 = vector.load %arg1[%c1, %c0_4, %c0_5] : memref<4x64x288xbf16, #tpu.memory_space<vmem>>, vector<1x64x288xbf16>
    %5 = vector.shape_cast %4 : vector<1x64x288xbf16> to vector<64x288xbf16>
    %cst_6 = arith.constant dense<0.000000e+00> : vector<64x64xf32>
    %6 = tpu.matmul %5, %0, %cst_6 {dimension_numbers = #tpu.dot_dimension_numbers<[1], [0], [0], [1], [0, 0, 1, 1], [], []>} : vector<64x288xbf16>, vector<288x64xbf16>, vector<64x64xf32> -> vector<64x64xf32>
    %7 = arith.maximumf %3, %6 : vector<64x64xf32>
    %c2 = arith.constant 2 : index
    %c0_7 = arith.constant 0 : index
    %c0_8 = arith.constant 0 : index
    %8 = vector.load %arg1[%c2, %c0_7, %c0_8] : memref<4x64x288xbf16, #tpu.memory_space<vmem>>, vector<1x64x288xbf16>
    %9 = vector.shape_cast %8 : vector<1x64x288xbf16> to vector<64x288xbf16>
    %cst_9 = arith.constant dense<0.000000e+00> : vector<64x64xf32>
    %10 = tpu.matmul %9, %0, %cst_9 {dimension_numbers = #tpu.dot_dimension_numbers<[1], [0], [0], [1], [0, 0, 1, 1], [], []>} : vector<64x288xbf16>, vector<288x64xbf16>, vector<64x64xf32> -> vector<64x64xf32>
    %11 = arith.maximumf %7, %10 : vector<64x64xf32>
    %c3 = arith.constant 3 : index
    %c0_10 = arith.constant 0 : index
    %c0_11 = arith.constant 0 : index
    %12 = vector.load %arg1[%c3, %c0_10, %c0_11] : memref<4x64x288xbf16, #tpu.memory_space<vmem>>, vector<1x64x288xbf16>
    %13 = vector.shape_cast %12 : vector<1x64x288xbf16> to vector<64x288xbf16>
    %cst_12 = arith.constant dense<0.000000e+00> : vector<64x64xf32>
    %14 = tpu.matmul %13, %0, %cst_12 {dimension_numbers = #tpu.dot_dimension_numbers<[1], [0], [0], [1], [0, 0, 1, 1], [], []>} : vector<64x288xbf16>, vector<288x64xbf16>, vector<64x64xf32> -> vector<64x64xf32>
    %15 = arith.maximumf %11, %14 : vector<64x64xf32>
    %c0_13 = arith.constant 0 : index
    %c0_14 = arith.constant 0 : index
    %16 = vector.load %arg3[%c0_13, %c0_14] : memref<1x64xf32, #tpu.memory_space<vmem>>, vector<1x64xf32>
    %17 = vector.broadcast %16 : vector<1x64xf32> to vector<64x64xf32>
    %18 = arith.addf %15, %17 : vector<64x64xf32>
    %cst_15 = arith.constant 0.000000e+00 : f32
    %19 = vector.broadcast %cst_15 : f32 to vector<64x64xf32>
    %20 = arith.maximumf %18, %19 : vector<64x64xf32>
    %21 = arith.truncf %20 : vector<64x64xf32> to vector<64x64xbf16>
    %c0_16 = arith.constant 0 : index
    %c0_17 = arith.constant 0 : index
    %22 = vector.load %arg4[%c0_16, %c0_17] : memref<64x64xbf16, #tpu.memory_space<vmem>>, vector<64x64xbf16>
    tpu.vector_store %arg4[%c0_16, %c0_17], %21 {strides = array<i32>} : memref<64x64xbf16, #tpu.memory_space<vmem>>, vector<64x64xbf16>,
    return
  }
  func.func @transform_0(%arg0: i32) -> (i32, i32, i32) {
    %c0_i32 = arith.constant 0 : i32
    %c0_i32_0 = arith.constant 0 : i32
    %c0_i32_1 = arith.constant 0 : i32
    return %c0_i32, %arg0, %c0_i32_0 : i32, i32, i32
  }
  func.func @transform_1(%arg0: i32) -> (i32, i32) {
    %c0_i32 = arith.constant 0 : i32
    %c0_i32_0 = arith.constant 0 : i32
    %c0_i32_1 = arith.constant 0 : i32
    return %c0_i32, %c0_i32_0 : i32, i32
  }
  func.func @transform_2(%arg0: i32) -> (i32, i32) {
    %c0_i32 = arith.constant 0 : i32
    %c0_i32_0 = arith.constant 0 : i32
    %c0_i32_1 = arith.constant 0 : i32
    return %c0_i32, %c0_i32_0 : i32, i32
  }
  func.func @transform_3(%arg0: i32) -> (i32, i32) {
    %c0_i32 = arith.constant 0 : i32
    %c0_i32_0 = arith.constant 0 : i32
    return %arg0, %c0_i32 : i32, i32
  }
}

module attributes {stable_mosaic.version = 11 : i64} {
  func.func @_fc_head_kernel(%arg0: memref<2x3136xbf16, #tpu.memory_space<vmem>>, %arg1: memref<3136x128xbf16, #tpu.memory_space<vmem>>, %arg2: memref<1x128xf32, #tpu.memory_space<vmem>>, %arg3: memref<128x1xbf16, #tpu.memory_space<vmem>>, %arg4: memref<1x1xf32, #tpu.memory_space<vmem>>, %arg5: memref<2x1xf32, #tpu.memory_space<vmem>>) attributes {dimension_semantics = [], scalar_prefetch = 0 : i64, scratch_operands = 0 : i64, tpu.core_type = #tpu.core_type<tc>} {
    %c0 = arith.constant 0 : index
    %c0_0 = arith.constant 0 : index
    %0 = vector.load %arg0[%c0, %c0_0] : memref<2x3136xbf16, #tpu.memory_space<vmem>>, vector<2x3136xbf16>
    %c0_1 = arith.constant 0 : index
    %c0_2 = arith.constant 0 : index
    %1 = vector.load %arg1[%c0_1, %c0_2] : memref<3136x128xbf16, #tpu.memory_space<vmem>>, vector<3136x128xbf16>
    %cst = arith.constant dense<0.000000e+00> : vector<2x128xf32>
    %2 = tpu.matmul %0, %1, %cst {dimension_numbers = #tpu.dot_dimension_numbers<[1], [0], [0], [1], [0, 0, 1, 1], [], []>} : vector<2x3136xbf16>, vector<3136x128xbf16>, vector<2x128xf32> -> vector<2x128xf32>
    %c0_3 = arith.constant 0 : index
    %c0_4 = arith.constant 0 : index
    %3 = vector.load %arg2[%c0_3, %c0_4] : memref<1x128xf32, #tpu.memory_space<vmem>>, vector<1x128xf32>
    %4 = vector.broadcast %3 : vector<1x128xf32> to vector<2x128xf32>
    %5 = arith.addf %2, %4 : vector<2x128xf32>
    %cst_5 = arith.constant 0.000000e+00 : f32
    %6 = vector.broadcast %cst_5 : f32 to vector<2x128xf32>
    %7 = arith.maximumf %5, %6 : vector<2x128xf32>
    %8 = arith.truncf %7 : vector<2x128xf32> to vector<2x128xbf16>
    %c0_6 = arith.constant 0 : index
    %c0_7 = arith.constant 0 : index
    %9 = vector.load %arg3[%c0_6, %c0_7] : memref<128x1xbf16, #tpu.memory_space<vmem>>, vector<128x1xbf16>
    %cst_8 = arith.constant dense<0.000000e+00> : vector<2x1xf32>
    %10 = tpu.matmul %8, %9, %cst_8 {dimension_numbers = #tpu.dot_dimension_numbers<[1], [0], [0], [1], [0, 0, 1, 1], [], []>} : vector<2x128xbf16>, vector<128x1xbf16>, vector<2x1xf32> -> vector<2x1xf32>
    %c0_9 = arith.constant 0 : index
    %c0_10 = arith.constant 0 : index
    %11 = vector.load %arg4[%c0_9, %c0_10] : memref<1x1xf32, #tpu.memory_space<vmem>>, vector<1x1xf32>
    %12 = vector.broadcast %11 : vector<1x1xf32> to vector<2x1xf32>
    %13 = arith.addf %10, %12 : vector<2x1xf32>
    %cst_11 = arith.constant 0.000000e+00 : f32
    %14 = vector.broadcast %cst_11 : f32 to vector<2x1xf32>
    %15 = arith.subf %14, %13 : vector<2x1xf32>
    %16 = math.exp %15 : vector<2x1xf32>
    %cst_12 = arith.constant 1.000000e+00 : f32
    %17 = vector.broadcast %cst_12 : f32 to vector<2x1xf32>
    %18 = arith.addf %17, %16 : vector<2x1xf32>
    %19 = tpu.reciprocal %18 {approx = true} : vector<2x1xf32> -> vector<2x1xf32>
    %c0_13 = arith.constant 0 : index
    %c0_14 = arith.constant 0 : index
    %20 = vector.load %arg5[%c0_13, %c0_14] : memref<2x1xf32, #tpu.memory_space<vmem>>, vector<2x1xf32>
    tpu.vector_store %arg5[%c0_13, %c0_14], %19 {strides = array<i32>} : memref<2x1xf32, #tpu.memory_space<vmem>>, vector<2x1xf32>,
    return
  }
}

</mosaic_0001>

<llo_original>
// kernel: d_curr_forward.3
$region0: #{d_curr_forward.3}
  #allocation0 [shape = 'u32[]', space=smem, size = 0x4, offset = 0x4, fixed_abs, tag = 'smem constant byte address 0x4 - core index']
  #allocation1 [shape = 'u32[72,128]{1,0:T(1,128)}', space=vmem, size = 0x9000, scoped, tag = 'internal scratch']
  %s0 = inlined_call_operand.vmem [shape: bf16[4,416,36], index: 0, kind: input, shape index: {}]
  %s1 = inlined_call_operand.vmem [shape: bf16[36,32], index: 1, kind: input, shape index: {}]
  %s2 = inlined_call_operand.vmem [shape: f32[1,32], index: 2, kind: input, shape index: {}]
  %s3 = inlined_call_operand.vmem [shape: bf16[416,32], index: 3, kind: output, shape index: {}]
  %s4 = sld [smem:[#allocation0]]
  $region86: #{d_curr_forward.3} parent=0
    _
  %s6 = ssub.s32 1, %s4
  %s7 = scalar_select 0, %s6, %s4
  $region1: #{d_curr_forward.3} parent=0
    #allocation2 [shape = 'u8[425984]{0}', space=vmem, size = 0x68000, scoped, tag = 'input window, operand 0']
    loop: start=0, step=1, limit=4
    $region2: #{d_curr_forward.3} parent=1 // loop_pre_header
      _
    $region3: #{d_curr_forward.3} parent=1 // loop_header
      %s9 = sphi 0, %s13
      %p10 = scmp.ge.s32.totalorder %s9, 4
      %s19 = sphi 0, %s21
      %s22 = sphi 0, %s19
      %s23 = sphi 0, %s22
      %s39 = sphi 0, %s23
      %s43 = sphi 0, %s43
      %s45 = sphi 0, %s43
      %s46 = sphi 0, %s45
      %s60 = sphi 0, %s46
      %s64 = sphi 0, %s64
      %s66 = sphi 0, %s64
      %s67 = sphi 0, %s66
      %s81 = sphi 0, %s67
      %s87 = sphi 0, %s89
      %s90 = sphi 0, %s87
      %s91 = sphi 0, %s90
      %s107 = sphi 0, %s91
    $region4: #{d_curr_forward.3} parent=1 // loop_header_branch
      %12 = sbr.rel (%p10) target = $region8
    $region5: #{d_curr_forward.3} parent=1 // loop_body
      %s14 = ssub.s32 %s9, 1
      %s15 = ssub.s32 %s9, 2
      %s16 = sadd.s32 %s9, 1
      %s17 = ssub.s32 %s9, %s16
      %p18 = scmp.eq.s32.totalorder %s17, 0
      %s20 = sadd.s32 %s19, 1
      %s21 = scalar_select %p18, %s19, %s20
      %p24 = pneg %p18
      %p25 = scmp.eq.s32.totalorder %s9, 1
      %p26 = por %p24, %p25
      %p27 = scmp.ne.s32.totalorder %s19, %s22
      %p28 = scmp.eq.s32.totalorder %s9, 0
      %p29 = por %p27, %p28
      %p30 = scmp.ne.s32.totalorder %s19, %s22
      %p31 = scmp.eq.s32.totalorder %s14, 1
      %p32 = por %p30, %p31
      %p33 = scmp.ne.s32.totalorder %s22, %s23
      %p34 = scmp.eq.s32.totalorder %s14, 0
      %p35 = por %p33, %p34
      %p36 = scmp.ne.s32.totalorder %s22, %s23
      %p37 = scmp.eq.s32.totalorder %s15, 1
      %p38 = por %p36, %p37
      %p40 = scmp.ne.s32.totalorder %s23, %s39
      %p41 = scmp.eq.s32.totalorder %s15, 0
      %p42 = por %p40, %p41
      %s44 = sadd.s32 %s43, 1
      %p47 = scmp.eq.s32.totalorder %s9, 1
      %p48 = scmp.ne.s32.totalorder %s43, %s45
      %p49 = scmp.eq.s32.totalorder %s9, 0
      %p50 = por %p48, %p49
      %p51 = scmp.ne.s32.totalorder %s43, %s45
      %p52 = scmp.eq.s32.totalorder %s14, 1
      %p53 = por %p51, %p52
      %p54 = scmp.ne.s32.totalorder %s45, %s46
      %p55 = scmp.eq.s32.totalorder %s14, 0
      %p56 = por %p54, %p55
      %p57 = scmp.ne.s32.totalorder %s45, %s46
      %p58 = scmp.eq.s32.totalorder %s15, 1
      %p59 = por %p57, %p58
      %p61 = scmp.ne.s32.totalorder %s46, %s60
      %p62 = scmp.eq.s32.totalorder %s15, 0
      %p63 = por %p61, %p62
      %s65 = sadd.s32 %s64, 1
      %p68 = scmp.eq.s32.totalorder %s9, 1
      %p69 = scmp.ne.s32.totalorder %s64, %s66
      %p70 = scmp.eq.s32.totalorder %s9, 0
      %p71 = por %p69, %p70
      %p72 = scmp.ne.s32.totalorder %s64, %s66
      %p73 = scmp.eq.s32.totalorder %s14, 1
      %p74 = por %p72, %p73
      %p75 = scmp.ne.s32.totalorder %s66, %s67
      %p76 = scmp.eq.s32.totalorder %s14, 0
      %p77 = por %p75, %p76
      %p78 = scmp.ne.s32.totalorder %s66, %s67
      %p79 = scmp.eq.s32.totalorder %s15, 1
      %p80 = por %p78, %p79
      %p82 = scmp.ne.s32.totalorder %s67, %s81
      %p83 = scmp.eq.s32.totalorder %s15, 0
      %p84 = por %p82, %p83
      %s85 = ssub.s32 %s9, %s16
      %p86 = scmp.eq.s32.totalorder %s85, 0
      %s88 = sadd.s32 %s87, 1
      %s89 = scalar_select %p86, %s87, %s88
      %p92 = pneg %p86
      %p93 = scmp.eq.s32.totalorder %s9, 1
      %p94 = por %p92, %p93
      %p95 = scmp.ne.s32.totalorder %s87, %s90
      %p96 = scmp.eq.s32.totalorder %s9, 0
      %p97 = por %p95, %p96
      %p98 = scmp.ne.s32.totalorder %s87, %s90
      %p99 = scmp.eq.s32.totalorder %s14, 1
      %p100 = por %p98, %p99
      %p101 = scmp.ne.s32.totalorder %s90, %s91
      %p102 = scmp.eq.s32.totalorder %s14, 0
      %p103 = por %p101, %p102
      %p104 = scmp.ne.s32.totalorder %s90, %s91
      %p105 = scmp.eq.s32.totalorder %s15, 1
      %p106 = por %p104, %p105
      %p108 = scmp.ne.s32.totalorder %s91, %s107
      %p109 = scmp.eq.s32.totalorder %s15, 0
      %p110 = por %p108, %p109
      %p111 = scmp.le.s32.totalorder 1, %s9
      %p112 = scmp.lt.s32.totalorder %s9, 3
      %p113 = pnand %p111, %p112
      %p114 = pneg %p113
      // Predicated region
      $region9: #{d_curr_forward.3} parent=5 // pred_check
        _
      $region10: #{d_curr_forward.3} parent=5 // pred_check_branch
        %116 = sbr.rel (%p113) target = $region12
      $region11: #{d_curr_forward.3} parent=5 // pred_region
        %s117 = ssub.s32 %s9, 1
        // Predicated region
        $region13: #{d_curr_forward.3} parent=11 // pred_check
          %p118 = pneg %p56
        $region14: #{d_curr_forward.3} parent=11 // pred_check_branch
          %120 = sbr.rel (%p118) target = $region16
        $region15: #{d_curr_forward.3} parent=11 // pred_region
          _
        $region16: #{d_curr_forward.3} parent=11 // pred_fallthru
          _
        // Predicated region
        $region17: #{d_curr_forward.3} parent=11 // pred_check
          %p121 = pneg %p77
        $region18: #{d_curr_forward.3} parent=11 // pred_check_branch
          %123 = sbr.rel (%p121) target = $region20
        $region19: #{d_curr_forward.3} parent=11 // pred_region
          _
        $region20: #{d_curr_forward.3} parent=11 // pred_fallthru
          _
      $region12: #{d_curr_forward.3} parent=5 // pred_fallthru
        _
      %p124 = scmp.lt.s32.totalorder %s9, 2
      // Predicated region
      $region21: #{d_curr_forward.3} parent=5 // pred_check
        %p125 = pneg %p124
      $region22: #{d_curr_forward.3} parent=5 // pred_check_branch
        %127 = sbr.rel (%p125) target = $region24
      $region23: #{d_curr_forward.3} parent=5 // pred_region
        // Predicated region
        $region25: #{d_curr_forward.3} parent=23 // pred_check
          %p128 = pneg %p29
        $region26: #{d_curr_forward.3} parent=23 // pred_check_branch
          %130 = sbr.rel (%p128) target = $region28
        $region27: #{d_curr_forward.3} parent=23 // pred_region
          %s131 = sand.u32 %s19, 1
          %s132 = sand.u32 %s19, 1
          %s133 = smul.addr %s132, 416
          %s134 = scalar_lea.vmem [#allocation2], %s133
          %s135 = smul.u32 26, %s9
          %s136 = smul.addr %s135, 4
          %s137 = scalar_lea.vmem %s0, %s136
          // Predicated region
          $region29: #{d_curr_forward.3} parent=27 // pred_check
            _
          $region30: #{d_curr_forward.3} parent=27 // pred_check_branch
            %139 = sbr.rel (0) target = $region32
          $region31: #{d_curr_forward.3} parent=27 // pred_region
            // Predicated region
            $region33: #{d_curr_forward.3} parent=31 // pred_check
              _
            $region34: #{d_curr_forward.3} parent=31 // pred_check_branch
              %141 = sbr.rel target = $region36
            $region35: #{d_curr_forward.3} parent=31 // pred_region
              // Predicated region
              $region48: #{d_curr_forward.3} parent=35 // pred_check
                _
              $region49: #{d_curr_forward.3} parent=35 // pred_check_branch
                %363 = sbr.rel (0) target = $region51
              $region50: #{d_curr_forward.3} parent=35 // pred_region
                loop: start=0, step=1, limit=1
                $region52: #{d_curr_forward.3} parent=50 // loop_pre_header
                  _
                $region53: #{d_curr_forward.3} parent=50 // loop_header
                  %s365 = sphi 0, %s369
                  %p366 = scmp.ge.s32.totalorder %s365, 1
                  %s370 = sphi %s137, %s137
                  %s371 = sphi %s134, %s134
                $region54: #{d_curr_forward.3} parent=50 // loop_header_branch
                  %368 = sbr.rel (%p366) target = $region58
                $region55: #{d_curr_forward.3} parent=50 // loop_body
                  _
                $region56: #{d_curr_forward.3} parent=50 // loop_footer
                  %s369 = sadd.s32 1, %s365
                $region57: #{d_curr_forward.3} parent=50 // loop_footer_branch
                  %364 = sbr.rel target = $region53
                $region58: #{d_curr_forward.3} parent=50 // loop_exit
                  _
                %s373 = ssub.s32 16, 1
                loop: start=0, step=1, limit=1
                $region59: #{d_curr_forward.3} parent=50 // loop_pre_header
                  _
                $region60: #{d_curr_forward.3} parent=50 // loop_header
                  %s375 = sphi 0, %s379
                  %p376 = scmp.ge.s32.totalorder %s375, 1
                  %s380 = sphi %s137, %s137
                  %s381 = sphi %s134, %s134
                $region61: #{d_curr_forward.3} parent=50 // loop_header_branch
                  %378 = sbr.rel (%p376) target = $region65
                $region62: #{d_curr_forward.3} parent=50 // loop_body
                  %v382 = vld [vmem:[%s380] sm:%s373]
                  %383 = vst [vmem:[%s381] sm:%s373] %v382
                  %v384 = vld [vmem:[%s380 + $0x4] sm:%s373]
                  %385 = vst [vmem:[%s381 + $0x4] sm:%s373] %v384
                  %v386 = vld [vmem:[%s380 + $0x8] sm:%s373]
                  %387 = vst [vmem:[%s381 + $0x8] sm:%s373] %v386
                  %v388 = vld [vmem:[%s380 + $0xc] sm:%s373]
                  %389 = vst [vmem:[%s381 + $0xc] sm:%s373] %v388
                  %v390 = vld [vmem:[%s380 + $0x10] sm:%s373]
                  %391 = vst [vmem:[%s381 + $0x10] sm:%s373] %v390
                  %v392 = vld [vmem:[%s380 + $0x14] sm:%s373]
                  %393 = vst [vmem:[%s381 + $0x14] sm:%s373] %v392
                  %v394 = vld [vmem:[%s380 + $0x18] sm:%s373]
                  %395 = vst [vmem:[%s381 + $0x18] sm:%s373] %v394
                  %v396 = vld [vmem:[%s380 + $0x1c] sm:%s373]
                  %397 = vst [vmem:[%s381 + $0x1c] sm:%s373] %v396
                  %v398 = vld [vmem:[%s380 + $0x20] sm:%s373]
                  %399 = vst [vmem:[%s381 + $0x20] sm:%s373] %v398
                  %v400 = vld [vmem:[%s380 + $0x24] sm:%s373]
                  %401 = vst [vmem:[%s381 + $0x24] sm:%s373] %v400
                  %v402 = vld [vmem:[%s380 + $0x28] sm:%s373]
                  %403 = vst [vmem:[%s381 + $0x28] sm:%s373] %v402
                  %v404 = vld [vmem:[%s380 + $0x2c] sm:%s373]
                  %405 = vst [vmem:[%s381 + $0x2c] sm:%s373] %v404
                  %v406 = vld [vmem:[%s380 + $0x30] sm:%s373]
                  %407 = vst [vmem:[%s381 + $0x30] sm:%s373] %v406
                  %v408 = vld [vmem:[%s380 + $0x34] sm:%s373]
                  %409 = vst [vmem:[%s381 + $0x34] sm:%s373] %v408
                  %v410 = vld [vmem:[%s380 + $0x38] sm:%s373]
                  %411 = vst [vmem:[%s381 + $0x38] sm:%s373] %v410
                  %v412 = vld [vmem:[%s380 + $0x3c] sm:%s373]
                  %413 = vst [vmem:[%s381 + $0x3c] sm:%s373] %v412
                  %v414 = vld [vmem:[%s380 + $0x40] sm:%s373]
                  %415 = vst [vmem:[%s381 + $0x40] sm:%s373] %v414
                  %v416 = vld [vmem:[%s380 + $0x44] sm:%s373]
                  %417 = vst [vmem:[%s381 + $0x44] sm:%s373] %v416
                  %v418 = vld [vmem:[%s380 + $0x48] sm:%s373]
                  %419 = vst [vmem:[%s381 + $0x48] sm:%s373] %v418
                  %v420 = vld [vmem:[%s380 + $0x4c] sm:%s373]
                  %421 = vst [vmem:[%s381 + $0x4c] sm:%s373] %v420
                  %v422 = vld [vmem:[%s380 + $0x50] sm:%s373]
                  %423 = vst [vmem:[%s381 + $0x50] sm:%s373] %v422
                  %v424 = vld [vmem:[%s380 + $0x54] sm:%s373]
                  %425 = vst [vmem:[%s381 + $0x54] sm:%s373] %v424
                  %v426 = vld [vmem:[%s380 + $0x58] sm:%s373]
                  %427 = vst [vmem:[%s381 + $0x58] sm:%s373] %v426
                  %v428 = vld [vmem:[%s380 + $0x5c] sm:%s373]
                  %429 = vst [vmem:[%s381 + $0x5c] sm:%s373] %v428
                  %v430 = vld [vmem:[%s380 + $0x60] sm:%s373]
                  %431 = vst [vmem:[%s381 + $0x60] sm:%s373] %v430
                  %v432 = vld [vmem:[%s380 + $0x64] sm:%s373]
                  %433 = vst [vmem:[%s381 + $0x64] sm:%s373] %v432
                  %v434 = vld [vmem:[%s380 + $0xd0] sm:%s373]
                  %435 = vst [vmem:[%s381 + $0x68] sm:%s373] %v434
                  %v436 = vld [vmem:[%s380 + $0xd4] sm:%s373]
                  %437 = vst [vmem:[%s381 + $0x6c] sm:%s373] %v436
                  %v438 = vld [vmem:[%s380 + $0xd8] sm:%s373]
                  %439 = vst [vmem:[%s381 + $0x70] sm:%s373] %v438
                  %v440 = vld [vmem:[%s380 + $0xdc] sm:%s373]
                  %441 = vst [vmem:[%s381 + $0x74] sm:%s373] %v440
                  %v442 = vld [vmem:[%s380 + $0xe0] sm:%s373]
                  %443 = vst [vmem:[%s381 + $0x78] sm:%s373] %v442
                  %v444 = vld [vmem:[%s380 + $0xe4] sm:%s373]
                  %445 = vst [vmem:[%s381 + $0x7c] sm:%s373] %v444
                  %v446 = vld [vmem:[%s380 + $0xe8] sm:%s373]
                  %447 = vst [vmem:[%s381 + $0x80] sm:%s373] %v446
                  %v448 = vld [vmem:[%s380 + $0xec] sm:%s373]
                  %449 = vst [vmem:[%s381 + $0x84] sm:%s373] %v448
                  %v450 = vld [vmem:[%s380 + $0xf0] sm:%s373]
                  %451 = vst [vmem:[%s381 + $0x88] sm:%s373] %v450
                  %v452 = vld [vmem:[%s380 + $0xf4] sm:%s373]
                  %453 = vst [vmem:[%s381 + $0x8c] sm:%s373] %v452
                  %v454 = vld [vmem:[%s380 + $0xf8] sm:%s373]
                  %455 = vst [vmem:[%s381 + $0x90] sm:%s373] %v454
                  %v456 = vld [vmem:[%s380 + $0xfc] sm:%s373]
                  %457 = vst [vmem:[%s381 + $0x94] sm:%s373] %v456
                  %v458 = vld [vmem:[%s380 + $0x100] sm:%s373]
                  %459 = vst [vmem:[%s381 + $0x98] sm:%s373] %v458
                  %v460 = vld [vmem:[%s380 + $0x104] sm:%s373]
                  %461 = vst [vmem:[%s381 + $0x9c] sm:%s373] %v460
                  %v462 = vld [vmem:[%s380 + $0x108] sm:%s373]
                  %463 = vst [vmem:[%s381 + $0xa0] sm:%s373] %v462
                  %v464 = vld [vmem:[%s380 + $0x10c] sm:%s373]
                  %465 = vst [vmem:[%s381 + $0xa4] sm:%s373] %v464
                  %v466 = vld [vmem:[%s380 + $0x110] sm:%s373]
                  %467 = vst [vmem:[%s381 + $0xa8] sm:%s373] %v466
                  %v468 = vld [vmem:[%s380 + $0x114] sm:%s373]
                  %469 = vst [vmem:[%s381 + $0xac] sm:%s373] %v468
                  %v470 = vld [vmem:[%s380 + $0x118] sm:%s373]
                  %471 = vst [vmem:[%s381 + $0xb0] sm:%s373] %v470
                  %v472 = vld [vmem:[%s380 + $0x11c] sm:%s373]
                  %473 = vst [vmem:[%s381 + $0xb4] sm:%s373] %v472
                  %v474 = vld [vmem:[%s380 + $0x120] sm:%s373]
                  %475 = vst [vmem:[%s381 + $0xb8] sm:%s373] %v474
                  %v476 = vld [vmem:[%s380 + $0x124] sm:%s373]
                  %477 = vst [vmem:[%s381 + $0xbc] sm:%s373] %v476
                  %v478 = vld [vmem:[%s380 + $0x128] sm:%s373]
                  %479 = vst [vmem:[%s381 + $0xc0] sm:%s373] %v478
                  %v480 = vld [vmem:[%s380 + $0x12c] sm:%s373]
                  %481 = vst [vmem:[%s381 + $0xc4] sm:%s373] %v480
                  %v482 = vld [vmem:[%s380 + $0x130] sm:%s373]
                  %483 = vst [vmem:[%s381 + $0xc8] sm:%s373] %v482
                  %v484 = vld [vmem:[%s380 + $0x134] sm:%s373]
                  %485 = vst [vmem:[%s381 + $0xcc] sm:%s373] %v484
                  %v486 = vld [vmem:[%s380 + $0x1a0] sm:%s373]
                  %487 = vst [vmem:[%s381 + $0xd0] sm:%s373] %v486
                  %v488 = vld [vmem:[%s380 + $0x1a4] sm:%s373]
                  %489 = vst [vmem:[%s381 + $0xd4] sm:%s373] %v488
                  %v490 = vld [vmem:[%s380 + $0x1a8] sm:%s373]
                  %491 = vst [vmem:[%s381 + $0xd8] sm:%s373] %v490
                  %v492 = vld [vmem:[%s380 + $0x1ac] sm:%s373]
                  %493 = vst [vmem:[%s381 + $0xdc] sm:%s373] %v492
                  %v494 = vld [vmem:[%s380 + $0x1b0] sm:%s373]
                  %495 = vst [vmem:[%s381 + $0xe0] sm:%s373] %v494
                  %v496 = vld [vmem:[%s380 + $0x1b4] sm:%s373]
                  %497 = vst [vmem:[%s381 + $0xe4] sm:%s373] %v496
                  %v498 = vld [vmem:[%s380 + $0x1b8] sm:%s373]
                  %499 = vst [vmem:[%s381 + $0xe8] sm:%s373] %v498
                  %v500 = vld [vmem:[%s380 + $0x1bc] sm:%s373]
                  %501 = vst [vmem:[%s381 + $0xec] sm:%s373] %v500
                  %v502 = vld [vmem:[%s380 + $0x1c0] sm:%s373]
                  %503 = vst [vmem:[%s381 + $0xf0] sm:%s373] %v502
                  %v504 = vld [vmem:[%s380 + $0x1c4] sm:%s373]
                  %505 = vst [vmem:[%s381 + $0xf4] sm:%s373] %v504
                  %v506 = vld [vmem:[%s380 + $0x1c8] sm:%s373]
                  %507 = vst [vmem:[%s381 + $0xf8] sm:%s373] %v506
                  %v508 = vld [vmem:[%s380 + $0x1cc] sm:%s373]
                  %509 = vst [vmem:[%s381 + $0xfc] sm:%s373] %v508
                  %v510 = vld [vmem:[%s380 + $0x1d0] sm:%s373]
                  %511 = vst [vmem:[%s381 + $0x100] sm:%s373] %v510
                  %v512 = vld [vmem:[%s380 + $0x1d4] sm:%s373]
                  %513 = vst [vmem:[%s381 + $0x104] sm:%s373] %v512
                  %v514 = vld [vmem:[%s380 + $0x1d8] sm:%s373]
                  %515 = vst [vmem:[%s381 + $0x108] sm:%s373] %v514
                  %v516 = vld [vmem:[%s380 + $0x1dc] sm:%s373]
                  %517 = vst [vmem:[%s381 + $0x10c] sm:%s373] %v516
                  %v518 = vld [vmem:[%s380 + $0x1e0] sm:%s373]
                  %519 = vst [vmem:[%s381 + $0x110] sm:%s373] %v518
                  %v520 = vld [vmem:[%s380 + $0x1e4] sm:%s373]
                  %521 = vst [vmem:[%s381 + $0x114] sm:%s373] %v520
                  %v522 = vld [vmem:[%s380 + $0x1e8] sm:%s373]
                  %523 = vst [vmem:[%s381 + $0x118] sm:%s373] %v522
                  %v524 = vld [vmem:[%s380 + $0x1ec] sm:%s373]
                  %525 = vst [vmem:[%s381 + $0x11c] sm:%s373] %v524
                  %v526 = vld [vmem:[%s380 + $0x1f0] sm:%s373]
                  %527 = vst [vmem:[%s381 + $0x120] sm:%s373] %v526
                  %v528 = vld [vmem:[%s380 + $0x1f4] sm:%s373]
                  %529 = vst [vmem:[%s381 + $0x124] sm:%s373] %v528
                  %v530 = vld [vmem:[%s380 + $0x1f8] sm:%s373]
                  %531 = vst [vmem:[%s381 + $0x128] sm:%s373] %v530
                  %v532 = vld [vmem:[%s380 + $0x1fc] sm:%s373]
                  %533 = vst [vmem:[%s381 + $0x12c] sm:%s373] %v532
                  %v534 = vld [vmem:[%s380 + $0x200] sm:%s373]
                  %535 = vst [vmem:[%s381 + $0x130] sm:%s373] %v534
                  %v536 = vld [vmem:[%s380 + $0x204] sm:%s373]
                  %537 = vst [vmem:[%s381 + $0x134] sm:%s373] %v536
                  %v538 = vld [vmem:[%s380 + $0x270] sm:%s373]
                  %539 = vst [vmem:[%s381 + $0x138] sm:%s373] %v538
                  %v540 = vld [vmem:[%s380 + $0x274] sm:%s373]
                  %541 = vst [vmem:[%s381 + $0x13c] sm:%s373] %v540
                  %v542 = vld [vmem:[%s380 + $0x278] sm:%s373]
                  %543 = vst [vmem:[%s381 + $0x140] sm:%s373] %v542
                  %v544 = vld [vmem:[%s380 + $0x27c] sm:%s373]
                  %545 = vst [vmem:[%s381 + $0x144] sm:%s373] %v544
                  %v546 = vld [vmem:[%s380 + $0x280] sm:%s373]
                  %547 = vst [vmem:[%s381 + $0x148] sm:%s373] %v546
                  %v548 = vld [vmem:[%s380 + $0x284] sm:%s373]
                  %549 = vst [vmem:[%s381 + $0x14c] sm:%s373] %v548
                  %v550 = vld [vmem:[%s380 + $0x288] sm:%s373]
                  %551 = vst [vmem:[%s381 + $0x150] sm:%s373] %v550
                  %v552 = vld [vmem:[%s380 + $0x28c] sm:%s373]
                  %553 = vst [vmem:[%s381 + $0x154] sm:%s373] %v552
                  %v554 = vld [vmem:[%s380 + $0x290] sm:%s373]
                  %555 = vst [vmem:[%s381 + $0x158] sm:%s373] %v554
                  %v556 = vld [vmem:[%s380 + $0x294] sm:%s373]
                  %557 = vst [vmem:[%s381 + $0x15c] sm:%s373] %v556
                  %v558 = vld [vmem:[%s380 + $0x298] sm:%s373]
                  %559 = vst [vmem:[%s381 + $0x160] sm:%s373] %v558
                  %v560 = vld [vmem:[%s380 + $0x29c] sm:%s373]
                  %561 = vst [vmem:[%s381 + $0x164] sm:%s373] %v560
                  %v562 = vld [vmem:[%s380 + $0x2a0] sm:%s373]
                  %563 = vst [vmem:[%s381 + $0x168] sm:%s373] %v562
                  %v564 = vld [vmem:[%s380 + $0x2a4] sm:%s373]
                  %565 = vst [vmem:[%s381 + $0x16c] sm:%s373] %v564
                  %v566 = vld [vmem:[%s380 + $0x2a8] sm:%s373]
                  %567 = vst [vmem:[%s381 + $0x170] sm:%s373] %v566
                  %v568 = vld [vmem:[%s380 + $0x2ac] sm:%s373]
                  %569 = vst [vmem:[%s381 + $0x174] sm:%s373] %v568
                  %v570 = vld [vmem:[%s380 + $0x2b0] sm:%s373]
                  %571 = vst [vmem:[%s381 + $0x178] sm:%s373] %v570
                  %v572 = vld [vmem:[%s380 + $0x2b4] sm:%s373]
                  %573 = vst [vmem:[%s381 + $0x17c] sm:%s373] %v572
                  %v574 = vld [vmem:[%s380 + $0x2b8] sm:%s373]
                  %575 = vst [vmem:[%s381 + $0x180] sm:%s373] %v574
                  %v576 = vld [vmem:[%s380 + $0x2bc] sm:%s373]
                  %577 = vst [vmem:[%s381 + $0x184] sm:%s373] %v576
                  %v578 = vld [vmem:[%s380 + $0x2c0] sm:%s373]
                  %579 = vst [vmem:[%s381 + $0x188] sm:%s373] %v578
                  %v580 = vld [vmem:[%s380 + $0x2c4] sm:%s373]
                  %581 = vst [vmem:[%s381 + $0x18c] sm:%s373] %v580
                  %v582 = vld [vmem:[%s380 + $0x2c8] sm:%s373]
                  %583 = vst [vmem:[%s381 + $0x190] sm:%s373] %v582
                  %v584 = vld [vmem:[%s380 + $0x2cc] sm:%s373]
                  %585 = vst [vmem:[%s381 + $0x194] sm:%s373] %v584
                  %v586 = vld [vmem:[%s380 + $0x2d0] sm:%s373]
                  %587 = vst [vmem:[%s381 + $0x198] sm:%s373] %v586
                  %v588 = vld [vmem:[%s380 + $0x2d4] sm:%s373]
                  %589 = vst [vmem:[%s381 + $0x19c] sm:%s373] %v588
                $region63: #{d_curr_forward.3} parent=50 // loop_footer
                  %s379 = sadd.s32 1, %s375
                $region64: #{d_curr_forward.3} parent=50 // loop_footer_branch
                  %374 = sbr.rel target = $region60
                $region65: #{d_curr_forward.3} parent=50 // loop_exit
                  _
              $region51: #{d_curr_forward.3} parent=35 // pred_fallthru
                _
            $region36: #{d_curr_forward.3} parent=31 // pred_fallthru
              _
            // Predicated region
            $region37: #{d_curr_forward.3} parent=31 // pred_check
              _
            $region38: #{d_curr_forward.3} parent=31 // pred_check_branch
              %143 = sbr.rel (0) target = $region40
            $region39: #{d_curr_forward.3} parent=31 // pred_region
              %s145 = ssub.s32 16, 1
              loop: start=0, step=1, limit=1
              $region41: #{d_curr_forward.3} parent=39 // loop_pre_header
                _
              $region42: #{d_curr_forward.3} parent=39 // loop_header
                %s147 = sphi 0, %s151
                %p148 = scmp.ge.s32.totalorder %s147, 1
                %s152 = sphi %s137, %s137
                %s153 = sphi %s134, %s134
              $region43: #{d_curr_forward.3} parent=39 // loop_header_branch
                %150 = sbr.rel (%p148) target = $region47
              $region44: #{d_curr_forward.3} parent=39 // loop_body
                %v154 = vld [vmem:[%s152] sm:%s145]
                %155 = vst [vmem:[%s153] sm:%s145] %v154
                %v156 = vld [vmem:[%s152 + $0x4] sm:%s145]
                %157 = vst [vmem:[%s153 + $0x4] sm:%s145] %v156
                %v158 = vld [vmem:[%s152 + $0x8] sm:%s145]
                %159 = vst [vmem:[%s153 + $0x8] sm:%s145] %v158
                %v160 = vld [vmem:[%s152 + $0xc] sm:%s145]
                %161 = vst [vmem:[%s153 + $0xc] sm:%s145] %v160
                %v162 = vld [vmem:[%s152 + $0x10] sm:%s145]
                %163 = vst [vmem:[%s153 + $0x10] sm:%s145] %v162
                %v164 = vld [vmem:[%s152 + $0x14] sm:%s145]
                %165 = vst [vmem:[%s153 + $0x14] sm:%s145] %v164
                %v166 = vld [vmem:[%s152 + $0x18] sm:%s145]
                %167 = vst [vmem:[%s153 + $0x18] sm:%s145] %v166
                %v168 = vld [vmem:[%s152 + $0x1c] sm:%s145]
                %169 = vst [vmem:[%s153 + $0x1c] sm:%s145] %v168
                %v170 = vld [vmem:[%s152 + $0x20] sm:%s145]
                %171 = vst [vmem:[%s153 + $0x20] sm:%s145] %v170
                %v172 = vld [vmem:[%s152 + $0x24] sm:%s145]
                %173 = vst [vmem:[%s153 + $0x24] sm:%s145] %v172
                %v174 = vld [vmem:[%s152 + $0x28] sm:%s145]
                %175 = vst [vmem:[%s153 + $0x28] sm:%s145] %v174
                %v176 = vld [vmem:[%s152 + $0x2c] sm:%s145]
                %177 = vst [vmem:[%s153 + $0x2c] sm:%s145] %v176
                %v178 = vld [vmem:[%s152 + $0x30] sm:%s145]
                %179 = vst [vmem:[%s153 + $0x30] sm:%s145] %v178
                %v180 = vld [vmem:[%s152 + $0x34] sm:%s145]
                %181 = vst [vmem:[%s153 + $0x34] sm:%s145] %v180
                %v182 = vld [vmem:[%s152 + $0x38] sm:%s145]
                %183 = vst [vmem:[%s153 + $0x38] sm:%s145] %v182
                %v184 = vld [vmem:[%s152 + $0x3c] sm:%s145]
                %185 = vst [vmem:[%s153 + $0x3c] sm:%s145] %v184
                %v186 = vld [vmem:[%s152 + $0x40] sm:%s145]
                %187 = vst [vmem:[%s153 + $0x40] sm:%s145] %v186
                %v188 = vld [vmem:[%s152 + $0x44] sm:%s145]
                %189 = vst [vmem:[%s153 + $0x44] sm:%s145] %v188
                %v190 = vld [vmem:[%s152 + $0x48] sm:%s145]
                %191 = vst [vmem:[%s153 + $0x48] sm:%s145] %v190
                %v192 = vld [vmem:[%s152 + $0x4c] sm:%s145]
                %193 = vst [vmem:[%s153 + $0x4c] sm:%s145] %v192
                %v194 = vld [vmem:[%s152 + $0x50] sm:%s145]
                %195 = vst [vmem:[%s153 + $0x50] sm:%s145] %v194
                %v196 = vld [vmem:[%s152 + $0x54] sm:%s145]
                %197 = vst [vmem:[%s153 + $0x54] sm:%s145] %v196
                %v198 = vld [vmem:[%s152 + $0x58] sm:%s145]
                %199 = vst [vmem:[%s153 + $0x58] sm:%s145] %v198
                %v200 = vld [vmem:[%s152 + $0x5c] sm:%s145]
                %201 = vst [vmem:[%s153 + $0x5c] sm:%s145] %v200
                %v202 = vld [vmem:[%s152 + $0x60] sm:%s145]
                %203 = vst [vmem:[%s153 + $0x60] sm:%s145] %v202
                %v204 = vld [vmem:[%s152 + $0x64] sm:%s145]
                %205 = vst [vmem:[%s153 + $0x64] sm:%s145] %v204
                %v206 = vld [vmem:[%s152 + $0xd0] sm:%s145]
                %207 = vst [vmem:[%s153 + $0x68] sm:%s145] %v206
                %v208 = vld [vmem:[%s152 + $0xd4] sm:%s145]
                %209 = vst [vmem:[%s153 + $0x6c] sm:%s145] %v208
                %v210 = vld [vmem:[%s152 + $0xd8] sm:%s145]
                %211 = vst [vmem:[%s153 + $0x70] sm:%s145] %v210
                %v212 = vld [vmem:[%s152 + $0xdc] sm:%s145]
                %213 = vst [vmem:[%s153 + $0x74] sm:%s145] %v212
                %v214 = vld [vmem:[%s152 + $0xe0] sm:%s145]
                %215 = vst [vmem:[%s153 + $0x78] sm:%s145] %v214
                %v216 = vld [vmem:[%s152 + $0xe4] sm:%s145]
                %217 = vst [vmem:[%s153 + $0x7c] sm:%s145] %v216
                %v218 = vld [vmem:[%s152 + $0xe8] sm:%s145]
                %219 = vst [vmem:[%s153 + $0x80] sm:%s145] %v218
                %v220 = vld [vmem:[%s152 + $0xec] sm:%s145]
                %221 = vst [vmem:[%s153 + $0x84] sm:%s145] %v220
                %v222 = vld [vmem:[%s152 + $0xf0] sm:%s145]
                %223 = vst [vmem:[%s153 + $0x88] sm:%s145] %v222
                %v224 = vld [vmem:[%s152 + $0xf4] sm:%s145]
                %225 = vst [vmem:[%s153 + $0x8c] sm:%s145] %v224
                %v226 = vld [vmem:[%s152 + $0xf8] sm:%s145]
                %227 = vst [vmem:[%s153 + $0x90] sm:%s145] %v226
                %v228 = vld [vmem:[%s152 + $0xfc] sm:%s145]
                %229 = vst [vmem:[%s153 + $0x94] sm:%s145] %v228
                %v230 = vld [vmem:[%s152 + $0x100] sm:%s145]
                %231 = vst [vmem:[%s153 + $0x98] sm:%s145] %v230
                %v232 = vld [vmem:[%s152 + $0x104] sm:%s145]
                %233 = vst [vmem:[%s153 + $0x9c] sm:%s145] %v232
                %v234 = vld [vmem:[%s152 + $0x108] sm:%s145]
                %235 = vst [vmem:[%s153 + $0xa0] sm:%s145] %v234
                %v236 = vld [vmem:[%s152 + $0x10c] sm:%s145]
                %237 = vst [vmem:[%s153 + $0xa4] sm:%s145] %v236
                %v238 = vld [vmem:[%s152 + $0x110] sm:%s145]
                %239 = vst [vmem:[%s153 + $0xa8] sm:%s145] %v238
                %v240 = vld [vmem:[%s152 + $0x114] sm:%s145]
                %241 = vst [vmem:[%s153 + $0xac] sm:%s145] %v240
                %v242 = vld [vmem:[%s152 + $0x118] sm:%s145]
                %243 = vst [vmem:[%s153 + $0xb0] sm:%s145] %v242
                %v244 = vld [vmem:[%s152 + $0x11c] sm:%s145]
                %245 = vst [vmem:[%s153 + $0xb4] sm:%s145] %v244
                %v246 = vld [vmem:[%s152 + $0x120] sm:%s145]
                %247 = vst [vmem:[%s153 + $0xb8] sm:%s145] %v246
                %v248 = vld [vmem:[%s152 + $0x124] sm:%s145]
                %249 = vst [vmem:[%s153 + $0xbc] sm:%s145] %v248
                %v250 = vld [vmem:[%s152 + $0x128] sm:%s145]
                %251 = vst [vmem:[%s153 + $0xc0] sm:%s145] %v250
                %v252 = vld [vmem:[%s152 + $0x12c] sm:%s145]
                %253 = vst [vmem:[%s153 + $0xc4] sm:%s145] %v252
                %v254 = vld [vmem:[%s152 + $0x130] sm:%s145]
                %255 = vst [vmem:[%s153 + $0xc8] sm:%s145] %v254
                %v256 = vld [vmem:[%s152 + $0x134] sm:%s145]
                %257 = vst [vmem:[%s153 + $0xcc] sm:%s145] %v256
                %v258 = vld [vmem:[%s152 + $0x1a0] sm:%s145]
                %259 = vst [vmem:[%s153 + $0xd0] sm:%s145] %v258
                %v260 = vld [vmem:[%s152 + $0x1a4] sm:%s145]
                %261 = vst [vmem:[%s153 + $0xd4] sm:%s145] %v260
                %v262 = vld [vmem:[%s152 + $0x1a8] sm:%s145]
                %263 = vst [vmem:[%s153 + $0xd8] sm:%s145] %v262
                %v264 = vld [vmem:[%s152 + $0x1ac] sm:%s145]
                %265 = vst [vmem:[%s153 + $0xdc] sm:%s145] %v264
                %v266 = vld [vmem:[%s152 + $0x1b0] sm:%s145]
                %267 = vst [vmem:[%s153 + $0xe0] sm:%s145] %v266
                %v268 = vld [vmem:[%s152 + $0x1b4] sm:%s145]
                %269 = vst [vmem:[%s153 + $0xe4] sm:%s145] %v268
                %v270 = vld [vmem:[%s152 + $0x1b8] sm:%s145]
                %271 = vst [vmem:[%s153 + $0xe8] sm:%s145] %v270
                %v272 = vld [vmem:[%s152 + $0x1bc] sm:%s145]
                %273 = vst [vmem:[%s153 + $0xec] sm:%s145] %v272
                %v274 = vld [vmem:[%s152 + $0x1c0] sm:%s145]
                %275 = vst [vmem:[%s153 + $0xf0] sm:%s145] %v274
                %v276 = vld [vmem:[%s152 + $0x1c4] sm:%s145]
                %277 = vst [vmem:[%s153 + $0xf4] sm:%s145] %v276
                %v278 = vld [vmem:[%s152 + $0x1c8] sm:%s145]
                %279 = vst [vmem:[%s153 + $0xf8] sm:%s145] %v278
                %v280 = vld [vmem:[%s152 + $0x1cc] sm:%s145]
                %281 = vst [vmem:[%s153 + $0xfc] sm:%s145] %v280
                %v282 = vld [vmem:[%s152 + $0x1d0] sm:%s145]
                %283 = vst [vmem:[%s153 + $0x100] sm:%s145] %v282
                %v284 = vld [vmem:[%s152 + $0x1d4] sm:%s145]
                %285 = vst [vmem:[%s153 + $0x104] sm:%s145] %v284
                %v286 = vld [vmem:[%s152 + $0x1d8] sm:%s145]
                %287 = vst [vmem:[%s153 + $0x108] sm:%s145] %v286
                %v288 = vld [vmem:[%s152 + $0x1dc] sm:%s145]
                %289 = vst [vmem:[%s153 + $0x10c] sm:%s145] %v288
                %v290 = vld [vmem:[%s152 + $0x1e0] sm:%s145]
                %291 = vst [vmem:[%s153 + $0x110] sm:%s145] %v290
                %v292 = vld [vmem:[%s152 + $0x1e4] sm:%s145]
                %293 = vst [vmem:[%s153 + $0x114] sm:%s145] %v292
                %v294 = vld [vmem:[%s152 + $0x1e8] sm:%s145]
                %295 = vst [vmem:[%s153 + $0x118] sm:%s145] %v294
                %v296 = vld [vmem:[%s152 + $0x1ec] sm:%s145]
                %297 = vst [vmem:[%s153 + $0x11c] sm:%s145] %v296
                %v298 = vld [vmem:[%s152 + $0x1f0] sm:%s145]
                %299 = vst [vmem:[%s153 + $0x120] sm:%s145] %v298
                %v300 = vld [vmem:[%s152 + $0x1f4] sm:%s145]
                %301 = vst [vmem:[%s153 + $0x124] sm:%s145] %v300
                %v302 = vld [vmem:[%s152 + $0x1f8] sm:%s145]
                %303 = vst [vmem:[%s153 + $0x128] sm:%s145] %v302
                %v304 = vld [vmem:[%s152 + $0x1fc] sm:%s145]
                %305 = vst [vmem:[%s153 + $0x12c] sm:%s145] %v304
                %v306 = vld [vmem:[%s152 + $0x200] sm:%s145]
                %307 = vst [vmem:[%s153 + $0x130] sm:%s145] %v306
                %v308 = vld [vmem:[%s152 + $0x204] sm:%s145]
                %309 = vst [vmem:[%s153 + $0x134] sm:%s145] %v308
                %v310 = vld [vmem:[%s152 + $0x270] sm:%s145]
                %311 = vst [vmem:[%s153 + $0x138] sm:%s145] %v310
                %v312 = vld [vmem:[%s152 + $0x274] sm:%s145]
                %313 = vst [vmem:[%s153 + $0x13c] sm:%s145] %v312
                %v314 = vld [vmem:[%s152 + $0x278] sm:%s145]
                %315 = vst [vmem:[%s153 + $0x140] sm:%s145] %v314
                %v316 = vld [vmem:[%s152 + $0x27c] sm:%s145]
                %317 = vst [vmem:[%s153 + $0x144] sm:%s145] %v316
                %v318 = vld [vmem:[%s152 + $0x280] sm:%s145]
                %319 = vst [vmem:[%s153 + $0x148] sm:%s145] %v318
                %v320 = vld [vmem:[%s152 + $0x284] sm:%s145]
                %321 = vst [vmem:[%s153 + $0x14c] sm:%s145] %v320
                %v322 = vld [vmem:[%s152 + $0x288] sm:%s145]
                %323 = vst [vmem:[%s153 + $0x150] sm:%s145] %v322
                %v324 = vld [vmem:[%s152 + $0x28c] sm:%s145]
                %325 = vst [vmem:[%s153 + $0x154] sm:%s145] %v324
                %v326 = vld [vmem:[%s152 + $0x290] sm:%s145]
                %327 = vst [vmem:[%s153 + $0x158] sm:%s145] %v326
                %v328 = vld [vmem:[%s152 + $0x294] sm:%s145]
                %329 = vst [vmem:[%s153 + $0x15c] sm:%s145] %v328
                %v330 = vld [vmem:[%s152 + $0x298] sm:%s145]
                %331 = vst [vmem:[%s153 + $0x160] sm:%s145] %v330
                %v332 = vld [vmem:[%s152 + $0x29c] sm:%s145]
                %333 = vst [vmem:[%s153 + $0x164] sm:%s145] %v332
                %v334 = vld [vmem:[%s152 + $0x2a0] sm:%s145]
                %335 = vst [vmem:[%s153 + $0x168] sm:%s145] %v334
                %v336 = vld [vmem:[%s152 + $0x2a4] sm:%s145]
                %337 = vst [vmem:[%s153 + $0x16c] sm:%s145] %v336
                %v338 = vld [vmem:[%s152 + $0x2a8] sm:%s145]
                %339 = vst [vmem:[%s153 + $0x170] sm:%s145] %v338
                %v340 = vld [vmem:[%s152 + $0x2ac] sm:%s145]
                %341 = vst [vmem:[%s153 + $0x174] sm:%s145] %v340
                %v342 = vld [vmem:[%s152 + $0x2b0] sm:%s145]
                %343 = vst [vmem:[%s153 + $0x178] sm:%s145] %v342
                %v344 = vld [vmem:[%s152 + $0x2b4] sm:%s145]
                %345 = vst [vmem:[%s153 + $0x17c] sm:%s145] %v344
                %v346 = vld [vmem:[%s152 + $0x2b8] sm:%s145]
                %347 = vst [vmem:[%s153 + $0x180] sm:%s145] %v346
                %v348 = vld [vmem:[%s152 + $0x2bc] sm:%s145]
                %349 = vst [vmem:[%s153 + $0x184] sm:%s145] %v348
                %v350 = vld [vmem:[%s152 + $0x2c0] sm:%s145]
                %351 = vst [vmem:[%s153 + $0x188] sm:%s145] %v350
                %v352 = vld [vmem:[%s152 + $0x2c4] sm:%s145]
                %353 = vst [vmem:[%s153 + $0x18c] sm:%s145] %v352
                %v354 = vld [vmem:[%s152 + $0x2c8] sm:%s145]
                %355 = vst [vmem:[%s153 + $0x190] sm:%s145] %v354
                %v356 = vld [vmem:[%s152 + $0x2cc] sm:%s145]
                %357 = vst [vmem:[%s153 + $0x194] sm:%s145] %v356
                %v358 = vld [vmem:[%s152 + $0x2d0] sm:%s145]
                %359 = vst [vmem:[%s153 + $0x198] sm:%s145] %v358
                %v360 = vld [vmem:[%s152 + $0x2d4] sm:%s145]
                %361 = vst [vmem:[%s153 + $0x19c] sm:%s145] %v360
              $region45: #{d_curr_forward.3} parent=39 // loop_footer
                %s151 = sadd.s32 1, %s147
              $region46: #{d_curr_forward.3} parent=39 // loop_footer_branch
                %146 = sbr.rel target = $region42
              $region47: #{d_curr_forward.3} parent=39 // loop_exit
                _
            $region40: #{d_curr_forward.3} parent=31 // pred_fallthru
              _
          $region32: #{d_curr_forward.3} parent=27 // pred_fallthru
            _
          %590 = vnop
        $region28: #{d_curr_forward.3} parent=23 // pred_fallthru
          _
      $region24: #{d_curr_forward.3} parent=5 // pred_fallthru
        _
      %p591 = scmp.le.s32.totalorder 1, %s9
      %p592 = scmp.lt.s32.totalorder %s9, 3
      %p593 = pnand %p591, %p592
      %p594 = pneg %p593
      // Predicated region
      $region66: #{d_curr_forward.3} parent=5 // pred_check
        _
      $region67: #{d_curr_forward.3} parent=5 // pred_check_branch
        %596 = sbr.rel (%p593) target = $region69
      $region68: #{d_curr_forward.3} parent=5 // pred_region
        %s597 = ssub.s32 %s9, 1
        %s598 = sand.u32 %s22, 1
        %s599 = sand.u32 %s22, 1
        %s600 = smul.addr %s599, 416
        %s601 = scalar_lea.vmem [#allocation2], %s600
        // Predicated region
        $region70: #{d_curr_forward.3} parent=68 // pred_check
          %p602 = pneg %p35
        $region71: #{d_curr_forward.3} parent=68 // pred_check_branch
          %604 = sbr.rel (%p602) target = $region73
        $region72: #{d_curr_forward.3} parent=68 // pred_region
          _
        $region73: #{d_curr_forward.3} parent=68 // pred_fallthru
          _
        %s605 = sand.u32 %s22, 1
        %s606 = sand.u32 %s22, 1
        %s607 = smul.addr %s606, 416
        %s608 = scalar_lea.vmem [#allocation2], %s607
        %p609 = pneg %p35
        %p610 = pneg %p32
        %p611 = pneg %p56
        %p612 = pneg %p53
        %p613 = pneg %p77
        %p614 = pneg %p74
        %p615 = pneg %p103
        %p616 = pneg %p100
        %s617 = smul.u32 26, %s14
        %p618 = scmp.lt.s32.totalorder %s617, 51
        %s619 = scalar_select %p618, %s617, 51
        %s620 = smul.addr %s619, 4
        %s621 = scalar_lea.vmem %s3, %s620
        %s622 = smul.u32 26, %s14
        %s623 = smul.u32 26, %s14
        %p624 = scmp.lt.s32.totalorder %s623, 51
        %s625 = scalar_select %p624, %s623, 51
        %s626 = smul.addr %s625, 4
        %s627 = scalar_lea.vmem %s3, %s626
        %s628 = smul.u32 26, %s14
        %v630 = vld [vmem:[%s1] sm:$0xf]
        %v631 = vld [vmem:[%s1 + $0x4] sm:$0xf]
        %v632 = vld [vmem:[%s1 + $0x8] sm:$0xf]
        %v633 = vld [vmem:[%s1 + $0xc] sm:$0xf]
        %v634 = vld [vmem:[%s1 + $0x10] sm:$0x3]
        %v635 = vld [vmem:[%s601] sm:$0xf]
        %v636 = vld [vmem:[%s601 + $0x4] sm:$0xf]
        %v637 = vld [vmem:[%s601 + $0x8] sm:$0xf]
        %v638 = vld [vmem:[%s601 + $0xc] sm:$0xf]
        %v639 = vld [vmem:[%s601 + $0x10] sm:$0xf]
        %v640 = vld [vmem:[%s601 + $0x14] sm:$0xf]
        %v641 = vld [vmem:[%s601 + $0x18] sm:$0xf]
        %v642 = vld [vmem:[%s601 + $0x1c] sm:$0xf]
        %v643 = vld [vmem:[%s601 + $0x20] sm:$0xf]
        %v644 = vld [vmem:[%s601 + $0x24] sm:$0xf]
        %v645 = vld [vmem:[%s601 + $0x28] sm:$0xf]
        %v646 = vld [vmem:[%s601 + $0x2c] sm:$0xf]
        %v647 = vld [vmem:[%s601 + $0x30] sm:$0xf]
        %v648 = vld [vmem:[%s601 + $0x34] sm:$0xf]
        %v649 = vld [vmem:[%s601 + $0x38] sm:$0xf]
        %v650 = vld [vmem:[%s601 + $0x3c] sm:$0xf]
        %v651 = vld [vmem:[%s601 + $0x40] sm:$0xf]
        %v652 = vld [vmem:[%s601 + $0x44] sm:$0xf]
        %v653 = vld [vmem:[%s601 + $0x48] sm:$0xf]
        %v654 = vld [vmem:[%s601 + $0x4c] sm:$0xf]
        %v655 = vld [vmem:[%s601 + $0x50] sm:$0xf]
        %v656 = vld [vmem:[%s601 + $0x54] sm:$0xf]
        %v657 = vld [vmem:[%s601 + $0x58] sm:$0xf]
        %v658 = vld [vmem:[%s601 + $0x5c] sm:$0xf]
        %v659 = vld [vmem:[%s601 + $0x60] sm:$0xf]
        %v660 = vld [vmem:[%s601 + $0x64] sm:$0xf]
        %v687 = vunpack.c.l.b16 %v635
        %v688 = vunpack.c.l.b16 %v636
        %v689 = vunpack.c.l.b16 %v637
        %v690 = vunpack.c.l.b16 %v638
        %v691 = vunpack.c.l.b16 %v639
        %v692 = vunpack.c.l.b16 %v640
        %v693 = vunpack.c.l.b16 %v641
        %v694 = vunpack.c.l.b16 %v642
        %v695 = vunpack.c.l.b16 %v643
        %v696 = vunpack.c.l.b16 %v644
        %v697 = vunpack.c.l.b16 %v645
        %v698 = vunpack.c.l.b16 %v646
        %v699 = vunpack.c.l.b16 %v647
        %v700 = vunpack.c.l.b16 %v648
        %v701 = vunpack.c.l.b16 %v649
        %v702 = vunpack.c.l.b16 %v650
        %v703 = vunpack.c.l.b16 %v651
        %v704 = vunpack.c.l.b16 %v652
        %v705 = vunpack.c.l.b16 %v653
        %v706 = vunpack.c.l.b16 %v654
        %v707 = vunpack.c.l.b16 %v655
        %v708 = vunpack.c.l.b16 %v656
        %v709 = vunpack.c.l.b16 %v657
        %v710 = vunpack.c.l.b16 %v658
        %v711 = vunpack.c.l.b16 %v659
        %v712 = vunpack.c.l.b16 %v660
        %v713 = vpack.c.b16 %v688, %v687
        %v714 = vpack.c.b16 %v690, %v689
        %v715 = vpack.c.b16 %v692, %v691
        %v716 = vpack.c.b16 %v694, %v693
        %v717 = vpack.c.b16 %v696, %v695
        %v718 = vpack.c.b16 %v698, %v697
        %v719 = vpack.c.b16 %v700, %v699
        %v720 = vpack.c.b16 %v702, %v701
        %v721 = vpack.c.b16 %v704, %v703
        %v722 = vpack.c.b16 %v706, %v705
        %v723 = vpack.c.b16 %v708, %v707
        %v724 = vpack.c.b16 %v710, %v709
        %v725 = vpack.c.b16 %v712, %v711
        %v731 = vunpack.c.l.b16 %v630
        %v732 = vunpack.c.l.b16 %v631
        %v733 = vunpack.c.l.b16 %v632
        %v734 = vunpack.c.l.b16 %v633
        %v735 = vunpack.c.l.b16 %v634
        %v736 = vpack.c.b16 %v732, %v731
        %v737 = vpack.c.b16 %v734, %v733
        %v738 = vpack.c.b16 %v735, %v735
        %vm741 = vcmask 293888
        %v743 = vsel %vm741, %v713, 0
        %v746 = vsel %vm741, %v714, 0
        %v749 = vsel %vm741, %v715, 0
        %v752 = vsel %vm741, %v716, 0
        %v755 = vsel %vm741, %v717, 0
        %v758 = vsel %vm741, %v718, 0
        %v761 = vsel %vm741, %v719, 0
        %v764 = vsel %vm741, %v720, 0
        %v767 = vsel %vm741, %v721, 0
        %v770 = vsel %vm741, %v722, 0
        %v773 = vsel %vm741, %v723, 0
        %v776 = vsel %vm741, %v724, 0
        %v779 = vsel %vm741, %v725, 0
        %vm781 = vcmask 1041408
        %v783 = vsel %vm781, %v738, 0
        %785 = vmatpush.bf16.msra.mxu0 0
        %786 = vmatpush.bf16.msra.mxu0 0
        %787 = vmatpush.bf16.msra.mxu0 0
        %788 = vmatpush.bf16.msra.mxu0 0
        %789 = vmatpush.bf16.msra.mxu0 0
        %790 = vmatpush.bf16.msra.mxu0 %v783
        %791 = vmatpush.bf16.msra.mxu0 %v737
        %792 = vmatpush.bf16.msra.mxu0 %v736
        %793 = vmatmul.bf16.gmra.mxu0 %v743
        %v794 = vpop.f32.mrf.mxu0
        %v795 = vadd.f32 0.0, %v794
        %v796 = vpop.f32.mrf.mxu0
        %v797 = vadd.f32 0.0, %v796
        %798 = vmatmul.bf16.gmra.mxu0 %v746
        %v799 = vpop.f32.mrf.mxu0
        %v800 = vadd.f32 0.0, %v799
        %v801 = vpop.f32.mrf.mxu0
        %v802 = vadd.f32 0.0, %v801
        %803 = vmatmul.bf16.gmra.mxu0 %v749
        %v804 = vpop.f32.mrf.mxu0
        %v805 = vadd.f32 0.0, %v804
        %v806 = vpop.f32.mrf.mxu0
        %v807 = vadd.f32 0.0, %v806
        %808 = vmatmul.bf16.gmra.mxu0 %v752
        %v809 = vpop.f32.mrf.mxu0
        %v810 = vadd.f32 0.0, %v809
        %v811 = vpop.f32.mrf.mxu0
        %v812 = vadd.f32 0.0, %v811
        %813 = vmatmul.bf16.gmra.mxu0 %v755
        %v814 = vpop.f32.mrf.mxu0
        %v815 = vadd.f32 0.0, %v814
        %v816 = vpop.f32.mrf.mxu0
        %v817 = vadd.f32 0.0, %v816
        %818 = vmatmul.bf16.gmra.mxu0 %v758
        %v819 = vpop.f32.mrf.mxu0
        %v820 = vadd.f32 0.0, %v819
        %v821 = vpop.f32.mrf.mxu0
        %v822 = vadd.f32 0.0, %v821
        %823 = vmatmul.bf16.gmra.mxu0 %v761
        %v824 = vpop.f32.mrf.mxu0
        %v825 = vadd.f32 0.0, %v824
        %v826 = vpop.f32.mrf.mxu0
        %v827 = vadd.f32 0.0, %v826
        %828 = vmatmul.bf16.gmra.mxu0 %v764
        %v829 = vpop.f32.mrf.mxu0
        %v830 = vadd.f32 0.0, %v829
        %v831 = vpop.f32.mrf.mxu0
        %v832 = vadd.f32 0.0, %v831
        %833 = vmatmul.bf16.gmra.mxu0 %v767
        %v834 = vpop.f32.mrf.mxu0
        %v835 = vadd.f32 0.0, %v834
        %v836 = vpop.f32.mrf.mxu0
        %v837 = vadd.f32 0.0, %v836
        %838 = vmatmul.bf16.gmra.mxu0 %v770
        %v839 = vpop.f32.mrf.mxu0
        %v840 = vadd.f32 0.0, %v839
        %v841 = vpop.f32.mrf.mxu0
        %v842 = vadd.f32 0.0, %v841
        %843 = vmatmul.bf16.gmra.mxu0 %v773
        %v844 = vpop.f32.mrf.mxu0
        %v845 = vadd.f32 0.0, %v844
        %v846 = vpop.f32.mrf.mxu0
        %v847 = vadd.f32 0.0, %v846
        %848 = vmatmul.bf16.gmra.mxu0 %v776
        %v849 = vpop.f32.mrf.mxu0
        %v850 = vadd.f32 0.0, %v849
        %v851 = vpop.f32.mrf.mxu0
        %v852 = vadd.f32 0.0, %v851
        %853 = vmatmul.bf16.gmra.mxu0 %v779
        %v854 = vpop.f32.mrf.mxu0
        %v855 = vadd.f32 0.0, %v854
        %v856 = vpop.f32.mrf.mxu0
        %v857 = vadd.f32 0.0, %v856
        %858 = vdwg.mxu0
        %s859 = scalar_lea.vmem %s601, 104 [#allocation2]
        %v860 = vld [vmem:[%s859] sm:$0xf]
        %v861 = vld [vmem:[%s859 + $0x4] sm:$0xf]
        %v862 = vld [vmem:[%s859 + $0x8] sm:$0xf]
        %v863 = vld [vmem:[%s859 + $0xc] sm:$0xf]
        %v864 = vld [vmem:[%s859 + $0x10] sm:$0xf]
        %v865 = vld [vmem:[%s859 + $0x14] sm:$0xf]
        %v866 = vld [vmem:[%s859 + $0x18] sm:$0xf]
        %v867 = vld [vmem:[%s859 + $0x1c] sm:$0xf]
        %v868 = vld [vmem:[%s859 + $0x20] sm:$0xf]
        %v869 = vld [vmem:[%s859 + $0x24] sm:$0xf]
        %v870 = vld [vmem:[%s859 + $0x28] sm:$0xf]
        %v871 = vld [vmem:[%s859 + $0x2c] sm:$0xf]
        %v872 = vld [vmem:[%s859 + $0x30] sm:$0xf]
        %v873 = vld [vmem:[%s859 + $0x34] sm:$0xf]
        %v874 = vld [vmem:[%s859 + $0x38] sm:$0xf]
        %v875 = vld [vmem:[%s859 + $0x3c] sm:$0xf]
        %v876 = vld [vmem:[%s859 + $0x40] sm:$0xf]
        %v877 = vld [vmem:[%s859 + $0x44] sm:$0xf]
        %v878 = vld [vmem:[%s859 + $0x48] sm:$0xf]
        %v879 = vld [vmem:[%s859 + $0x4c] sm:$0xf]
        %v880 = vld [vmem:[%s859 + $0x50] sm:$0xf]
        %v881 = vld [vmem:[%s859 + $0x54] sm:$0xf]
        %v882 = vld [vmem:[%s859 + $0x58] sm:$0xf]
        %v883 = vld [vmem:[%s859 + $0x5c] sm:$0xf]
        %v884 = vld [vmem:[%s859 + $0x60] sm:$0xf]
        %v885 = vld [vmem:[%s859 + $0x64] sm:$0xf]
        %v912 = vunpack.c.l.b16 %v860
        %v913 = vunpack.c.l.b16 %v861
        %v914 = vunpack.c.l.b16 %v862
        %v915 = vunpack.c.l.b16 %v863
        %v916 = vunpack.c.l.b16 %v864
        %v917 = vunpack.c.l.b16 %v865
        %v918 = vunpack.c.l.b16 %v866
        %v919 = vunpack.c.l.b16 %v867
        %v920 = vunpack.c.l.b16 %v868
        %v921 = vunpack.c.l.b16 %v869
        %v922 = vunpack.c.l.b16 %v870
        %v923 = vunpack.c.l.b16 %v871
        %v924 = vunpack.c.l.b16 %v872
        %v925 = vunpack.c.l.b16 %v873
        %v926 = vunpack.c.l.b16 %v874
        %v927 = vunpack.c.l.b16 %v875
        %v928 = vunpack.c.l.b16 %v876
        %v929 = vunpack.c.l.b16 %v877
        %v930 = vunpack.c.l.b16 %v878
        %v931 = vunpack.c.l.b16 %v879
        %v932 = vunpack.c.l.b16 %v880
        %v933 = vunpack.c.l.b16 %v881
        %v934 = vunpack.c.l.b16 %v882
        %v935 = vunpack.c.l.b16 %v883
        %v936 = vunpack.c.l.b16 %v884
        %v937 = vunpack.c.l.b16 %v885
        %v938 = vpack.c.b16 %v913, %v912
        %v939 = vpack.c.b16 %v915, %v914
        %v940 = vpack.c.b16 %v917, %v916
        %v941 = vpack.c.b16 %v919, %v918
        %v942 = vpack.c.b16 %v921, %v920
        %v943 = vpack.c.b16 %v923, %v922
        %v944 = vpack.c.b16 %v925, %v924
        %v945 = vpack.c.b16 %v927, %v926
        %v946 = vpack.c.b16 %v929, %v928
        %v947 = vpack.c.b16 %v931, %v930
        %v948 = vpack.c.b16 %v933, %v932
        %v949 = vpack.c.b16 %v935, %v934
        %v950 = vpack.c.b16 %v937, %v936
        %v952 = vsel %vm741, %v938, 0
        %v955 = vsel %vm741, %v939, 0
        %v958 = vsel %vm741, %v940, 0
        %v961 = vsel %vm741, %v941, 0
        %v964 = vsel %vm741, %v942, 0
        %v967 = vsel %vm741, %v943, 0
        %v970 = vsel %vm741, %v944, 0
        %v973 = vsel %vm741, %v945, 0
        %v976 = vsel %vm741, %v946, 0
        %v979 = vsel %vm741, %v947, 0
        %v982 = vsel %vm741, %v948, 0
        %v985 = vsel %vm741, %v949, 0
        %v988 = vsel %vm741, %v950, 0
        %990 = vmatpush.bf16.msra.mxu0 0
        %991 = vmatpush.bf16.msra.mxu0 0
        %992 = vmatpush.bf16.msra.mxu0 0
        %993 = vmatpush.bf16.msra.mxu0 0
        %994 = vmatpush.bf16.msra.mxu0 0
        %995 = vmatpush.bf16.msra.mxu0 %v783
        %996 = vmatpush.bf16.msra.mxu0 %v737
        %997 = vmatpush.bf16.msra.mxu0 %v736
        %998 = vmatmul.bf16.gmra.mxu0 %v952
        %v999 = vpop.f32.mrf.mxu0
        %v1000 = vadd.f32 0.0, %v999
        %v1001 = vpop.f32.mrf.mxu0
        %v1002 = vadd.f32 0.0, %v1001
        %1003 = vmatmul.bf16.gmra.mxu0 %v955
        %v1004 = vpop.f32.mrf.mxu0
        %v1005 = vadd.f32 0.0, %v1004
        %v1006 = vpop.f32.mrf.mxu0
        %v1007 = vadd.f32 0.0, %v1006
        %1008 = vmatmul.bf16.gmra.mxu0 %v958
        %v1009 = vpop.f32.mrf.mxu0
        %v1010 = vadd.f32 0.0, %v1009
        %v1011 = vpop.f32.mrf.mxu0
        %v1012 = vadd.f32 0.0, %v1011
        %1013 = vmatmul.bf16.gmra.mxu0 %v961
        %v1014 = vpop.f32.mrf.mxu0
        %v1015 = vadd.f32 0.0, %v1014
        %v1016 = vpop.f32.mrf.mxu0
        %v1017 = vadd.f32 0.0, %v1016
        %1018 = vmatmul.bf16.gmra.mxu0 %v964
        %v1019 = vpop.f32.mrf.mxu0
        %v1020 = vadd.f32 0.0, %v1019
        %v1021 = vpop.f32.mrf.mxu0
        %v1022 = vadd.f32 0.0, %v1021
        %1023 = vmatmul.bf16.gmra.mxu0 %v967
        %v1024 = vpop.f32.mrf.mxu0
        %v1025 = vadd.f32 0.0, %v1024
        %v1026 = vpop.f32.mrf.mxu0
        %v1027 = vadd.f32 0.0, %v1026
        %1028 = vmatmul.bf16.gmra.mxu0 %v970
        %v1029 = vpop.f32.mrf.mxu0
        %v1030 = vadd.f32 0.0, %v1029
        %v1031 = vpop.f32.mrf.mxu0
        %v1032 = vadd.f32 0.0, %v1031
        %1033 = vmatmul.bf16.gmra.mxu0 %v973
        %v1034 = vpop.f32.mrf.mxu0
        %v1035 = vadd.f32 0.0, %v1034
        %v1036 = vpop.f32.mrf.mxu0
        %v1037 = vadd.f32 0.0, %v1036
        %1038 = vmatmul.bf16.gmra.mxu0 %v976
        %v1039 = vpop.f32.mrf.mxu0
        %v1040 = vadd.f32 0.0, %v1039
        %v1041 = vpop.f32.mrf.mxu0
        %v1042 = vadd.f32 0.0, %v1041
        %1043 = vmatmul.bf16.gmra.mxu0 %v979
        %v1044 = vpop.f32.mrf.mxu0
        %v1045 = vadd.f32 0.0, %v1044
        %v1046 = vpop.f32.mrf.mxu0
        %v1047 = vadd.f32 0.0, %v1046
        %1048 = vmatmul.bf16.gmra.mxu0 %v982
        %v1049 = vpop.f32.mrf.mxu0
        %v1050 = vadd.f32 0.0, %v1049
        %v1051 = vpop.f32.mrf.mxu0
        %v1052 = vadd.f32 0.0, %v1051
        %1053 = vmatmul.bf16.gmra.mxu0 %v985
        %v1054 = vpop.f32.mrf.mxu0
        %v1055 = vadd.f32 0.0, %v1054
        %v1056 = vpop.f32.mrf.mxu0
        %v1057 = vadd.f32 0.0, %v1056
        %1058 = vmatmul.bf16.gmra.mxu0 %v988
        %v1059 = vpop.f32.mrf.mxu0
        %v1060 = vadd.f32 0.0, %v1059
        %v1061 = vpop.f32.mrf.mxu0
        %v1062 = vadd.f32 0.0, %v1061
        %1063 = vdwg.mxu0
        %v1064 = vmax.f32 %v795, %v1000
        %v1065 = vmax.f32 %v797, %v1002
        %v1066 = vmax.f32 %v800, %v1005
        %v1067 = vmax.f32 %v802, %v1007
        %v1068 = vmax.f32 %v805, %v1010
        %v1069 = vmax.f32 %v807, %v1012
        %v1070 = vmax.f32 %v810, %v1015
        %v1071 = vmax.f32 %v812, %v1017
        %v1072 = vmax.f32 %v815, %v1020
        %v1073 = vmax.f32 %v817, %v1022
        %v1074 = vmax.f32 %v820, %v1025
        %v1075 = vmax.f32 %v822, %v1027
        %v1076 = vmax.f32 %v825, %v1030
        %v1077 = vmax.f32 %v827, %v1032
        %v1078 = vmax.f32 %v830, %v1035
        %v1079 = vmax.f32 %v832, %v1037
        %v1080 = vmax.f32 %v835, %v1040
        %v1081 = vmax.f32 %v837, %v1042
        %v1082 = vmax.f32 %v840, %v1045
        %v1083 = vmax.f32 %v842, %v1047
        %v1084 = vmax.f32 %v845, %v1050
        %v1085 = vmax.f32 %v847, %v1052
        %v1086 = vmax.f32 %v850, %v1055
        %v1087 = vmax.f32 %v852, %v1057
        %v1088 = vmax.f32 %v855, %v1060
        %v1089 = vmax.f32 %v857, %v1062
        %s1090 = scalar_lea.vmem %s601, 208 [#allocation2]
        %v1091 = vld [vmem:[%s1090] sm:$0xf]
        %v1092 = vld [vmem:[%s1090 + $0x4] sm:$0xf]
        %v1093 = vld [vmem:[%s1090 + $0x8] sm:$0xf]
        %v1094 = vld [vmem:[%s1090 + $0xc] sm:$0xf]
        %v1095 = vld [vmem:[%s1090 + $0x10] sm:$0xf]
        %v1096 = vld [vmem:[%s1090 + $0x14] sm:$0xf]
        %v1097 = vld [vmem:[%s1090 + $0x18] sm:$0xf]
        %v1098 = vld [vmem:[%s1090 + $0x1c] sm:$0xf]
        %v1099 = vld [vmem:[%s1090 + $0x20] sm:$0xf]
        %v1100 = vld [vmem:[%s1090 + $0x24] sm:$0xf]
        %v1101 = vld [vmem:[%s1090 + $0x28] sm:$0xf]
        %v1102 = vld [vmem:[%s1090 + $0x2c] sm:$0xf]
        %v1103 = vld [vmem:[%s1090 + $0x30] sm:$0xf]
        %v1104 = vld [vmem:[%s1090 + $0x34] sm:$0xf]
        %v1105 = vld [vmem:[%s1090 + $0x38] sm:$0xf]
        %v1106 = vld [vmem:[%s1090 + $0x3c] sm:$0xf]
        %v1107 = vld [vmem:[%s1090 + $0x40] sm:$0xf]
        %v1108 = vld [vmem:[%s1090 + $0x44] sm:$0xf]
        %v1109 = vld [vmem:[%s1090 + $0x48] sm:$0xf]
        %v1110 = vld [vmem:[%s1090 + $0x4c] sm:$0xf]
        %v1111 = vld [vmem:[%s1090 + $0x50] sm:$0xf]
        %v1112 = vld [vmem:[%s1090 + $0x54] sm:$0xf]
        %v1113 = vld [vmem:[%s1090 + $0x58] sm:$0xf]
        %v1114 = vld [vmem:[%s1090 + $0x5c] sm:$0xf]
        %v1115 = vld [vmem:[%s1090 + $0x60] sm:$0xf]
        %v1116 = vld [vmem:[%s1090 + $0x64] sm:$0xf]
        %v1143 = vunpack.c.l.b16 %v1091
        %v1144 = vunpack.c.l.b16 %v1092
        %v1145 = vunpack.c.l.b16 %v1093
        %v1146 = vunpack.c.l.b16 %v1094
        %v1147 = vunpack.c.l.b16 %v1095
        %v1148 = vunpack.c.l.b16 %v1096
        %v1149 = vunpack.c.l.b16 %v1097
        %v1150 = vunpack.c.l.b16 %v1098
        %v1151 = vunpack.c.l.b16 %v1099
        %v1152 = vunpack.c.l.b16 %v1100
        %v1153 = vunpack.c.l.b16 %v1101
        %v1154 = vunpack.c.l.b16 %v1102
        %v1155 = vunpack.c.l.b16 %v1103
        %v1156 = vunpack.c.l.b16 %v1104
        %v1157 = vunpack.c.l.b16 %v1105
        %v1158 = vunpack.c.l.b16 %v1106
        %v1159 = vunpack.c.l.b16 %v1107
        %v1160 = vunpack.c.l.b16 %v1108
        %v1161 = vunpack.c.l.b16 %v1109
        %v1162 = vunpack.c.l.b16 %v1110
        %v1163 = vunpack.c.l.b16 %v1111
        %v1164 = vunpack.c.l.b16 %v1112
        %v1165 = vunpack.c.l.b16 %v1113
        %v1166 = vunpack.c.l.b16 %v1114
        %v1167 = vunpack.c.l.b16 %v1115
        %v1168 = vunpack.c.l.b16 %v1116
        %v1169 = vpack.c.b16 %v1144, %v1143
        %v1170 = vpack.c.b16 %v1146, %v1145
        %v1171 = vpack.c.b16 %v1148, %v1147
        %v1172 = vpack.c.b16 %v1150, %v1149
        %v1173 = vpack.c.b16 %v1152, %v1151
        %v1174 = vpack.c.b16 %v1154, %v1153
        %v1175 = vpack.c.b16 %v1156, %v1155
        %v1176 = vpack.c.b16 %v1158, %v1157
        %v1177 = vpack.c.b16 %v1160, %v1159
        %v1178 = vpack.c.b16 %v1162, %v1161
        %v1179 = vpack.c.b16 %v1164, %v1163
        %v1180 = vpack.c.b16 %v1166, %v1165
        %v1181 = vpack.c.b16 %v1168, %v1167
        %v1183 = vsel %vm741, %v1169, 0
        %v1186 = vsel %vm741, %v1170, 0
        %v1189 = vsel %vm741, %v1171, 0
        %v1192 = vsel %vm741, %v1172, 0
        %v1195 = vsel %vm741, %v1173, 0
        %v1198 = vsel %vm741, %v1174, 0
        %v1201 = vsel %vm741, %v1175, 0
        %v1204 = vsel %vm741, %v1176, 0
        %v1207 = vsel %vm741, %v1177, 0
        %v1210 = vsel %vm741, %v1178, 0
        %v1213 = vsel %vm741, %v1179, 0
        %v1216 = vsel %vm741, %v1180, 0
        %v1219 = vsel %vm741, %v1181, 0
        %1221 = vmatpush.bf16.msra.mxu0 0
        %1222 = vmatpush.bf16.msra.mxu0 0
        %1223 = vmatpush.bf16.msra.mxu0 0
        %1224 = vmatpush.bf16.msra.mxu0 0
        %1225 = vmatpush.bf16.msra.mxu0 0
        %1226 = vmatpush.bf16.msra.mxu0 %v783
        %1227 = vmatpush.bf16.msra.mxu0 %v737
        %1228 = vmatpush.bf16.msra.mxu0 %v736
        %1229 = vmatmul.bf16.gmra.mxu0 %v1183
        %v1230 = vpop.f32.mrf.mxu0
        %v1231 = vadd.f32 0.0, %v1230
        %v1232 = vpop.f32.mrf.mxu0
        %v1233 = vadd.f32 0.0, %v1232
        %1234 = vmatmul.bf16.gmra.mxu0 %v1186
        %v1235 = vpop.f32.mrf.mxu0
        %v1236 = vadd.f32 0.0, %v1235
        %v1237 = vpop.f32.mrf.mxu0
        %v1238 = vadd.f32 0.0, %v1237
        %1239 = vmatmul.bf16.gmra.mxu0 %v1189
        %v1240 = vpop.f32.mrf.mxu0
        %v1241 = vadd.f32 0.0, %v1240
        %v1242 = vpop.f32.mrf.mxu0
        %v1243 = vadd.f32 0.0, %v1242
        %1244 = vmatmul.bf16.gmra.mxu0 %v1192
        %v1245 = vpop.f32.mrf.mxu0
        %v1246 = vadd.f32 0.0, %v1245
        %v1247 = vpop.f32.mrf.mxu0
        %v1248 = vadd.f32 0.0, %v1247
        %1249 = vmatmul.bf16.gmra.mxu0 %v1195
        %v1250 = vpop.f32.mrf.mxu0
        %v1251 = vadd.f32 0.0, %v1250
        %v1252 = vpop.f32.mrf.mxu0
        %v1253 = vadd.f32 0.0, %v1252
        %1254 = vmatmul.bf16.gmra.mxu0 %v1198
        %v1255 = vpop.f32.mrf.mxu0
        %v1256 = vadd.f32 0.0, %v1255
        %v1257 = vpop.f32.mrf.mxu0
        %v1258 = vadd.f32 0.0, %v1257
        %1259 = vmatmul.bf16.gmra.mxu0 %v1201
        %v1260 = vpop.f32.mrf.mxu0
        %v1261 = vadd.f32 0.0, %v1260
        %v1262 = vpop.f32.mrf.mxu0
        %v1263 = vadd.f32 0.0, %v1262
        %1264 = vmatmul.bf16.gmra.mxu0 %v1204
        %v1265 = vpop.f32.mrf.mxu0
        %v1266 = vadd.f32 0.0, %v1265
        %v1267 = vpop.f32.mrf.mxu0
        %v1268 = vadd.f32 0.0, %v1267
        %1269 = vmatmul.bf16.gmra.mxu0 %v1207
        %v1270 = vpop.f32.mrf.mxu0
        %v1271 = vadd.f32 0.0, %v1270
        %v1272 = vpop.f32.mrf.mxu0
        %v1273 = vadd.f32 0.0, %v1272
        %1274 = vmatmul.bf16.gmra.mxu0 %v1210
        %v1275 = vpop.f32.mrf.mxu0
        %v1276 = vadd.f32 0.0, %v1275
        %v1277 = vpop.f32.mrf.mxu0
        %v1278 = vadd.f32 0.0, %v1277
        %1279 = vmatmul.bf16.gmra.mxu0 %v1213
        %v1280 = vpop.f32.mrf.mxu0
        %v1281 = vadd.f32 0.0, %v1280
        %v1282 = vpop.f32.mrf.mxu0
        %v1283 = vadd.f32 0.0, %v1282
        %1284 = vmatmul.bf16.gmra.mxu0 %v1216
        %v1285 = vpop.f32.mrf.mxu0
        %v1286 = vadd.f32 0.0, %v1285
        %v1287 = vpop.f32.mrf.mxu0
        %v1288 = vadd.f32 0.0, %v1287
        %1289 = vmatmul.bf16.gmra.mxu0 %v1219
        %v1290 = vpop.f32.mrf.mxu0
        %v1291 = vadd.f32 0.0, %v1290
        %v1292 = vpop.f32.mrf.mxu0
        %v1293 = vadd.f32 0.0, %v1292
        %1294 = vdwg.mxu0
        %v1295 = vmax.f32 %v1064, %v1231
        %v1296 = vmax.f32 %v1065, %v1233
        %v1297 = vmax.f32 %v1066, %v1236
        %v1298 = vmax.f32 %v1067, %v1238
        %v1299 = vmax.f32 %v1068, %v1241
        %v1300 = vmax.f32 %v1069, %v1243
        %v1301 = vmax.f32 %v1070, %v1246
        %v1302 = vmax.f32 %v1071, %v1248
        %v1303 = vmax.f32 %v1072, %v1251
        %v1304 = vmax.f32 %v1073, %v1253
        %v1305 = vmax.f32 %v1074, %v1256
        %v1306 = vmax.f32 %v1075, %v1258
        %v1307 = vmax.f32 %v1076, %v1261
        %v1308 = vmax.f32 %v1077, %v1263
        %v1309 = vmax.f32 %v1078, %v1266
        %v1310 = vmax.f32 %v1079, %v1268
        %v1311 = vmax.f32 %v1080, %v1271
        %v1312 = vmax.f32 %v1081, %v1273
        %v1313 = vmax.f32 %v1082, %v1276
        %v1314 = vmax.f32 %v1083, %v1278
        %v1315 = vmax.f32 %v1084, %v1281
        %v1316 = vmax.f32 %v1085, %v1283
        %v1317 = vmax.f32 %v1086, %v1286
        %v1318 = vmax.f32 %v1087, %v1288
        %v1319 = vmax.f32 %v1088, %v1291
        %v1320 = vmax.f32 %v1089, %v1293
        %s1321 = scalar_lea.vmem %s601, 312 [#allocation2]
        %v1322 = vld [vmem:[%s1321] sm:$0xf]
        %v1323 = vld [vmem:[%s1321 + $0x4] sm:$0xf]
        %v1324 = vld [vmem:[%s1321 + $0x8] sm:$0xf]
        %v1325 = vld [vmem:[%s1321 + $0xc] sm:$0xf]
        %v1326 = vld [vmem:[%s1321 + $0x10] sm:$0xf]
        %v1327 = vld [vmem:[%s1321 + $0x14] sm:$0xf]
        %v1328 = vld [vmem:[%s1321 + $0x18] sm:$0xf]
        %v1329 = vld [vmem:[%s1321 + $0x1c] sm:$0xf]
        %v1330 = vld [vmem:[%s1321 + $0x20] sm:$0xf]
        %v1331 = vld [vmem:[%s1321 + $0x24] sm:$0xf]
        %v1332 = vld [vmem:[%s1321 + $0x28] sm:$0xf]
        %v1333 = vld [vmem:[%s1321 + $0x2c] sm:$0xf]
        %v1334 = vld [vmem:[%s1321 + $0x30] sm:$0xf]
        %v1335 = vld [vmem:[%s1321 + $0x34] sm:$0xf]
        %v1336 = vld [vmem:[%s1321 + $0x38] sm:$0xf]
        %v1337 = vld [vmem:[%s1321 + $0x3c] sm:$0xf]
        %v1338 = vld [vmem:[%s1321 + $0x40] sm:$0xf]
        %v1339 = vld [vmem:[%s1321 + $0x44] sm:$0xf]
        %v1340 = vld [vmem:[%s1321 + $0x48] sm:$0xf]
        %v1341 = vld [vmem:[%s1321 + $0x4c] sm:$0xf]
        %v1342 = vld [vmem:[%s1321 + $0x50] sm:$0xf]
        %v1343 = vld [vmem:[%s1321 + $0x54] sm:$0xf]
        %v1344 = vld [vmem:[%s1321 + $0x58] sm:$0xf]
        %v1345 = vld [vmem:[%s1321 + $0x5c] sm:$0xf]
        %v1346 = vld [vmem:[%s1321 + $0x60] sm:$0xf]
        %v1347 = vld [vmem:[%s1321 + $0x64] sm:$0xf]
        %v1374 = vunpack.c.l.b16 %v1322
        %v1375 = vunpack.c.l.b16 %v1323
        %v1376 = vunpack.c.l.b16 %v1324
        %v1377 = vunpack.c.l.b16 %v1325
        %v1378 = vunpack.c.l.b16 %v1326
        %v1379 = vunpack.c.l.b16 %v1327
        %v1380 = vunpack.c.l.b16 %v1328
        %v1381 = vunpack.c.l.b16 %v1329
        %v1382 = vunpack.c.l.b16 %v1330
        %v1383 = vunpack.c.l.b16 %v1331
        %v1384 = vunpack.c.l.b16 %v1332
        %v1385 = vunpack.c.l.b16 %v1333
        %v1386 = vunpack.c.l.b16 %v1334
        %v1387 = vunpack.c.l.b16 %v1335
        %v1388 = vunpack.c.l.b16 %v1336
        %v1389 = vunpack.c.l.b16 %v1337
        %v1390 = vunpack.c.l.b16 %v1338
        %v1391 = vunpack.c.l.b16 %v1339
        %v1392 = vunpack.c.l.b16 %v1340
        %v1393 = vunpack.c.l.b16 %v1341
        %v1394 = vunpack.c.l.b16 %v1342
        %v1395 = vunpack.c.l.b16 %v1343
        %v1396 = vunpack.c.l.b16 %v1344
        %v1397 = vunpack.c.l.b16 %v1345
        %v1398 = vunpack.c.l.b16 %v1346
        %v1399 = vunpack.c.l.b16 %v1347
        %v1400 = vpack.c.b16 %v1375, %v1374
        %v1401 = vpack.c.b16 %v1377, %v1376
        %v1402 = vpack.c.b16 %v1379, %v1378
        %v1403 = vpack.c.b16 %v1381, %v1380
        %v1404 = vpack.c.b16 %v1383, %v1382
        %v1405 = vpack.c.b16 %v1385, %v1384
        %v1406 = vpack.c.b16 %v1387, %v1386
        %v1407 = vpack.c.b16 %v1389, %v1388
        %v1408 = vpack.c.b16 %v1391, %v1390
        %v1409 = vpack.c.b16 %v1393, %v1392
        %v1410 = vpack.c.b16 %v1395, %v1394
        %v1411 = vpack.c.b16 %v1397, %v1396
        %v1412 = vpack.c.b16 %v1399, %v1398
        %v1414 = vsel %vm741, %v1400, 0
        %v1417 = vsel %vm741, %v1401, 0
        %v1420 = vsel %vm741, %v1402, 0
        %v1423 = vsel %vm741, %v1403, 0
        %v1426 = vsel %vm741, %v1404, 0
        %v1429 = vsel %vm741, %v1405, 0
        %v1432 = vsel %vm741, %v1406, 0
        %v1435 = vsel %vm741, %v1407, 0
        %v1438 = vsel %vm741, %v1408, 0
        %v1441 = vsel %vm741, %v1409, 0
        %v1444 = vsel %vm741, %v1410, 0
        %v1447 = vsel %vm741, %v1411, 0
        %v1450 = vsel %vm741, %v1412, 0
        %1452 = vmatpush.bf16.msra.mxu0 0
        %1453 = vmatpush.bf16.msra.mxu0 0
        %1454 = vmatpush.bf16.msra.mxu0 0
        %1455 = vmatpush.bf16.msra.mxu0 0
        %1456 = vmatpush.bf16.msra.mxu0 0
        %1457 = vmatpush.bf16.msra.mxu0 %v783
        %1458 = vmatpush.bf16.msra.mxu0 %v737
        %1459 = vmatpush.bf16.msra.mxu0 %v736
        %1460 = vmatmul.bf16.gmra.mxu0 %v1414
        %v1461 = vpop.f32.mrf.mxu0
        %v1462 = vadd.f32 0.0, %v1461
        %v1463 = vpop.f32.mrf.mxu0
        %v1464 = vadd.f32 0.0, %v1463
        %1465 = vmatmul.bf16.gmra.mxu0 %v1417
        %v1466 = vpop.f32.mrf.mxu0
        %v1467 = vadd.f32 0.0, %v1466
        %v1468 = vpop.f32.mrf.mxu0
        %v1469 = vadd.f32 0.0, %v1468
        %1470 = vmatmul.bf16.gmra.mxu0 %v1420
        %v1471 = vpop.f32.mrf.mxu0
        %v1472 = vadd.f32 0.0, %v1471
        %v1473 = vpop.f32.mrf.mxu0
        %v1474 = vadd.f32 0.0, %v1473
        %1475 = vmatmul.bf16.gmra.mxu0 %v1423
        %v1476 = vpop.f32.mrf.mxu0
        %v1477 = vadd.f32 0.0, %v1476
        %v1478 = vpop.f32.mrf.mxu0
        %v1479 = vadd.f32 0.0, %v1478
        %1480 = vmatmul.bf16.gmra.mxu0 %v1426
        %v1481 = vpop.f32.mrf.mxu0
        %v1482 = vadd.f32 0.0, %v1481
        %v1483 = vpop.f32.mrf.mxu0
        %v1484 = vadd.f32 0.0, %v1483
        %1485 = vmatmul.bf16.gmra.mxu0 %v1429
        %v1486 = vpop.f32.mrf.mxu0
        %v1487 = vadd.f32 0.0, %v1486
        %v1488 = vpop.f32.mrf.mxu0
        %v1489 = vadd.f32 0.0, %v1488
        %1490 = vmatmul.bf16.gmra.mxu0 %v1432
        %v1491 = vpop.f32.mrf.mxu0
        %v1492 = vadd.f32 0.0, %v1491
        %v1493 = vpop.f32.mrf.mxu0
        %v1494 = vadd.f32 0.0, %v1493
        %1495 = vmatmul.bf16.gmra.mxu0 %v1435
        %v1496 = vpop.f32.mrf.mxu0
        %v1497 = vadd.f32 0.0, %v1496
        %v1498 = vpop.f32.mrf.mxu0
        %v1499 = vadd.f32 0.0, %v1498
        %1500 = vmatmul.bf16.gmra.mxu0 %v1438
        %v1501 = vpop.f32.mrf.mxu0
        %v1502 = vadd.f32 0.0, %v1501
        %v1503 = vpop.f32.mrf.mxu0
        %v1504 = vadd.f32 0.0, %v1503
        %1505 = vmatmul.bf16.gmra.mxu0 %v1441
        %v1506 = vpop.f32.mrf.mxu0
        %v1507 = vadd.f32 0.0, %v1506
        %v1508 = vpop.f32.mrf.mxu0
        %v1509 = vadd.f32 0.0, %v1508
        %1510 = vmatmul.bf16.gmra.mxu0 %v1444
        %v1511 = vpop.f32.mrf.mxu0
        %v1512 = vadd.f32 0.0, %v1511
        %v1513 = vpop.f32.mrf.mxu0
        %v1514 = vadd.f32 0.0, %v1513
        %1515 = vmatmul.bf16.gmra.mxu0 %v1447
        %v1516 = vpop.f32.mrf.mxu0
        %v1517 = vadd.f32 0.0, %v1516
        %v1518 = vpop.f32.mrf.mxu0
        %v1519 = vadd.f32 0.0, %v1518
        %1520 = vmatmul.bf16.gmra.mxu0 %v1450
        %v1521 = vpop.f32.mrf.mxu0
        %v1522 = vadd.f32 0.0, %v1521
        %v1523 = vpop.f32.mrf.mxu0
        %v1524 = vadd.f32 0.0, %v1523
        %1525 = vdwg.mxu0
        %v1526 = vmax.f32 %v1295, %v1462
        %v1527 = vmax.f32 %v1296, %v1464
        %v1528 = vmax.f32 %v1297, %v1467
        %v1529 = vmax.f32 %v1298, %v1469
        %v1530 = vmax.f32 %v1299, %v1472
        %v1531 = vmax.f32 %v1300, %v1474
        %v1532 = vmax.f32 %v1301, %v1477
        %v1533 = vmax.f32 %v1302, %v1479
        %v1534 = vmax.f32 %v1303, %v1482
        %v1535 = vmax.f32 %v1304, %v1484
        %v1536 = vmax.f32 %v1305, %v1487
        %v1537 = vmax.f32 %v1306, %v1489
        %v1538 = vmax.f32 %v1307, %v1492
        %v1539 = vmax.f32 %v1308, %v1494
        %v1540 = vmax.f32 %v1309, %v1497
        %v1541 = vmax.f32 %v1310, %v1499
        %v1542 = vmax.f32 %v1311, %v1502
        %v1543 = vmax.f32 %v1312, %v1504
        %v1544 = vmax.f32 %v1313, %v1507
        %v1545 = vmax.f32 %v1314, %v1509
        %v1546 = vmax.f32 %v1315, %v1512
        %v1547 = vmax.f32 %v1316, %v1514
        %v1548 = vmax.f32 %v1317, %v1517
        %v1549 = vmax.f32 %v1318, %v1519
        %v1550 = vmax.f32 %v1319, %v1522
        %v1551 = vmax.f32 %v1320, %v1524
        %v1552 = vld [vmem:[%s2] sm:$0x1]
        %v1554 = vperm.slane %v1552, 0
        %v1556 = vadd.f32 %v1526, %v1554
        %v1557 = vadd.f32 %v1527, %v1554
        %v1558 = vadd.f32 %v1528, %v1554
        %v1559 = vadd.f32 %v1529, %v1554
        %v1560 = vadd.f32 %v1530, %v1554
        %v1561 = vadd.f32 %v1531, %v1554
        %v1562 = vadd.f32 %v1532, %v1554
        %v1563 = vadd.f32 %v1533, %v1554
        %v1564 = vadd.f32 %v1534, %v1554
        %v1565 = vadd.f32 %v1535, %v1554
        %v1566 = vadd.f32 %v1536, %v1554
        %v1567 = vadd.f32 %v1537, %v1554
        %v1568 = vadd.f32 %v1538, %v1554
        %v1569 = vadd.f32 %v1539, %v1554
        %v1570 = vadd.f32 %v1540, %v1554
        %v1571 = vadd.f32 %v1541, %v1554
        %v1572 = vadd.f32 %v1542, %v1554
        %v1573 = vadd.f32 %v1543, %v1554
        %v1574 = vadd.f32 %v1544, %v1554
        %v1575 = vadd.f32 %v1545, %v1554
        %v1576 = vadd.f32 %v1546, %v1554
        %v1577 = vadd.f32 %v1547, %v1554
        %v1578 = vadd.f32 %v1548, %v1554
        %v1579 = vadd.f32 %v1549, %v1554
        %v1580 = vadd.f32 %v1550, %v1554
        %v1581 = vadd.f32 %v1551, %v1554
        %v1582 = vmax.f32 %v1556, 0.0
        %v1583 = vmax.f32 %v1557, 0.0
        %v1584 = vmax.f32 %v1558, 0.0
        %v1585 = vmax.f32 %v1559, 0.0
        %v1586 = vmax.f32 %v1560, 0.0
        %v1587 = vmax.f32 %v1561, 0.0
        %v1588 = vmax.f32 %v1562, 0.0
        %v1589 = vmax.f32 %v1563, 0.0
        %v1590 = vmax.f32 %v1564, 0.0
        %v1591 = vmax.f32 %v1565, 0.0
        %v1592 = vmax.f32 %v1566, 0.0
        %v1593 = vmax.f32 %v1567, 0.0
        %v1594 = vmax.f32 %v1568, 0.0
        %v1595 = vmax.f32 %v1569, 0.0
        %v1596 = vmax.f32 %v1570, 0.0
        %v1597 = vmax.f32 %v1571, 0.0
        %v1598 = vmax.f32 %v1572, 0.0
        %v1599 = vmax.f32 %v1573, 0.0
        %v1600 = vmax.f32 %v1574, 0.0
        %v1601 = vmax.f32 %v1575, 0.0
        %v1602 = vmax.f32 %v1576, 0.0
        %v1603 = vmax.f32 %v1577, 0.0
        %v1604 = vmax.f32 %v1578, 0.0
        %v1605 = vmax.f32 %v1579, 0.0
        %v1606 = vmax.f32 %v1580, 0.0
        %v1607 = vmax.f32 %v1581, 0.0
        %v1608 = vpack.c.bf16 %v1582, %v1582
        %v1609 = vpack.c.bf16 %v1583, %v1583
        %v1610 = vpack.c.bf16 %v1584, %v1584
        %v1611 = vpack.c.bf16 %v1585, %v1585
        %v1612 = vpack.c.bf16 %v1586, %v1586
        %v1613 = vpack.c.bf16 %v1587, %v1587
        %v1614 = vpack.c.bf16 %v1588, %v1588
        %v1615 = vpack.c.bf16 %v1589, %v1589
        %v1616 = vpack.c.bf16 %v1590, %v1590
        %v1617 = vpack.c.bf16 %v1591, %v1591
        %v1618 = vpack.c.bf16 %v1592, %v1592
        %v1619 = vpack.c.bf16 %v1593, %v1593
        %v1620 = vpack.c.bf16 %v1594, %v1594
        %v1621 = vpack.c.bf16 %v1595, %v1595
        %v1622 = vpack.c.bf16 %v1596, %v1596
        %v1623 = vpack.c.bf16 %v1597, %v1597
        %v1624 = vpack.c.bf16 %v1598, %v1598
        %v1625 = vpack.c.bf16 %v1599, %v1599
        %v1626 = vpack.c.bf16 %v1600, %v1600
        %v1627 = vpack.c.bf16 %v1601, %v1601
        %v1628 = vpack.c.bf16 %v1602, %v1602
        %v1629 = vpack.c.bf16 %v1603, %v1603
        %v1630 = vpack.c.bf16 %v1604, %v1604
        %v1631 = vpack.c.bf16 %v1605, %v1605
        %v1632 = vpack.c.bf16 %v1606, %v1606
        %v1633 = vpack.c.bf16 %v1607, %v1607
        %vm1634 = vcmask 257024
        %1635 = vst.msk [vmem:[%s627] sm:$0xf] %vm1634, %v1608
        %1636 = vst.msk [vmem:[%s627 + $0x4] sm:$0xf] %vm1634, %v1609
        %1637 = vst.msk [vmem:[%s627 + $0x8] sm:$0xf] %vm1634, %v1610
        %1638 = vst.msk [vmem:[%s627 + $0xc] sm:$0xf] %vm1634, %v1611
        %1639 = vst.msk [vmem:[%s627 + $0x10] sm:$0xf] %vm1634, %v1612
        %1640 = vst.msk [vmem:[%s627 + $0x14] sm:$0xf] %vm1634, %v1613
        %1641 = vst.msk [vmem:[%s627 + $0x18] sm:$0xf] %vm1634, %v1614
        %1642 = vst.msk [vmem:[%s627 + $0x1c] sm:$0xf] %vm1634, %v1615
        %1643 = vst.msk [vmem:[%s627 + $0x20] sm:$0xf] %vm1634, %v1616
        %1644 = vst.msk [vmem:[%s627 + $0x24] sm:$0xf] %vm1634, %v1617
        %1645 = vst.msk [vmem:[%s627 + $0x28] sm:$0xf] %vm1634, %v1618
        %1646 = vst.msk [vmem:[%s627 + $0x2c] sm:$0xf] %vm1634, %v1619
        %1647 = vst.msk [vmem:[%s627 + $0x30] sm:$0xf] %vm1634, %v1620
        %1648 = vst.msk [vmem:[%s627 + $0x34] sm:$0xf] %vm1634, %v1621
        %1649 = vst.msk [vmem:[%s627 + $0x38] sm:$0xf] %vm1634, %v1622
        %1650 = vst.msk [vmem:[%s627 + $0x3c] sm:$0xf] %vm1634, %v1623
        %1651 = vst.msk [vmem:[%s627 + $0x40] sm:$0xf] %vm1634, %v1624
        %1652 = vst.msk [vmem:[%s627 + $0x44] sm:$0xf] %vm1634, %v1625
        %1653 = vst.msk [vmem:[%s627 + $0x48] sm:$0xf] %vm1634, %v1626
        %1654 = vst.msk [vmem:[%s627 + $0x4c] sm:$0xf] %vm1634, %v1627
        %1655 = vst.msk [vmem:[%s627 + $0x50] sm:$0xf] %vm1634, %v1628
        %1656 = vst.msk [vmem:[%s627 + $0x54] sm:$0xf] %vm1634, %v1629
        %1657 = vst.msk [vmem:[%s627 + $0x58] sm:$0xf] %vm1634, %v1630
        %1658 = vst.msk [vmem:[%s627 + $0x5c] sm:$0xf] %vm1634, %v1631
        %1659 = vst.msk [vmem:[%s627 + $0x60] sm:$0xf] %vm1634, %v1632
        %1660 = vst.msk [vmem:[%s627 + $0x64] sm:$0xf] %vm1634, %v1633
        %s1661 = smul.u32 26, %s14
        %p1662 = scmp.lt.s32.totalorder %s1661, 51
        %s1663 = scalar_select %p1662, %s1661, 51
        %s1664 = smul.addr %s1663, 4
        %s1665 = scalar_lea.vmem %s3, %s1664
        // Predicated region
        $region74: #{d_curr_forward.3} parent=68 // pred_check
          %p1666 = pneg %p100
        $region75: #{d_curr_forward.3} parent=68 // pred_check_branch
          %1668 = sbr.rel (%p1666) target = $region77
        $region76: #{d_curr_forward.3} parent=68 // pred_region
          %s1669 = smul.u32 26, %s14
        $region77: #{d_curr_forward.3} parent=68 // pred_fallthru
          _
      $region69: #{d_curr_forward.3} parent=5 // pred_fallthru
        _
      %p1670 = scmp.le.s32.totalorder 2, %s9
      // Predicated region
      $region78: #{d_curr_forward.3} parent=5 // pred_check
        %p1671 = pneg %p1670
      $region79: #{d_curr_forward.3} parent=5 // pred_check_branch
        %1673 = sbr.rel (%p1671) target = $region81
      $region80: #{d_curr_forward.3} parent=5 // pred_region
        %s1674 = ssub.s32 %s9, 2
        // Predicated region
        $region82: #{d_curr_forward.3} parent=80 // pred_check
          %p1675 = pneg %p106
        $region83: #{d_curr_forward.3} parent=80 // pred_check_branch
          %1677 = sbr.rel (%p1675) target = $region85
        $region84: #{d_curr_forward.3} parent=80 // pred_region
          %s1678 = smul.u32 26, %s15
          %p1679 = scmp.lt.s32.totalorder %s1678, 51
          %s1680 = scalar_select %p1679, %s1678, 51
          %s1681 = smul.addr %s1680, 4
          %s1682 = scalar_lea.vmem %s3, %s1681
        $region85: #{d_curr_forward.3} parent=80 // pred_fallthru
          _
      $region81: #{d_curr_forward.3} parent=5 // pred_fallthru
        _
    $region6: #{d_curr_forward.3} parent=1 // loop_footer
      %s13 = sadd.s32 1, %s9
    $region7: #{d_curr_forward.3} parent=1 // loop_footer_branch
      %8 = sbr.rel target = $region3
    $region8: #{d_curr_forward.3} parent=1 // loop_exit
      _

// kernel: d_curr_forward.4
$region0: #{d_curr_forward.4}
  #allocation0 [shape = 'u32[]', space=smem, size = 0x4, offset = 0x4, fixed_abs, tag = 'smem constant byte address 0x4 - core index']
  #allocation1 [shape = 'u32[72,128]{1,0:T(1,128)}', space=vmem, size = 0x9000, scoped, tag = 'internal scratch']
  %s0 = inlined_call_operand.vmem [shape: bf16[4,128,288], index: 0, kind: input, shape index: {}]
  %s1 = inlined_call_operand.vmem [shape: bf16[288,64], index: 1, kind: input, shape index: {}]
  %s2 = inlined_call_operand.vmem [shape: f32[1,64], index: 2, kind: input, shape index: {}]
  %s3 = inlined_call_operand.vmem [shape: bf16[128,64], index: 3, kind: output, shape index: {}]
  %s4 = sld [smem:[#allocation0]]
  $region71: #{d_curr_forward.4} parent=0
    _
  %s6 = ssub.s32 1, %s4
  %s7 = scalar_select 0, %s6, %s4
  $region1: #{d_curr_forward.4} parent=0
    #allocation2 [shape = 'u8[393216]{0}', space=vmem, size = 0x60000, scoped, tag = 'input window, operand 0']
    loop: start=0, step=1, limit=4
    $region2: #{d_curr_forward.4} parent=1 // loop_pre_header
      _
    $region3: #{d_curr_forward.4} parent=1 // loop_header
      %s9 = sphi 0, %s13
      %p10 = scmp.ge.s32.totalorder %s9, 4
      %s19 = sphi 0, %s21
      %s22 = sphi 0, %s19
      %s23 = sphi 0, %s22
      %s39 = sphi 0, %s23
      %s43 = sphi 0, %s43
      %s45 = sphi 0, %s43
      %s46 = sphi 0, %s45
      %s60 = sphi 0, %s46
      %s64 = sphi 0, %s64
      %s66 = sphi 0, %s64
      %s67 = sphi 0, %s66
      %s81 = sphi 0, %s67
      %s87 = sphi 0, %s89
      %s90 = sphi 0, %s87
      %s91 = sphi 0, %s90
      %s107 = sphi 0, %s91
    $region4: #{d_curr_forward.4} parent=1 // loop_header_branch
      %12 = sbr.rel (%p10) target = $region8
    $region5: #{d_curr_forward.4} parent=1 // loop_body
      %s14 = ssub.s32 %s9, 1
      %s15 = ssub.s32 %s9, 2
      %s16 = sadd.s32 %s9, 1
      %s17 = ssub.s32 %s9, %s16
      %p18 = scmp.eq.s32.totalorder %s17, 0
      %s20 = sadd.s32 %s19, 1
      %s21 = scalar_select %p18, %s19, %s20
      %p24 = pneg %p18
      %p25 = scmp.eq.s32.totalorder %s9, 1
      %p26 = por %p24, %p25
      %p27 = scmp.ne.s32.totalorder %s19, %s22
      %p28 = scmp.eq.s32.totalorder %s9, 0
      %p29 = por %p27, %p28
      %p30 = scmp.ne.s32.totalorder %s19, %s22
      %p31 = scmp.eq.s32.totalorder %s14, 1
      %p32 = por %p30, %p31
      %p33 = scmp.ne.s32.totalorder %s22, %s23
      %p34 = scmp.eq.s32.totalorder %s14, 0
      %p35 = por %p33, %p34
      %p36 = scmp.ne.s32.totalorder %s22, %s23
      %p37 = scmp.eq.s32.totalorder %s15, 1
      %p38 = por %p36, %p37
      %p40 = scmp.ne.s32.totalorder %s23, %s39
      %p41 = scmp.eq.s32.totalorder %s15, 0
      %p42 = por %p40, %p41
      %s44 = sadd.s32 %s43, 1
      %p47 = scmp.eq.s32.totalorder %s9, 1
      %p48 = scmp.ne.s32.totalorder %s43, %s45
      %p49 = scmp.eq.s32.totalorder %s9, 0
      %p50 = por %p48, %p49
      %p51 = scmp.ne.s32.totalorder %s43, %s45
      %p52 = scmp.eq.s32.totalorder %s14, 1
      %p53 = por %p51, %p52
      %p54 = scmp.ne.s32.totalorder %s45, %s46
      %p55 = scmp.eq.s32.totalorder %s14, 0
      %p56 = por %p54, %p55
      %p57 = scmp.ne.s32.totalorder %s45, %s46
      %p58 = scmp.eq.s32.totalorder %s15, 1
      %p59 = por %p57, %p58
      %p61 = scmp.ne.s32.totalorder %s46, %s60
      %p62 = scmp.eq.s32.totalorder %s15, 0
      %p63 = por %p61, %p62
      %s65 = sadd.s32 %s64, 1
      %p68 = scmp.eq.s32.totalorder %s9, 1
      %p69 = scmp.ne.s32.totalorder %s64, %s66
      %p70 = scmp.eq.s32.totalorder %s9, 0
      %p71 = por %p69, %p70
      %p72 = scmp.ne.s32.totalorder %s64, %s66
      %p73 = scmp.eq.s32.totalorder %s14, 1
      %p74 = por %p72, %p73
      %p75 = scmp.ne.s32.totalorder %s66, %s67
      %p76 = scmp.eq.s32.totalorder %s14, 0
      %p77 = por %p75, %p76
      %p78 = scmp.ne.s32.totalorder %s66, %s67
      %p79 = scmp.eq.s32.totalorder %s15, 1
      %p80 = por %p78, %p79
      %p82 = scmp.ne.s32.totalorder %s67, %s81
      %p83 = scmp.eq.s32.totalorder %s15, 0
      %p84 = por %p82, %p83
      %s85 = ssub.s32 %s9, %s16
      %p86 = scmp.eq.s32.totalorder %s85, 0
      %s88 = sadd.s32 %s87, 1
      %s89 = scalar_select %p86, %s87, %s88
      %p92 = pneg %p86
      %p93 = scmp.eq.s32.totalorder %s9, 1
      %p94 = por %p92, %p93
      %p95 = scmp.ne.s32.totalorder %s87, %s90
      %p96 = scmp.eq.s32.totalorder %s9, 0
      %p97 = por %p95, %p96
      %p98 = scmp.ne.s32.totalorder %s87, %s90
      %p99 = scmp.eq.s32.totalorder %s14, 1
      %p100 = por %p98, %p99
      %p101 = scmp.ne.s32.totalorder %s90, %s91
      %p102 = scmp.eq.s32.totalorder %s14, 0
      %p103 = por %p101, %p102
      %p104 = scmp.ne.s32.totalorder %s90, %s91
      %p105 = scmp.eq.s32.totalorder %s15, 1
      %p106 = por %p104, %p105
      %p108 = scmp.ne.s32.totalorder %s91, %s107
      %p109 = scmp.eq.s32.totalorder %s15, 0
      %p110 = por %p108, %p109
      %p111 = scmp.le.s32.totalorder 1, %s9
      %p112 = scmp.lt.s32.totalorder %s9, 3
      %p113 = pnand %p111, %p112
      %p114 = pneg %p113
      // Predicated region
      $region9: #{d_curr_forward.4} parent=5 // pred_check
        _
      $region10: #{d_curr_forward.4} parent=5 // pred_check_branch
        %116 = sbr.rel (%p113) target = $region12
      $region11: #{d_curr_forward.4} parent=5 // pred_region
        %s117 = ssub.s32 %s9, 1
        // Predicated region
        $region13: #{d_curr_forward.4} parent=11 // pred_check
          %p118 = pneg %p56
        $region14: #{d_curr_forward.4} parent=11 // pred_check_branch
          %120 = sbr.rel (%p118) target = $region16
        $region15: #{d_curr_forward.4} parent=11 // pred_region
          _
        $region16: #{d_curr_forward.4} parent=11 // pred_fallthru
          _
        // Predicated region
        $region17: #{d_curr_forward.4} parent=11 // pred_check
          %p121 = pneg %p77
        $region18: #{d_curr_forward.4} parent=11 // pred_check_branch
          %123 = sbr.rel (%p121) target = $region20
        $region19: #{d_curr_forward.4} parent=11 // pred_region
          _
        $region20: #{d_curr_forward.4} parent=11 // pred_fallthru
          _
      $region12: #{d_curr_forward.4} parent=5 // pred_fallthru
        _
      %p124 = scmp.lt.s32.totalorder %s9, 2
      // Predicated region
      $region21: #{d_curr_forward.4} parent=5 // pred_check
        %p125 = pneg %p124
      $region22: #{d_curr_forward.4} parent=5 // pred_check_branch
        %127 = sbr.rel (%p125) target = $region24
      $region23: #{d_curr_forward.4} parent=5 // pred_region
        // Predicated region
        $region25: #{d_curr_forward.4} parent=23 // pred_check
          %p128 = pneg %p29
        $region26: #{d_curr_forward.4} parent=23 // pred_check_branch
          %130 = sbr.rel (%p128) target = $region28
        $region27: #{d_curr_forward.4} parent=23 // pred_region
          %s131 = sand.u32 %s19, 1
          %s132 = sand.u32 %s19, 1
          %s133 = smul.addr %s132, 384
          %s134 = scalar_lea.vmem [#allocation2], %s133
          %s135 = smul.u32 8, %s9
          %s136 = smul.addr %s135, 3
          %s137 = smul.addr %s136, 4
          %s138 = scalar_lea.vmem %s0, %s137
          // Predicated region
          $region29: #{d_curr_forward.4} parent=27 // pred_check
            _
          $region30: #{d_curr_forward.4} parent=27 // pred_check_branch
            %140 = sbr.rel (0) target = $region32
          $region31: #{d_curr_forward.4} parent=27 // pred_region
            // Predicated region
            $region33: #{d_curr_forward.4} parent=31 // pred_check
              _
            $region34: #{d_curr_forward.4} parent=31 // pred_check_branch
              %142 = sbr.rel (0) target = $region36
            $region35: #{d_curr_forward.4} parent=31 // pred_region
              %s143 = scalar_lea.vmem %s138, 8
              %s144 = scalar_lea.vmem %s134, 8 [#allocation2]
              loop: start=0, step=1, limit=1
              $region37: #{d_curr_forward.4} parent=35 // loop_pre_header
                _
              $region38: #{d_curr_forward.4} parent=35 // loop_header
                %s146 = sphi 0, %s150
                %p147 = scmp.ge.s32.totalorder %s146, 1
                %s151 = sphi %s138, %s138
                %s152 = sphi %s134, %s134
              $region39: #{d_curr_forward.4} parent=35 // loop_header_branch
                %149 = sbr.rel (%p147) target = $region43
              $region40: #{d_curr_forward.4} parent=35 // loop_body
                %v153 = vld [vmem:[%s151] sm:$0xff]
                %154 = vst [vmem:[%s152] sm:$0xff] %v153
                %v155 = vld [vmem:[%s151 + $0xc] sm:$0xff]
                %156 = vst [vmem:[%s152 + $0xc] sm:$0xff] %v155
                %v157 = vld [vmem:[%s151 + $0x18] sm:$0xff]
                %158 = vst [vmem:[%s152 + $0x18] sm:$0xff] %v157
                %v159 = vld [vmem:[%s151 + $0x24] sm:$0xff]
                %160 = vst [vmem:[%s152 + $0x24] sm:$0xff] %v159
                %v161 = vld [vmem:[%s151 + $0x30] sm:$0xff]
                %162 = vst [vmem:[%s152 + $0x30] sm:$0xff] %v161
                %v163 = vld [vmem:[%s151 + $0x3c] sm:$0xff]
                %164 = vst [vmem:[%s152 + $0x3c] sm:$0xff] %v163
                %v165 = vld [vmem:[%s151 + $0x48] sm:$0xff]
                %166 = vst [vmem:[%s152 + $0x48] sm:$0xff] %v165
                %v167 = vld [vmem:[%s151 + $0x54] sm:$0xff]
                %168 = vst [vmem:[%s152 + $0x54] sm:$0xff] %v167
                %v169 = vld [vmem:[%s151 + $0xc0] sm:$0xff]
                %170 = vst [vmem:[%s152 + $0x60] sm:$0xff] %v169
                %v171 = vld [vmem:[%s151 + $0xcc] sm:$0xff]
                %172 = vst [vmem:[%s152 + $0x6c] sm:$0xff] %v171
                %v173 = vld [vmem:[%s151 + $0xd8] sm:$0xff]
                %174 = vst [vmem:[%s152 + $0x78] sm:$0xff] %v173
                %v175 = vld [vmem:[%s151 + $0xe4] sm:$0xff]
                %176 = vst [vmem:[%s152 + $0x84] sm:$0xff] %v175
                %v177 = vld [vmem:[%s151 + $0xf0] sm:$0xff]
                %178 = vst [vmem:[%s152 + $0x90] sm:$0xff] %v177
                %v179 = vld [vmem:[%s151 + $0xfc] sm:$0xff]
                %180 = vst [vmem:[%s152 + $0x9c] sm:$0xff] %v179
                %v181 = vld [vmem:[%s151 + $0x108] sm:$0xff]
                %182 = vst [vmem:[%s152 + $0xa8] sm:$0xff] %v181
                %v183 = vld [vmem:[%s151 + $0x114] sm:$0xff]
                %184 = vst [vmem:[%s152 + $0xb4] sm:$0xff] %v183
                %v185 = vld [vmem:[%s151 + $0x180] sm:$0xff]
                %186 = vst [vmem:[%s152 + $0xc0] sm:$0xff] %v185
                %v187 = vld [vmem:[%s151 + $0x18c] sm:$0xff]
                %188 = vst [vmem:[%s152 + $0xcc] sm:$0xff] %v187
                %v189 = vld [vmem:[%s151 + $0x198] sm:$0xff]
                %190 = vst [vmem:[%s152 + $0xd8] sm:$0xff] %v189
                %v191 = vld [vmem:[%s151 + $0x1a4] sm:$0xff]
                %192 = vst [vmem:[%s152 + $0xe4] sm:$0xff] %v191
                %v193 = vld [vmem:[%s151 + $0x1b0] sm:$0xff]
                %194 = vst [vmem:[%s152 + $0xf0] sm:$0xff] %v193
                %v195 = vld [vmem:[%s151 + $0x1bc] sm:$0xff]
                %196 = vst [vmem:[%s152 + $0xfc] sm:$0xff] %v195
                %v197 = vld [vmem:[%s151 + $0x1c8] sm:$0xff]
                %198 = vst [vmem:[%s152 + $0x108] sm:$0xff] %v197
                %v199 = vld [vmem:[%s151 + $0x1d4] sm:$0xff]
                %200 = vst [vmem:[%s152 + $0x114] sm:$0xff] %v199
                %v201 = vld [vmem:[%s151 + $0x240] sm:$0xff]
                %202 = vst [vmem:[%s152 + $0x120] sm:$0xff] %v201
                %v203 = vld [vmem:[%s151 + $0x24c] sm:$0xff]
                %204 = vst [vmem:[%s152 + $0x12c] sm:$0xff] %v203
                %v205 = vld [vmem:[%s151 + $0x258] sm:$0xff]
                %206 = vst [vmem:[%s152 + $0x138] sm:$0xff] %v205
                %v207 = vld [vmem:[%s151 + $0x264] sm:$0xff]
                %208 = vst [vmem:[%s152 + $0x144] sm:$0xff] %v207
                %v209 = vld [vmem:[%s151 + $0x270] sm:$0xff]
                %210 = vst [vmem:[%s152 + $0x150] sm:$0xff] %v209
                %v211 = vld [vmem:[%s151 + $0x27c] sm:$0xff]
                %212 = vst [vmem:[%s152 + $0x15c] sm:$0xff] %v211
                %v213 = vld [vmem:[%s151 + $0x288] sm:$0xff]
                %214 = vst [vmem:[%s152 + $0x168] sm:$0xff] %v213
                %v215 = vld [vmem:[%s151 + $0x294] sm:$0xff]
                %216 = vst [vmem:[%s152 + $0x174] sm:$0xff] %v215
              $region41: #{d_curr_forward.4} parent=35 // loop_footer
                %s150 = sadd.s32 1, %s146
              $region42: #{d_curr_forward.4} parent=35 // loop_footer_branch
                %145 = sbr.rel target = $region38
              $region43: #{d_curr_forward.4} parent=35 // loop_exit
                _
              %s218 = ssub.s32 16, 1
              loop: start=0, step=1, limit=1
              $region44: #{d_curr_forward.4} parent=35 // loop_pre_header
                _
              $region45: #{d_curr_forward.4} parent=35 // loop_header
                %s220 = sphi 0, %s224
                %p221 = scmp.ge.s32.totalorder %s220, 1
                %s225 = sphi %s143, %s143
                %s226 = sphi %s144, %s144
              $region46: #{d_curr_forward.4} parent=35 // loop_header_branch
                %223 = sbr.rel (%p221) target = $region50
              $region47: #{d_curr_forward.4} parent=35 // loop_body
                %v227 = vld [vmem:[%s225] sm:%s218]
                %228 = vst [vmem:[%s226] sm:%s218] %v227
                %v229 = vld [vmem:[%s225 + $0xc] sm:%s218]
                %230 = vst [vmem:[%s226 + $0xc] sm:%s218] %v229
                %v231 = vld [vmem:[%s225 + $0x18] sm:%s218]
                %232 = vst [vmem:[%s226 + $0x18] sm:%s218] %v231
                %v233 = vld [vmem:[%s225 + $0x24] sm:%s218]
                %234 = vst [vmem:[%s226 + $0x24] sm:%s218] %v233
                %v235 = vld [vmem:[%s225 + $0x30] sm:%s218]
                %236 = vst [vmem:[%s226 + $0x30] sm:%s218] %v235
                %v237 = vld [vmem:[%s225 + $0x3c] sm:%s218]
                %238 = vst [vmem:[%s226 + $0x3c] sm:%s218] %v237
                %v239 = vld [vmem:[%s225 + $0x48] sm:%s218]
                %240 = vst [vmem:[%s226 + $0x48] sm:%s218] %v239
                %v241 = vld [vmem:[%s225 + $0x54] sm:%s218]
                %242 = vst [vmem:[%s226 + $0x54] sm:%s218] %v241
                %v243 = vld [vmem:[%s225 + $0xc0] sm:%s218]
                %244 = vst [vmem:[%s226 + $0x60] sm:%s218] %v243
                %v245 = vld [vmem:[%s225 + $0xcc] sm:%s218]
                %246 = vst [vmem:[%s226 + $0x6c] sm:%s218] %v245
                %v247 = vld [vmem:[%s225 + $0xd8] sm:%s218]
                %248 = vst [vmem:[%s226 + $0x78] sm:%s218] %v247
                %v249 = vld [vmem:[%s225 + $0xe4] sm:%s218]
                %250 = vst [vmem:[%s226 + $0x84] sm:%s218] %v249
                %v251 = vld [vmem:[%s225 + $0xf0] sm:%s218]
                %252 = vst [vmem:[%s226 + $0x90] sm:%s218] %v251
                %v253 = vld [vmem:[%s225 + $0xfc] sm:%s218]
                %254 = vst [vmem:[%s226 + $0x9c] sm:%s218] %v253
                %v255 = vld [vmem:[%s225 + $0x108] sm:%s218]
                %256 = vst [vmem:[%s226 + $0xa8] sm:%s218] %v255
                %v257 = vld [vmem:[%s225 + $0x114] sm:%s218]
                %258 = vst [vmem:[%s226 + $0xb4] sm:%s218] %v257
                %v259 = vld [vmem:[%s225 + $0x180] sm:%s218]
                %260 = vst [vmem:[%s226 + $0xc0] sm:%s218] %v259
                %v261 = vld [vmem:[%s225 + $0x18c] sm:%s218]
                %262 = vst [vmem:[%s226 + $0xcc] sm:%s218] %v261
                %v263 = vld [vmem:[%s225 + $0x198] sm:%s218]
                %264 = vst [vmem:[%s226 + $0xd8] sm:%s218] %v263
                %v265 = vld [vmem:[%s225 + $0x1a4] sm:%s218]
                %266 = vst [vmem:[%s226 + $0xe4] sm:%s218] %v265
                %v267 = vld [vmem:[%s225 + $0x1b0] sm:%s218]
                %268 = vst [vmem:[%s226 + $0xf0] sm:%s218] %v267
                %v269 = vld [vmem:[%s225 + $0x1bc] sm:%s218]
                %270 = vst [vmem:[%s226 + $0xfc] sm:%s218] %v269
                %v271 = vld [vmem:[%s225 + $0x1c8] sm:%s218]
                %272 = vst [vmem:[%s226 + $0x108] sm:%s218] %v271
                %v273 = vld [vmem:[%s225 + $0x1d4] sm:%s218]
                %274 = vst [vmem:[%s226 + $0x114] sm:%s218] %v273
                %v275 = vld [vmem:[%s225 + $0x240] sm:%s218]
                %276 = vst [vmem:[%s226 + $0x120] sm:%s218] %v275
                %v277 = vld [vmem:[%s225 + $0x24c] sm:%s218]
                %278 = vst [vmem:[%s226 + $0x12c] sm:%s218] %v277
                %v279 = vld [vmem:[%s225 + $0x258] sm:%s218]
                %280 = vst [vmem:[%s226 + $0x138] sm:%s218] %v279
                %v281 = vld [vmem:[%s225 + $0x264] sm:%s218]
                %282 = vst [vmem:[%s226 + $0x144] sm:%s218] %v281
                %v283 = vld [vmem:[%s225 + $0x270] sm:%s218]
                %284 = vst [vmem:[%s226 + $0x150] sm:%s218] %v283
                %v285 = vld [vmem:[%s225 + $0x27c] sm:%s218]
                %286 = vst [vmem:[%s226 + $0x15c] sm:%s218] %v285
                %v287 = vld [vmem:[%s225 + $0x288] sm:%s218]
                %288 = vst [vmem:[%s226 + $0x168] sm:%s218] %v287
                %v289 = vld [vmem:[%s225 + $0x294] sm:%s218]
                %290 = vst [vmem:[%s226 + $0x174] sm:%s218] %v289
              $region48: #{d_curr_forward.4} parent=35 // loop_footer
                %s224 = sadd.s32 1, %s220
              $region49: #{d_curr_forward.4} parent=35 // loop_footer_branch
                %219 = sbr.rel target = $region45
              $region50: #{d_curr_forward.4} parent=35 // loop_exit
                _
            $region36: #{d_curr_forward.4} parent=31 // pred_fallthru
              _
          $region32: #{d_curr_forward.4} parent=27 // pred_fallthru
            _
          %291 = vnop
        $region28: #{d_curr_forward.4} parent=23 // pred_fallthru
          _
      $region24: #{d_curr_forward.4} parent=5 // pred_fallthru
        _
      %p292 = scmp.le.s32.totalorder 1, %s9
      %p293 = scmp.lt.s32.totalorder %s9, 3
      %p294 = pnand %p292, %p293
      %p295 = pneg %p294
      // Predicated region
      $region51: #{d_curr_forward.4} parent=5 // pred_check
        _
      $region52: #{d_curr_forward.4} parent=5 // pred_check_branch
        %297 = sbr.rel (%p294) target = $region54
      $region53: #{d_curr_forward.4} parent=5 // pred_region
        %s298 = ssub.s32 %s9, 1
        %s299 = sand.u32 %s22, 1
        %s300 = sand.u32 %s22, 1
        %s301 = smul.addr %s300, 384
        %s302 = scalar_lea.vmem [#allocation2], %s301
        // Predicated region
        $region55: #{d_curr_forward.4} parent=53 // pred_check
          %p303 = pneg %p35
        $region56: #{d_curr_forward.4} parent=53 // pred_check_branch
          %305 = sbr.rel (%p303) target = $region58
        $region57: #{d_curr_forward.4} parent=53 // pred_region
          _
        $region58: #{d_curr_forward.4} parent=53 // pred_fallthru
          _
        %s306 = sand.u32 %s22, 1
        %s307 = sand.u32 %s22, 1
        %s308 = smul.addr %s307, 384
        %s309 = scalar_lea.vmem [#allocation2], %s308
        %p310 = pneg %p35
        %p311 = pneg %p32
        %p312 = pneg %p56
        %p313 = pneg %p53
        %p314 = pneg %p77
        %p315 = pneg %p74
        %p316 = pneg %p103
        %p317 = pneg %p100
        %s318 = smul.u32 8, %s14
        %p319 = scmp.lt.s32.totalorder %s318, 15
        %s320 = scalar_select %p319, %s318, 15
        %s321 = smul.addr %s320, 4
        %s322 = scalar_lea.vmem %s3, %s321
        %s323 = smul.u32 8, %s14
        %s324 = smul.u32 8, %s14
        %p325 = scmp.lt.s32.totalorder %s324, 15
        %s326 = scalar_select %p325, %s324, 15
        %s327 = smul.addr %s326, 4
        %s328 = scalar_lea.vmem %s3, %s327
        %s329 = smul.u32 8, %s14
        %v331 = vld [vmem:[%s1] sm:$0xf]
        %v332 = vld [vmem:[%s1 + $0x4] sm:$0xf]
        %v333 = vld [vmem:[%s1 + $0x8] sm:$0xf]
        %v334 = vld [vmem:[%s1 + $0xc] sm:$0xf]
        %v335 = vld [vmem:[%s1 + $0x10] sm:$0xf]
        %v336 = vld [vmem:[%s1 + $0x14] sm:$0xf]
        %v337 = vld [vmem:[%s1 + $0x18] sm:$0xf]
        %v338 = vld [vmem:[%s1 + $0x1c] sm:$0xf]
        %v339 = vld [vmem:[%s1 + $0x20] sm:$0xf]
        %v340 = vld [vmem:[%s1 + $0x24] sm:$0xf]
        %v341 = vld [vmem:[%s1 + $0x28] sm:$0xf]
        %v342 = vld [vmem:[%s1 + $0x2c] sm:$0xf]
        %v343 = vld [vmem:[%s1 + $0x30] sm:$0xf]
        %v344 = vld [vmem:[%s1 + $0x34] sm:$0xf]
        %v345 = vld [vmem:[%s1 + $0x38] sm:$0xf]
        %v346 = vld [vmem:[%s1 + $0x3c] sm:$0xf]
        %v347 = vld [vmem:[%s1 + $0x40] sm:$0xf]
        %v348 = vld [vmem:[%s1 + $0x44] sm:$0xf]
        %v349 = vld [vmem:[%s1 + $0x48] sm:$0xf]
        %v350 = vld [vmem:[%s1 + $0x4c] sm:$0xf]
        %v351 = vld [vmem:[%s1 + $0x50] sm:$0xf]
        %v352 = vld [vmem:[%s1 + $0x54] sm:$0xf]
        %v353 = vld [vmem:[%s1 + $0x58] sm:$0xf]
        %v354 = vld [vmem:[%s1 + $0x5c] sm:$0xf]
        %v355 = vld [vmem:[%s1 + $0x60] sm:$0xf]
        %v356 = vld [vmem:[%s1 + $0x64] sm:$0xf]
        %v357 = vld [vmem:[%s1 + $0x68] sm:$0xf]
        %v358 = vld [vmem:[%s1 + $0x6c] sm:$0xf]
        %v359 = vld [vmem:[%s1 + $0x70] sm:$0xf]
        %v360 = vld [vmem:[%s1 + $0x74] sm:$0xf]
        %v361 = vld [vmem:[%s1 + $0x78] sm:$0xf]
        %v362 = vld [vmem:[%s1 + $0x7c] sm:$0xf]
        %v363 = vld [vmem:[%s1 + $0x80] sm:$0xf]
        %v364 = vld [vmem:[%s1 + $0x84] sm:$0xf]
        %v365 = vld [vmem:[%s1 + $0x88] sm:$0xf]
        %v366 = vld [vmem:[%s1 + $0x8c] sm:$0xf]
        %v367 = vld [vmem:[%s302] sm:$0xff]
        %v368 = vld [vmem:[%s302 + $0x8] sm:$0xf]
        %v369 = vld [vmem:[%s302 + $0xc] sm:$0xff]
        %v370 = vld [vmem:[%s302 + $0x14] sm:$0xf]
        %v371 = vld [vmem:[%s302 + $0x18] sm:$0xff]
        %v372 = vld [vmem:[%s302 + $0x20] sm:$0xf]
        %v373 = vld [vmem:[%s302 + $0x24] sm:$0xff]
        %v374 = vld [vmem:[%s302 + $0x2c] sm:$0xf]
        %v375 = vld [vmem:[%s302 + $0x30] sm:$0xff]
        %v376 = vld [vmem:[%s302 + $0x38] sm:$0xf]
        %v377 = vld [vmem:[%s302 + $0x3c] sm:$0xff]
        %v378 = vld [vmem:[%s302 + $0x44] sm:$0xf]
        %v379 = vld [vmem:[%s302 + $0x48] sm:$0xff]
        %v380 = vld [vmem:[%s302 + $0x50] sm:$0xf]
        %v381 = vld [vmem:[%s302 + $0x54] sm:$0xff]
        %v382 = vld [vmem:[%s302 + $0x5c] sm:$0xf]
        %v399 = vunpack.c.l.b16 %v367
        %v400 = vunpack.c.h.b16 %v367
        %v401 = vunpack.c.l.b16 %v368
        %v402 = vunpack.c.l.b16 %v369
        %v403 = vunpack.c.h.b16 %v369
        %v404 = vunpack.c.l.b16 %v370
        %v405 = vunpack.c.l.b16 %v371
        %v406 = vunpack.c.h.b16 %v371
        %v407 = vunpack.c.l.b16 %v372
        %v408 = vunpack.c.l.b16 %v373
        %v409 = vunpack.c.h.b16 %v373
        %v410 = vunpack.c.l.b16 %v374
        %v411 = vunpack.c.l.b16 %v375
        %v412 = vunpack.c.h.b16 %v375
        %v413 = vunpack.c.l.b16 %v376
        %v414 = vunpack.c.l.b16 %v377
        %v415 = vunpack.c.h.b16 %v377
        %v416 = vunpack.c.l.b16 %v378
        %v417 = vunpack.c.l.b16 %v379
        %v418 = vunpack.c.h.b16 %v379
        %v419 = vunpack.c.l.b16 %v380
        %v420 = vunpack.c.l.b16 %v381
        %v421 = vunpack.c.h.b16 %v381
        %v422 = vunpack.c.l.b16 %v382
        %v423 = vpack.c.b16 %v402, %v399
        %v424 = vpack.c.b16 %v403, %v400
        %v425 = vpack.c.b16 %v404, %v401
        %v426 = vpack.c.b16 %v408, %v405
        %v427 = vpack.c.b16 %v409, %v406
        %v428 = vpack.c.b16 %v410, %v407
        %v429 = vpack.c.b16 %v414, %v411
        %v430 = vpack.c.b16 %v415, %v412
        %v431 = vpack.c.b16 %v416, %v413
        %v432 = vpack.c.b16 %v420, %v417
        %v433 = vpack.c.b16 %v421, %v418
        %v434 = vpack.c.b16 %v422, %v419
        %v479 = vunpack.c.l.b16 %v331
        %v480 = vunpack.c.l.b16 %v332
        %v481 = vunpack.c.l.b16 %v333
        %v482 = vunpack.c.l.b16 %v334
        %v483 = vunpack.c.l.b16 %v335
        %v484 = vunpack.c.l.b16 %v336
        %v485 = vunpack.c.l.b16 %v337
        %v486 = vunpack.c.l.b16 %v338
        %v487 = vunpack.c.l.b16 %v339
        %v488 = vunpack.c.l.b16 %v340
        %v489 = vunpack.c.l.b16 %v341
        %v490 = vunpack.c.l.b16 %v342
        %v491 = vunpack.c.l.b16 %v343
        %v492 = vunpack.c.l.b16 %v344
        %v493 = vunpack.c.l.b16 %v345
        %v494 = vunpack.c.l.b16 %v346
        %v495 = vunpack.c.l.b16 %v347
        %v496 = vunpack.c.l.b16 %v348
        %v497 = vunpack.c.l.b16 %v349
        %v498 = vunpack.c.l.b16 %v350
        %v499 = vunpack.c.l.b16 %v351
        %v500 = vunpack.c.l.b16 %v352
        %v501 = vunpack.c.l.b16 %v353
        %v502 = vunpack.c.l.b16 %v354
        %v503 = vunpack.c.l.b16 %v355
        %v504 = vunpack.c.l.b16 %v356
        %v505 = vunpack.c.l.b16 %v357
        %v506 = vunpack.c.l.b16 %v358
        %v507 = vunpack.c.l.b16 %v359
        %v508 = vunpack.c.l.b16 %v360
        %v509 = vunpack.c.l.b16 %v361
        %v510 = vunpack.c.l.b16 %v362
        %v511 = vunpack.c.l.b16 %v363
        %v512 = vunpack.c.l.b16 %v364
        %v513 = vunpack.c.l.b16 %v365
        %v514 = vunpack.c.l.b16 %v366
        %v515 = vpack.c.b16 %v480, %v479
        %v516 = vpack.c.b16 %v482, %v481
        %v517 = vpack.c.b16 %v484, %v483
        %v518 = vpack.c.b16 %v486, %v485
        %v519 = vpack.c.b16 %v488, %v487
        %v520 = vpack.c.b16 %v490, %v489
        %v521 = vpack.c.b16 %v492, %v491
        %v522 = vpack.c.b16 %v494, %v493
        %v523 = vpack.c.b16 %v496, %v495
        %v524 = vpack.c.b16 %v498, %v497
        %v525 = vpack.c.b16 %v500, %v499
        %v526 = vpack.c.b16 %v502, %v501
        %v527 = vpack.c.b16 %v504, %v503
        %v528 = vpack.c.b16 %v506, %v505
        %v529 = vpack.c.b16 %v508, %v507
        %v530 = vpack.c.b16 %v510, %v509
        %v531 = vpack.c.b16 %v512, %v511
        %v532 = vpack.c.b16 %v514, %v513
        %vm551 = vcmask 261120
        %v553 = vsel %vm551, %v425, 0
        %v556 = vsel %vm551, %v428, 0
        %v559 = vsel %vm551, %v431, 0
        %v562 = vsel %vm551, %v434, 0
        %564 = vmatpush.bf16.msra.mxu0 %v522
        %565 = vmatpush.bf16.msra.mxu0 %v521
        %566 = vmatpush.bf16.msra.mxu0 %v520
        %567 = vmatpush.bf16.msra.mxu0 %v519
        %568 = vmatpush.bf16.msra.mxu0 %v518
        %569 = vmatpush.bf16.msra.mxu0 %v517
        %570 = vmatpush.bf16.msra.mxu0 %v516
        %571 = vmatpush.bf16.msra.mxu0 %v515
        %572 = vmatmul.bf16.gmra.mxu0 %v423
        %v573 = vpop.f32.mrf.mxu0
        %v574 = vadd.f32 0.0, %v573
        %v575 = vpop.f32.mrf.mxu0
        %v576 = vadd.f32 0.0, %v575
        %577 = vmatmul.bf16.gmra.mxu0 %v426
        %v578 = vpop.f32.mrf.mxu0
        %v579 = vadd.f32 0.0, %v578
        %v580 = vpop.f32.mrf.mxu0
        %v581 = vadd.f32 0.0, %v580
        %582 = vmatmul.bf16.gmra.mxu0 %v429
        %v583 = vpop.f32.mrf.mxu0
        %v584 = vadd.f32 0.0, %v583
        %v585 = vpop.f32.mrf.mxu0
        %v586 = vadd.f32 0.0, %v585
        %587 = vmatmul.bf16.gmra.mxu0 %v432
        %v588 = vpop.f32.mrf.mxu0
        %v589 = vadd.f32 0.0, %v588
        %v590 = vpop.f32.mrf.mxu0
        %v591 = vadd.f32 0.0, %v590
        %592 = vdwg.mxu0
        %593 = vmatpush.bf16.msra.mxu0 %v530
        %594 = vmatpush.bf16.msra.mxu0 %v529
        %595 = vmatpush.bf16.msra.mxu0 %v528
        %596 = vmatpush.bf16.msra.mxu0 %v527
        %597 = vmatpush.bf16.msra.mxu0 %v526
        %598 = vmatpush.bf16.msra.mxu0 %v525
        %599 = vmatpush.bf16.msra.mxu0 %v524
        %600 = vmatpush.bf16.msra.mxu0 %v523
        %601 = vmatmul.bf16.gmra.mxu0 %v424
        %v602 = vpop.f32.mrf.mxu0
        %v603 = vadd.f32 %v574, %v602
        %v604 = vpop.f32.mrf.mxu0
        %v605 = vadd.f32 %v576, %v604
        %606 = vmatmul.bf16.gmra.mxu0 %v427
        %v607 = vpop.f32.mrf.mxu0
        %v608 = vadd.f32 %v579, %v607
        %v609 = vpop.f32.mrf.mxu0
        %v610 = vadd.f32 %v581, %v609
        %611 = vmatmul.bf16.gmra.mxu0 %v430
        %v612 = vpop.f32.mrf.mxu0
        %v613 = vadd.f32 %v584, %v612
        %v614 = vpop.f32.mrf.mxu0
        %v615 = vadd.f32 %v586, %v614
        %616 = vmatmul.bf16.gmra.mxu0 %v433
        %v617 = vpop.f32.mrf.mxu0
        %v618 = vadd.f32 %v589, %v617
        %v619 = vpop.f32.mrf.mxu0
        %v620 = vadd.f32 %v591, %v619
        %621 = vdwg.mxu0
        %622 = vmatpush.bf16.msra.mxu0 0
        %623 = vmatpush.bf16.msra.mxu0 0
        %624 = vmatpush.bf16.msra.mxu0 0
        %625 = vmatpush.bf16.msra.mxu0 0
        %626 = vmatpush.bf16.msra.mxu0 0
        %627 = vmatpush.bf16.msra.mxu0 0
        %628 = vmatpush.bf16.msra.mxu0 %v532
        %629 = vmatpush.bf16.msra.mxu0 %v531
        %630 = vmatmul.bf16.gmra.mxu0 %v553
        %v631 = vpop.f32.mrf.mxu0
        %v632 = vadd.f32 %v603, %v631
        %v633 = vpop.f32.mrf.mxu0
        %v634 = vadd.f32 %v605, %v633
        %635 = vmatmul.bf16.gmra.mxu0 %v556
        %v636 = vpop.f32.mrf.mxu0
        %v637 = vadd.f32 %v608, %v636
        %v638 = vpop.f32.mrf.mxu0
        %v639 = vadd.f32 %v610, %v638
        %640 = vmatmul.bf16.gmra.mxu0 %v559
        %v641 = vpop.f32.mrf.mxu0
        %v642 = vadd.f32 %v613, %v641
        %v643 = vpop.f32.mrf.mxu0
        %v644 = vadd.f32 %v615, %v643
        %645 = vmatmul.bf16.gmra.mxu0 %v562
        %v646 = vpop.f32.mrf.mxu0
        %v647 = vadd.f32 %v618, %v646
        %v648 = vpop.f32.mrf.mxu0
        %v649 = vadd.f32 %v620, %v648
        %650 = vdwg.mxu0
        %s651 = scalar_lea.vmem %s302, 96 [#allocation2]
        %v652 = vld [vmem:[%s651] sm:$0xff]
        %v653 = vld [vmem:[%s651 + $0x8] sm:$0xf]
        %v654 = vld [vmem:[%s651 + $0xc] sm:$0xff]
        %v655 = vld [vmem:[%s651 + $0x14] sm:$0xf]
        %v656 = vld [vmem:[%s651 + $0x18] sm:$0xff]
        %v657 = vld [vmem:[%s651 + $0x20] sm:$0xf]
        %v658 = vld [vmem:[%s651 + $0x24] sm:$0xff]
        %v659 = vld [vmem:[%s651 + $0x2c] sm:$0xf]
        %v660 = vld [vmem:[%s651 + $0x30] sm:$0xff]
        %v661 = vld [vmem:[%s651 + $0x38] sm:$0xf]
        %v662 = vld [vmem:[%s651 + $0x3c] sm:$0xff]
        %v663 = vld [vmem:[%s651 + $0x44] sm:$0xf]
        %v664 = vld [vmem:[%s651 + $0x48] sm:$0xff]
        %v665 = vld [vmem:[%s651 + $0x50] sm:$0xf]
        %v666 = vld [vmem:[%s651 + $0x54] sm:$0xff]
        %v667 = vld [vmem:[%s651 + $0x5c] sm:$0xf]
        %v684 = vunpack.c.l.b16 %v652
        %v685 = vunpack.c.h.b16 %v652
        %v686 = vunpack.c.l.b16 %v653
        %v687 = vunpack.c.l.b16 %v654
        %v688 = vunpack.c.h.b16 %v654
        %v689 = vunpack.c.l.b16 %v655
        %v690 = vunpack.c.l.b16 %v656
        %v691 = vunpack.c.h.b16 %v656
        %v692 = vunpack.c.l.b16 %v657
        %v693 = vunpack.c.l.b16 %v658
        %v694 = vunpack.c.h.b16 %v658
        %v695 = vunpack.c.l.b16 %v659
        %v696 = vunpack.c.l.b16 %v660
        %v697 = vunpack.c.h.b16 %v660
        %v698 = vunpack.c.l.b16 %v661
        %v699 = vunpack.c.l.b16 %v662
        %v700 = vunpack.c.h.b16 %v662
        %v701 = vunpack.c.l.b16 %v663
        %v702 = vunpack.c.l.b16 %v664
        %v703 = vunpack.c.h.b16 %v664
        %v704 = vunpack.c.l.b16 %v665
        %v705 = vunpack.c.l.b16 %v666
        %v706 = vunpack.c.h.b16 %v666
        %v707 = vunpack.c.l.b16 %v667
        %v708 = vpack.c.b16 %v687, %v684
        %v709 = vpack.c.b16 %v688, %v685
        %v710 = vpack.c.b16 %v689, %v686
        %v711 = vpack.c.b16 %v693, %v690
        %v712 = vpack.c.b16 %v694, %v691
        %v713 = vpack.c.b16 %v695, %v692
        %v714 = vpack.c.b16 %v699, %v696
        %v715 = vpack.c.b16 %v700, %v697
        %v716 = vpack.c.b16 %v701, %v698
        %v717 = vpack.c.b16 %v705, %v702
        %v718 = vpack.c.b16 %v706, %v703
        %v719 = vpack.c.b16 %v707, %v704
        %v729 = vsel %vm551, %v710, 0
        %v732 = vsel %vm551, %v713, 0
        %v735 = vsel %vm551, %v716, 0
        %v738 = vsel %vm551, %v719, 0
        %740 = vmatpush.bf16.msra.mxu0 %v522
        %741 = vmatpush.bf16.msra.mxu0 %v521
        %742 = vmatpush.bf16.msra.mxu0 %v520
        %743 = vmatpush.bf16.msra.mxu0 %v519
        %744 = vmatpush.bf16.msra.mxu0 %v518
        %745 = vmatpush.bf16.msra.mxu0 %v517
        %746 = vmatpush.bf16.msra.mxu0 %v516
        %747 = vmatpush.bf16.msra.mxu0 %v515
        %748 = vmatmul.bf16.gmra.mxu0 %v708
        %v749 = vpop.f32.mrf.mxu0
        %v750 = vadd.f32 0.0, %v749
        %v751 = vpop.f32.mrf.mxu0
        %v752 = vadd.f32 0.0, %v751
        %753 = vmatmul.bf16.gmra.mxu0 %v711
        %v754 = vpop.f32.mrf.mxu0
        %v755 = vadd.f32 0.0, %v754
        %v756 = vpop.f32.mrf.mxu0
        %v757 = vadd.f32 0.0, %v756
        %758 = vmatmul.bf16.gmra.mxu0 %v714
        %v759 = vpop.f32.mrf.mxu0
        %v760 = vadd.f32 0.0, %v759
        %v761 = vpop.f32.mrf.mxu0
        %v762 = vadd.f32 0.0, %v761
        %763 = vmatmul.bf16.gmra.mxu0 %v717
        %v764 = vpop.f32.mrf.mxu0
        %v765 = vadd.f32 0.0, %v764
        %v766 = vpop.f32.mrf.mxu0
        %v767 = vadd.f32 0.0, %v766
        %768 = vdwg.mxu0
        %769 = vmatpush.bf16.msra.mxu0 %v530
        %770 = vmatpush.bf16.msra.mxu0 %v529
        %771 = vmatpush.bf16.msra.mxu0 %v528
        %772 = vmatpush.bf16.msra.mxu0 %v527
        %773 = vmatpush.bf16.msra.mxu0 %v526
        %774 = vmatpush.bf16.msra.mxu0 %v525
        %775 = vmatpush.bf16.msra.mxu0 %v524
        %776 = vmatpush.bf16.msra.mxu0 %v523
        %777 = vmatmul.bf16.gmra.mxu0 %v709
        %v778 = vpop.f32.mrf.mxu0
        %v779 = vadd.f32 %v750, %v778
        %v780 = vpop.f32.mrf.mxu0
        %v781 = vadd.f32 %v752, %v780
        %782 = vmatmul.bf16.gmra.mxu0 %v712
        %v783 = vpop.f32.mrf.mxu0
        %v784 = vadd.f32 %v755, %v783
        %v785 = vpop.f32.mrf.mxu0
        %v786 = vadd.f32 %v757, %v785
        %787 = vmatmul.bf16.gmra.mxu0 %v715
        %v788 = vpop.f32.mrf.mxu0
        %v789 = vadd.f32 %v760, %v788
        %v790 = vpop.f32.mrf.mxu0
        %v791 = vadd.f32 %v762, %v790
        %792 = vmatmul.bf16.gmra.mxu0 %v718
        %v793 = vpop.f32.mrf.mxu0
        %v794 = vadd.f32 %v765, %v793
        %v795 = vpop.f32.mrf.mxu0
        %v796 = vadd.f32 %v767, %v795
        %797 = vdwg.mxu0
        %798 = vmatpush.bf16.msra.mxu0 0
        %799 = vmatpush.bf16.msra.mxu0 0
        %800 = vmatpush.bf16.msra.mxu0 0
        %801 = vmatpush.bf16.msra.mxu0 0
        %802 = vmatpush.bf16.msra.mxu0 0
        %803 = vmatpush.bf16.msra.mxu0 0
        %804 = vmatpush.bf16.msra.mxu0 %v532
        %805 = vmatpush.bf16.msra.mxu0 %v531
        %806 = vmatmul.bf16.gmra.mxu0 %v729
        %v807 = vpop.f32.mrf.mxu0
        %v808 = vadd.f32 %v779, %v807
        %v809 = vpop.f32.mrf.mxu0
        %v810 = vadd.f32 %v781, %v809
        %811 = vmatmul.bf16.gmra.mxu0 %v732
        %v812 = vpop.f32.mrf.mxu0
        %v813 = vadd.f32 %v784, %v812
        %v814 = vpop.f32.mrf.mxu0
        %v815 = vadd.f32 %v786, %v814
        %816 = vmatmul.bf16.gmra.mxu0 %v735
        %v817 = vpop.f32.mrf.mxu0
        %v818 = vadd.f32 %v789, %v817
        %v819 = vpop.f32.mrf.mxu0
        %v820 = vadd.f32 %v791, %v819
        %821 = vmatmul.bf16.gmra.mxu0 %v738
        %v822 = vpop.f32.mrf.mxu0
        %v823 = vadd.f32 %v794, %v822
        %v824 = vpop.f32.mrf.mxu0
        %v825 = vadd.f32 %v796, %v824
        %826 = vdwg.mxu0
        %v827 = vmax.f32 %v632, %v808
        %v828 = vmax.f32 %v634, %v810
        %v829 = vmax.f32 %v637, %v813
        %v830 = vmax.f32 %v639, %v815
        %v831 = vmax.f32 %v642, %v818
        %v832 = vmax.f32 %v644, %v820
        %v833 = vmax.f32 %v647, %v823
        %v834 = vmax.f32 %v649, %v825
        %s835 = scalar_lea.vmem %s302, 192 [#allocation2]
        %v836 = vld [vmem:[%s835] sm:$0xff]
        %v837 = vld [vmem:[%s835 + $0x8] sm:$0xf]
        %v838 = vld [vmem:[%s835 + $0xc] sm:$0xff]
        %v839 = vld [vmem:[%s835 + $0x14] sm:$0xf]
        %v840 = vld [vmem:[%s835 + $0x18] sm:$0xff]
        %v841 = vld [vmem:[%s835 + $0x20] sm:$0xf]
        %v842 = vld [vmem:[%s835 + $0x24] sm:$0xff]
        %v843 = vld [vmem:[%s835 + $0x2c] sm:$0xf]
        %v844 = vld [vmem:[%s835 + $0x30] sm:$0xff]
        %v845 = vld [vmem:[%s835 + $0x38] sm:$0xf]
        %v846 = vld [vmem:[%s835 + $0x3c] sm:$0xff]
        %v847 = vld [vmem:[%s835 + $0x44] sm:$0xf]
        %v848 = vld [vmem:[%s835 + $0x48] sm:$0xff]
        %v849 = vld [vmem:[%s835 + $0x50] sm:$0xf]
        %v850 = vld [vmem:[%s835 + $0x54] sm:$0xff]
        %v851 = vld [vmem:[%s835 + $0x5c] sm:$0xf]
        %v868 = vunpack.c.l.b16 %v836
        %v869 = vunpack.c.h.b16 %v836
        %v870 = vunpack.c.l.b16 %v837
        %v871 = vunpack.c.l.b16 %v838
        %v872 = vunpack.c.h.b16 %v838
        %v873 = vunpack.c.l.b16 %v839
        %v874 = vunpack.c.l.b16 %v840
        %v875 = vunpack.c.h.b16 %v840
        %v876 = vunpack.c.l.b16 %v841
        %v877 = vunpack.c.l.b16 %v842
        %v878 = vunpack.c.h.b16 %v842
        %v879 = vunpack.c.l.b16 %v843
        %v880 = vunpack.c.l.b16 %v844
        %v881 = vunpack.c.h.b16 %v844
        %v882 = vunpack.c.l.b16 %v845
        %v883 = vunpack.c.l.b16 %v846
        %v884 = vunpack.c.h.b16 %v846
        %v885 = vunpack.c.l.b16 %v847
        %v886 = vunpack.c.l.b16 %v848
        %v887 = vunpack.c.h.b16 %v848
        %v888 = vunpack.c.l.b16 %v849
        %v889 = vunpack.c.l.b16 %v850
        %v890 = vunpack.c.h.b16 %v850
        %v891 = vunpack.c.l.b16 %v851
        %v892 = vpack.c.b16 %v871, %v868
        %v893 = vpack.c.b16 %v872, %v869
        %v894 = vpack.c.b16 %v873, %v870
        %v895 = vpack.c.b16 %v877, %v874
        %v896 = vpack.c.b16 %v878, %v875
        %v897 = vpack.c.b16 %v879, %v876
        %v898 = vpack.c.b16 %v883, %v880
        %v899 = vpack.c.b16 %v884, %v881
        %v900 = vpack.c.b16 %v885, %v882
        %v901 = vpack.c.b16 %v889, %v886
        %v902 = vpack.c.b16 %v890, %v887
        %v903 = vpack.c.b16 %v891, %v888
        %v913 = vsel %vm551, %v894, 0
        %v916 = vsel %vm551, %v897, 0
        %v919 = vsel %vm551, %v900, 0
        %v922 = vsel %vm551, %v903, 0
        %924 = vmatpush.bf16.msra.mxu0 %v522
        %925 = vmatpush.bf16.msra.mxu0 %v521
        %926 = vmatpush.bf16.msra.mxu0 %v520
        %927 = vmatpush.bf16.msra.mxu0 %v519
        %928 = vmatpush.bf16.msra.mxu0 %v518
        %929 = vmatpush.bf16.msra.mxu0 %v517
        %930 = vmatpush.bf16.msra.mxu0 %v516
        %931 = vmatpush.bf16.msra.mxu0 %v515
        %932 = vmatmul.bf16.gmra.mxu0 %v892
        %v933 = vpop.f32.mrf.mxu0
        %v934 = vadd.f32 0.0, %v933
        %v935 = vpop.f32.mrf.mxu0
        %v936 = vadd.f32 0.0, %v935
        %937 = vmatmul.bf16.gmra.mxu0 %v895
        %v938 = vpop.f32.mrf.mxu0
        %v939 = vadd.f32 0.0, %v938
        %v940 = vpop.f32.mrf.mxu0
        %v941 = vadd.f32 0.0, %v940
        %942 = vmatmul.bf16.gmra.mxu0 %v898
        %v943 = vpop.f32.mrf.mxu0
        %v944 = vadd.f32 0.0, %v943
        %v945 = vpop.f32.mrf.mxu0
        %v946 = vadd.f32 0.0, %v945
        %947 = vmatmul.bf16.gmra.mxu0 %v901
        %v948 = vpop.f32.mrf.mxu0
        %v949 = vadd.f32 0.0, %v948
        %v950 = vpop.f32.mrf.mxu0
        %v951 = vadd.f32 0.0, %v950
        %952 = vdwg.mxu0
        %953 = vmatpush.bf16.msra.mxu0 %v530
        %954 = vmatpush.bf16.msra.mxu0 %v529
        %955 = vmatpush.bf16.msra.mxu0 %v528
        %956 = vmatpush.bf16.msra.mxu0 %v527
        %957 = vmatpush.bf16.msra.mxu0 %v526
        %958 = vmatpush.bf16.msra.mxu0 %v525
        %959 = vmatpush.bf16.msra.mxu0 %v524
        %960 = vmatpush.bf16.msra.mxu0 %v523
        %961 = vmatmul.bf16.gmra.mxu0 %v893
        %v962 = vpop.f32.mrf.mxu0
        %v963 = vadd.f32 %v934, %v962
        %v964 = vpop.f32.mrf.mxu0
        %v965 = vadd.f32 %v936, %v964
        %966 = vmatmul.bf16.gmra.mxu0 %v896
        %v967 = vpop.f32.mrf.mxu0
        %v968 = vadd.f32 %v939, %v967
        %v969 = vpop.f32.mrf.mxu0
        %v970 = vadd.f32 %v941, %v969
        %971 = vmatmul.bf16.gmra.mxu0 %v899
        %v972 = vpop.f32.mrf.mxu0
        %v973 = vadd.f32 %v944, %v972
        %v974 = vpop.f32.mrf.mxu0
        %v975 = vadd.f32 %v946, %v974
        %976 = vmatmul.bf16.gmra.mxu0 %v902
        %v977 = vpop.f32.mrf.mxu0
        %v978 = vadd.f32 %v949, %v977
        %v979 = vpop.f32.mrf.mxu0
        %v980 = vadd.f32 %v951, %v979
        %981 = vdwg.mxu0
        %982 = vmatpush.bf16.msra.mxu0 0
        %983 = vmatpush.bf16.msra.mxu0 0
        %984 = vmatpush.bf16.msra.mxu0 0
        %985 = vmatpush.bf16.msra.mxu0 0
        %986 = vmatpush.bf16.msra.mxu0 0
        %987 = vmatpush.bf16.msra.mxu0 0
        %988 = vmatpush.bf16.msra.mxu0 %v532
        %989 = vmatpush.bf16.msra.mxu0 %v531
        %990 = vmatmul.bf16.gmra.mxu0 %v913
        %v991 = vpop.f32.mrf.mxu0
        %v992 = vadd.f32 %v963, %v991
        %v993 = vpop.f32.mrf.mxu0
        %v994 = vadd.f32 %v965, %v993
        %995 = vmatmul.bf16.gmra.mxu0 %v916
        %v996 = vpop.f32.mrf.mxu0
        %v997 = vadd.f32 %v968, %v996
        %v998 = vpop.f32.mrf.mxu0
        %v999 = vadd.f32 %v970, %v998
        %1000 = vmatmul.bf16.gmra.mxu0 %v919
        %v1001 = vpop.f32.mrf.mxu0
        %v1002 = vadd.f32 %v973, %v1001
        %v1003 = vpop.f32.mrf.mxu0
        %v1004 = vadd.f32 %v975, %v1003
        %1005 = vmatmul.bf16.gmra.mxu0 %v922
        %v1006 = vpop.f32.mrf.mxu0
        %v1007 = vadd.f32 %v978, %v1006
        %v1008 = vpop.f32.mrf.mxu0
        %v1009 = vadd.f32 %v980, %v1008
        %1010 = vdwg.mxu0
        %v1011 = vmax.f32 %v827, %v992
        %v1012 = vmax.f32 %v828, %v994
        %v1013 = vmax.f32 %v829, %v997
        %v1014 = vmax.f32 %v830, %v999
        %v1015 = vmax.f32 %v831, %v1002
        %v1016 = vmax.f32 %v832, %v1004
        %v1017 = vmax.f32 %v833, %v1007
        %v1018 = vmax.f32 %v834, %v1009
        %s1019 = scalar_lea.vmem %s302, 288 [#allocation2]
        %v1020 = vld [vmem:[%s1019] sm:$0xff]
        %v1021 = vld [vmem:[%s1019 + $0x8] sm:$0xf]
        %v1022 = vld [vmem:[%s1019 + $0xc] sm:$0xff]
        %v1023 = vld [vmem:[%s1019 + $0x14] sm:$0xf]
        %v1024 = vld [vmem:[%s1019 + $0x18] sm:$0xff]
        %v1025 = vld [vmem:[%s1019 + $0x20] sm:$0xf]
        %v1026 = vld [vmem:[%s1019 + $0x24] sm:$0xff]
        %v1027 = vld [vmem:[%s1019 + $0x2c] sm:$0xf]
        %v1028 = vld [vmem:[%s1019 + $0x30] sm:$0xff]
        %v1029 = vld [vmem:[%s1019 + $0x38] sm:$0xf]
        %v1030 = vld [vmem:[%s1019 + $0x3c] sm:$0xff]
        %v1031 = vld [vmem:[%s1019 + $0x44] sm:$0xf]
        %v1032 = vld [vmem:[%s1019 + $0x48] sm:$0xff]
        %v1033 = vld [vmem:[%s1019 + $0x50] sm:$0xf]
        %v1034 = vld [vmem:[%s1019 + $0x54] sm:$0xff]
        %v1035 = vld [vmem:[%s1019 + $0x5c] sm:$0xf]
        %v1052 = vunpack.c.l.b16 %v1020
        %v1053 = vunpack.c.h.b16 %v1020
        %v1054 = vunpack.c.l.b16 %v1021
        %v1055 = vunpack.c.l.b16 %v1022
        %v1056 = vunpack.c.h.b16 %v1022
        %v1057 = vunpack.c.l.b16 %v1023
        %v1058 = vunpack.c.l.b16 %v1024
        %v1059 = vunpack.c.h.b16 %v1024
        %v1060 = vunpack.c.l.b16 %v1025
        %v1061 = vunpack.c.l.b16 %v1026
        %v1062 = vunpack.c.h.b16 %v1026
        %v1063 = vunpack.c.l.b16 %v1027
        %v1064 = vunpack.c.l.b16 %v1028
        %v1065 = vunpack.c.h.b16 %v1028
        %v1066 = vunpack.c.l.b16 %v1029
        %v1067 = vunpack.c.l.b16 %v1030
        %v1068 = vunpack.c.h.b16 %v1030
        %v1069 = vunpack.c.l.b16 %v1031
        %v1070 = vunpack.c.l.b16 %v1032
        %v1071 = vunpack.c.h.b16 %v1032
        %v1072 = vunpack.c.l.b16 %v1033
        %v1073 = vunpack.c.l.b16 %v1034
        %v1074 = vunpack.c.h.b16 %v1034
        %v1075 = vunpack.c.l.b16 %v1035
        %v1076 = vpack.c.b16 %v1055, %v1052
        %v1077 = vpack.c.b16 %v1056, %v1053
        %v1078 = vpack.c.b16 %v1057, %v1054
        %v1079 = vpack.c.b16 %v1061, %v1058
        %v1080 = vpack.c.b16 %v1062, %v1059
        %v1081 = vpack.c.b16 %v1063, %v1060
        %v1082 = vpack.c.b16 %v1067, %v1064
        %v1083 = vpack.c.b16 %v1068, %v1065
        %v1084 = vpack.c.b16 %v1069, %v1066
        %v1085 = vpack.c.b16 %v1073, %v1070
        %v1086 = vpack.c.b16 %v1074, %v1071
        %v1087 = vpack.c.b16 %v1075, %v1072
        %v1097 = vsel %vm551, %v1078, 0
        %v1100 = vsel %vm551, %v1081, 0
        %v1103 = vsel %vm551, %v1084, 0
        %v1106 = vsel %vm551, %v1087, 0
        %1108 = vmatpush.bf16.msra.mxu0 %v522
        %1109 = vmatpush.bf16.msra.mxu0 %v521
        %1110 = vmatpush.bf16.msra.mxu0 %v520
        %1111 = vmatpush.bf16.msra.mxu0 %v519
        %1112 = vmatpush.bf16.msra.mxu0 %v518
        %1113 = vmatpush.bf16.msra.mxu0 %v517
        %1114 = vmatpush.bf16.msra.mxu0 %v516
        %1115 = vmatpush.bf16.msra.mxu0 %v515
        %1116 = vmatmul.bf16.gmra.mxu0 %v1076
        %v1117 = vpop.f32.mrf.mxu0
        %v1118 = vadd.f32 0.0, %v1117
        %v1119 = vpop.f32.mrf.mxu0
        %v1120 = vadd.f32 0.0, %v1119
        %1121 = vmatmul.bf16.gmra.mxu0 %v1079
        %v1122 = vpop.f32.mrf.mxu0
        %v1123 = vadd.f32 0.0, %v1122
        %v1124 = vpop.f32.mrf.mxu0
        %v1125 = vadd.f32 0.0, %v1124
        %1126 = vmatmul.bf16.gmra.mxu0 %v1082
        %v1127 = vpop.f32.mrf.mxu0
        %v1128 = vadd.f32 0.0, %v1127
        %v1129 = vpop.f32.mrf.mxu0
        %v1130 = vadd.f32 0.0, %v1129
        %1131 = vmatmul.bf16.gmra.mxu0 %v1085
        %v1132 = vpop.f32.mrf.mxu0
        %v1133 = vadd.f32 0.0, %v1132
        %v1134 = vpop.f32.mrf.mxu0
        %v1135 = vadd.f32 0.0, %v1134
        %1136 = vdwg.mxu0
        %1137 = vmatpush.bf16.msra.mxu0 %v530
        %1138 = vmatpush.bf16.msra.mxu0 %v529
        %1139 = vmatpush.bf16.msra.mxu0 %v528
        %1140 = vmatpush.bf16.msra.mxu0 %v527
        %1141 = vmatpush.bf16.msra.mxu0 %v526
        %1142 = vmatpush.bf16.msra.mxu0 %v525
        %1143 = vmatpush.bf16.msra.mxu0 %v524
        %1144 = vmatpush.bf16.msra.mxu0 %v523
        %1145 = vmatmul.bf16.gmra.mxu0 %v1077
        %v1146 = vpop.f32.mrf.mxu0
        %v1147 = vadd.f32 %v1118, %v1146
        %v1148 = vpop.f32.mrf.mxu0
        %v1149 = vadd.f32 %v1120, %v1148
        %1150 = vmatmul.bf16.gmra.mxu0 %v1080
        %v1151 = vpop.f32.mrf.mxu0
        %v1152 = vadd.f32 %v1123, %v1151
        %v1153 = vpop.f32.mrf.mxu0
        %v1154 = vadd.f32 %v1125, %v1153
        %1155 = vmatmul.bf16.gmra.mxu0 %v1083
        %v1156 = vpop.f32.mrf.mxu0
        %v1157 = vadd.f32 %v1128, %v1156
        %v1158 = vpop.f32.mrf.mxu0
        %v1159 = vadd.f32 %v1130, %v1158
        %1160 = vmatmul.bf16.gmra.mxu0 %v1086
        %v1161 = vpop.f32.mrf.mxu0
        %v1162 = vadd.f32 %v1133, %v1161
        %v1163 = vpop.f32.mrf.mxu0
        %v1164 = vadd.f32 %v1135, %v1163
        %1165 = vdwg.mxu0
        %1166 = vmatpush.bf16.msra.mxu0 0
        %1167 = vmatpush.bf16.msra.mxu0 0
        %1168 = vmatpush.bf16.msra.mxu0 0
        %1169 = vmatpush.bf16.msra.mxu0 0
        %1170 = vmatpush.bf16.msra.mxu0 0
        %1171 = vmatpush.bf16.msra.mxu0 0
        %1172 = vmatpush.bf16.msra.mxu0 %v532
        %1173 = vmatpush.bf16.msra.mxu0 %v531
        %1174 = vmatmul.bf16.gmra.mxu0 %v1097
        %v1175 = vpop.f32.mrf.mxu0
        %v1176 = vadd.f32 %v1147, %v1175
        %v1177 = vpop.f32.mrf.mxu0
        %v1178 = vadd.f32 %v1149, %v1177
        %1179 = vmatmul.bf16.gmra.mxu0 %v1100
        %v1180 = vpop.f32.mrf.mxu0
        %v1181 = vadd.f32 %v1152, %v1180
        %v1182 = vpop.f32.mrf.mxu0
        %v1183 = vadd.f32 %v1154, %v1182
        %1184 = vmatmul.bf16.gmra.mxu0 %v1103
        %v1185 = vpop.f32.mrf.mxu0
        %v1186 = vadd.f32 %v1157, %v1185
        %v1187 = vpop.f32.mrf.mxu0
        %v1188 = vadd.f32 %v1159, %v1187
        %1189 = vmatmul.bf16.gmra.mxu0 %v1106
        %v1190 = vpop.f32.mrf.mxu0
        %v1191 = vadd.f32 %v1162, %v1190
        %v1192 = vpop.f32.mrf.mxu0
        %v1193 = vadd.f32 %v1164, %v1192
        %1194 = vdwg.mxu0
        %v1195 = vmax.f32 %v1011, %v1176
        %v1196 = vmax.f32 %v1012, %v1178
        %v1197 = vmax.f32 %v1013, %v1181
        %v1198 = vmax.f32 %v1014, %v1183
        %v1199 = vmax.f32 %v1015, %v1186
        %v1200 = vmax.f32 %v1016, %v1188
        %v1201 = vmax.f32 %v1017, %v1191
        %v1202 = vmax.f32 %v1018, %v1193
        %v1203 = vld [vmem:[%s2] sm:$0x1]
        %v1205 = vperm.slane %v1203, 0
        %v1207 = vadd.f32 %v1195, %v1205
        %v1208 = vadd.f32 %v1196, %v1205
        %v1209 = vadd.f32 %v1197, %v1205
        %v1210 = vadd.f32 %v1198, %v1205
        %v1211 = vadd.f32 %v1199, %v1205
        %v1212 = vadd.f32 %v1200, %v1205
        %v1213 = vadd.f32 %v1201, %v1205
        %v1214 = vadd.f32 %v1202, %v1205
        %v1215 = vmax.f32 %v1207, 0.0
        %v1216 = vmax.f32 %v1208, 0.0
        %v1217 = vmax.f32 %v1209, 0.0
        %v1218 = vmax.f32 %v1210, 0.0
        %v1219 = vmax.f32 %v1211, 0.0
        %v1220 = vmax.f32 %v1212, 0.0
        %v1221 = vmax.f32 %v1213, 0.0
        %v1222 = vmax.f32 %v1214, 0.0
        %v1223 = vpack.c.bf16 %v1215, %v1215
        %v1224 = vpack.c.bf16 %v1216, %v1216
        %v1225 = vpack.c.bf16 %v1217, %v1217
        %v1226 = vpack.c.bf16 %v1218, %v1218
        %v1227 = vpack.c.bf16 %v1219, %v1219
        %v1228 = vpack.c.bf16 %v1220, %v1220
        %v1229 = vpack.c.bf16 %v1221, %v1221
        %v1230 = vpack.c.bf16 %v1222, %v1222
        %vm1231 = vcmask 519168
        %1232 = vst.msk [vmem:[%s328] sm:$0xf] %vm1231, %v1223
        %1233 = vst.msk [vmem:[%s328 + $0x4] sm:$0xf] %vm1231, %v1224
        %1234 = vst.msk [vmem:[%s328 + $0x8] sm:$0xf] %vm1231, %v1225
        %1235 = vst.msk [vmem:[%s328 + $0xc] sm:$0xf] %vm1231, %v1226
        %1236 = vst.msk [vmem:[%s328 + $0x10] sm:$0xf] %vm1231, %v1227
        %1237 = vst.msk [vmem:[%s328 + $0x14] sm:$0xf] %vm1231, %v1228
        %1238 = vst.msk [vmem:[%s328 + $0x18] sm:$0xf] %vm1231, %v1229
        %1239 = vst.msk [vmem:[%s328 + $0x1c] sm:$0xf] %vm1231, %v1230
        %s1240 = smul.u32 8, %s14
        %p1241 = scmp.lt.s32.totalorder %s1240, 15
        %s1242 = scalar_select %p1241, %s1240, 15
        %s1243 = smul.addr %s1242, 4
        %s1244 = scalar_lea.vmem %s3, %s1243
        // Predicated region
        $region59: #{d_curr_forward.4} parent=53 // pred_check
          %p1245 = pneg %p100
        $region60: #{d_curr_forward.4} parent=53 // pred_check_branch
          %1247 = sbr.rel (%p1245) target = $region62
        $region61: #{d_curr_forward.4} parent=53 // pred_region
          %s1248 = smul.u32 8, %s14
        $region62: #{d_curr_forward.4} parent=53 // pred_fallthru
          _
      $region54: #{d_curr_forward.4} parent=5 // pred_fallthru
        _
      %p1249 = scmp.le.s32.totalorder 2, %s9
      // Predicated region
      $region63: #{d_curr_forward.4} parent=5 // pred_check
        %p1250 = pneg %p1249
      $region64: #{d_curr_forward.4} parent=5 // pred_check_branch
        %1252 = sbr.rel (%p1250) target = $region66
      $region65: #{d_curr_forward.4} parent=5 // pred_region
        %s1253 = ssub.s32 %s9, 2
        // Predicated region
        $region67: #{d_curr_forward.4} parent=65 // pred_check
          %p1254 = pneg %p106
        $region68: #{d_curr_forward.4} parent=65 // pred_check_branch
          %1256 = sbr.rel (%p1254) target = $region70
        $region69: #{d_curr_forward.4} parent=65 // pred_region
          %s1257 = smul.u32 8, %s15
          %p1258 = scmp.lt.s32.totalorder %s1257, 15
          %s1259 = scalar_select %p1258, %s1257, 15
          %s1260 = smul.addr %s1259, 4
          %s1261 = scalar_lea.vmem %s3, %s1260
        $region70: #{d_curr_forward.4} parent=65 // pred_fallthru
          _
      $region66: #{d_curr_forward.4} parent=5 // pred_fallthru
        _
    $region6: #{d_curr_forward.4} parent=1 // loop_footer
      %s13 = sadd.s32 1, %s9
    $region7: #{d_curr_forward.4} parent=1 // loop_footer_branch
      %8 = sbr.rel target = $region3
    $region8: #{d_curr_forward.4} parent=1 // loop_exit
      _

// kernel: d_curr_forward.5
$region0: #{d_curr_forward.5}
  #allocation0 [shape = 'u32[]', space=smem, size = 0x4, offset = 0x4, fixed_abs, tag = 'smem constant byte address 0x4 - core index']
  #allocation1 [shape = 'u32[72,128]{1,0:T(1,128)}', space=vmem, size = 0x9000, scoped, tag = 'internal scratch']
  #allocation2 [shape = 'f32[1,1]{1,0:T(1,128)S(1)}', space=vmem, size = 0x200, scoped, tag = 'scoped memory for d_curr_forward.5']
  %s0 = inlined_call_operand.vmem [shape: bf16[2,3136], index: 0, kind: input, shape index: {}]
  %s1 = inlined_call_operand.vmem [shape: bf16[3136,128], index: 1, kind: input, shape index: {}]
  %s2 = inlined_call_operand.vmem [shape: f32[1,128], index: 2, kind: input, shape index: {}]
  %s3 = inlined_call_operand.vmem [shape: bf16[128,1], index: 3, kind: input, shape index: {}]
  %s4 = inlined_call_operand.<no memory space> [shape: f32[1,1], index: 4, kind: input, shape index: {}]
  %s5 = inlined_call_operand.vmem [shape: f32[2,1], index: 5, kind: output, shape index: {}]
  %s6 = sld [smem:[#allocation0]]
  $region30: #{d_curr_forward.5} parent=0
    _
  %s8 = ssub.s32 1, %s6
  %s9 = scalar_select 0, %s8, %s6
  %v10 = vstv %s4
  %11 = vst [vmem:[#allocation2] sm:$0x1] %v10
  // Predicated region
  $region2: #{d_curr_forward.5} parent=0 // pred_check
    _
  $region3: #{d_curr_forward.5} parent=0 // pred_check_branch
    %13 = sbr.rel (0) target = $region5
  $region4: #{d_curr_forward.5} parent=0 // pred_region
    _
  $region5: #{d_curr_forward.5} parent=0 // pred_fallthru
    _
  // Predicated region
  $region6: #{d_curr_forward.5} parent=0 // pred_check
    _
  $region7: #{d_curr_forward.5} parent=0 // pred_check_branch
    %15 = sbr.rel (0) target = $region9
  $region8: #{d_curr_forward.5} parent=0 // pred_region
    _
  $region9: #{d_curr_forward.5} parent=0 // pred_fallthru
    _
  // Predicated region
  $region10: #{d_curr_forward.5} parent=0 // pred_check
    _
  $region11: #{d_curr_forward.5} parent=0 // pred_check_branch
    %17 = sbr.rel (0) target = $region13
  $region12: #{d_curr_forward.5} parent=0 // pred_region
    _
  $region13: #{d_curr_forward.5} parent=0 // pred_fallthru
    _
  // Predicated region
  $region14: #{d_curr_forward.5} parent=0 // pred_check
    _
  $region15: #{d_curr_forward.5} parent=0 // pred_check_branch
    %19 = sbr.rel (0) target = $region17
  $region16: #{d_curr_forward.5} parent=0 // pred_region
    _
  $region17: #{d_curr_forward.5} parent=0 // pred_fallthru
    _
  // Predicated region
  $region18: #{d_curr_forward.5} parent=0 // pred_check
    _
  $region19: #{d_curr_forward.5} parent=0 // pred_check_branch
    %21 = sbr.rel (0) target = $region21
  $region20: #{d_curr_forward.5} parent=0 // pred_region
    _
  $region21: #{d_curr_forward.5} parent=0 // pred_fallthru
    _
  %v23 = vld [vmem:[%s0] sm:$0xff]
  %v24 = vld [vmem:[%s0 + $0x8] sm:$0xff]
  %v25 = vld [vmem:[%s0 + $0x10] sm:$0xff]
  %v26 = vld [vmem:[%s0 + $0x18] sm:$0x1]
  %v27 = vld [vmem:[%s1] sm:$0xf]
  %v28 = vld [vmem:[%s1 + $0x4] sm:$0xf]
  %v29 = vld [vmem:[%s1 + $0x8] sm:$0xf]
  %v30 = vld [vmem:[%s1 + $0xc] sm:$0xf]
  %v31 = vld [vmem:[%s1 + $0x10] sm:$0xf]
  %v32 = vld [vmem:[%s1 + $0x14] sm:$0xf]
  %v33 = vld [vmem:[%s1 + $0x18] sm:$0xf]
  %v34 = vld [vmem:[%s1 + $0x1c] sm:$0xf]
  %v35 = vld [vmem:[%s1 + $0x20] sm:$0xf]
  %v36 = vld [vmem:[%s1 + $0x24] sm:$0xf]
  %v37 = vld [vmem:[%s1 + $0x28] sm:$0xf]
  %v38 = vld [vmem:[%s1 + $0x2c] sm:$0xf]
  %v39 = vld [vmem:[%s1 + $0x30] sm:$0xf]
  %v40 = vld [vmem:[%s1 + $0x34] sm:$0xf]
  %v41 = vld [vmem:[%s1 + $0x38] sm:$0xf]
  %v42 = vld [vmem:[%s1 + $0x3c] sm:$0xf]
  %v43 = vld [vmem:[%s1 + $0x40] sm:$0xf]
  %v44 = vld [vmem:[%s1 + $0x44] sm:$0xf]
  %v45 = vld [vmem:[%s1 + $0x48] sm:$0xf]
  %v46 = vld [vmem:[%s1 + $0x4c] sm:$0xf]
  %v47 = vld [vmem:[%s1 + $0x50] sm:$0xf]
  %v48 = vld [vmem:[%s1 + $0x54] sm:$0xf]
  %v49 = vld [vmem:[%s1 + $0x58] sm:$0xf]
  %v50 = vld [vmem:[%s1 + $0x5c] sm:$0xf]
  %v51 = vld [vmem:[%s1 + $0x60] sm:$0xf]
  %v52 = vld [vmem:[%s1 + $0x64] sm:$0xf]
  %v53 = vld [vmem:[%s1 + $0x68] sm:$0xf]
  %v54 = vld [vmem:[%s1 + $0x6c] sm:$0xf]
  %v55 = vld [vmem:[%s1 + $0x70] sm:$0xf]
  %v56 = vld [vmem:[%s1 + $0x74] sm:$0xf]
  %v57 = vld [vmem:[%s1 + $0x78] sm:$0xf]
  %v58 = vld [vmem:[%s1 + $0x7c] sm:$0xf]
  %v59 = vld [vmem:[%s1 + $0x80] sm:$0xf]
  %v60 = vld [vmem:[%s1 + $0x84] sm:$0xf]
  %v61 = vld [vmem:[%s1 + $0x88] sm:$0xf]
  %v62 = vld [vmem:[%s1 + $0x8c] sm:$0xf]
  %v63 = vld [vmem:[%s1 + $0x90] sm:$0xf]
  %v64 = vld [vmem:[%s1 + $0x94] sm:$0xf]
  %v65 = vld [vmem:[%s1 + $0x98] sm:$0xf]
  %v66 = vld [vmem:[%s1 + $0x9c] sm:$0xf]
  %v67 = vld [vmem:[%s1 + $0xa0] sm:$0xf]
  %v68 = vld [vmem:[%s1 + $0xa4] sm:$0xf]
  %v69 = vld [vmem:[%s1 + $0xa8] sm:$0xf]
  %v70 = vld [vmem:[%s1 + $0xac] sm:$0xf]
  %v71 = vld [vmem:[%s1 + $0xb0] sm:$0xf]
  %v72 = vld [vmem:[%s1 + $0xb4] sm:$0xf]
  %v73 = vld [vmem:[%s1 + $0xb8] sm:$0xf]
  %v74 = vld [vmem:[%s1 + $0xbc] sm:$0xf]
  %v75 = vld [vmem:[%s1 + $0xc0] sm:$0xf]
  %v76 = vld [vmem:[%s1 + $0xc4] sm:$0xf]
  %v77 = vld [vmem:[%s1 + $0xc8] sm:$0xf]
  %v78 = vld [vmem:[%s1 + $0xcc] sm:$0xf]
  %v79 = vld [vmem:[%s1 + $0xd0] sm:$0xf]
  %v80 = vld [vmem:[%s1 + $0xd4] sm:$0xf]
  %v81 = vld [vmem:[%s1 + $0xd8] sm:$0xf]
  %v82 = vld [vmem:[%s1 + $0xdc] sm:$0xf]
  %v83 = vld [vmem:[%s1 + $0xe0] sm:$0xf]
  %v84 = vld [vmem:[%s1 + $0xe4] sm:$0xf]
  %v85 = vld [vmem:[%s1 + $0xe8] sm:$0xf]
  %v86 = vld [vmem:[%s1 + $0xec] sm:$0xf]
  %v87 = vld [vmem:[%s1 + $0xf0] sm:$0xf]
  %v88 = vld [vmem:[%s1 + $0xf4] sm:$0xf]
  %v89 = vld [vmem:[%s1 + $0xf8] sm:$0xf]
  %v90 = vld [vmem:[%s1 + $0xfc] sm:$0xf]
  %v91 = vld [vmem:[%s1 + $0x100] sm:$0xf]
  %v92 = vld [vmem:[%s1 + $0x104] sm:$0xf]
  %v93 = vld [vmem:[%s1 + $0x108] sm:$0xf]
  %v94 = vld [vmem:[%s1 + $0x10c] sm:$0xf]
  %v95 = vld [vmem:[%s1 + $0x110] sm:$0xf]
  %v96 = vld [vmem:[%s1 + $0x114] sm:$0xf]
  %v97 = vld [vmem:[%s1 + $0x118] sm:$0xf]
  %v98 = vld [vmem:[%s1 + $0x11c] sm:$0xf]
  %v99 = vld [vmem:[%s1 + $0x120] sm:$0xf]
  %v100 = vld [vmem:[%s1 + $0x124] sm:$0xf]
  %v101 = vld [vmem:[%s1 + $0x128] sm:$0xf]
  %v102 = vld [vmem:[%s1 + $0x12c] sm:$0xf]
  %v103 = vld [vmem:[%s1 + $0x130] sm:$0xf]
  %v104 = vld [vmem:[%s1 + $0x134] sm:$0xf]
  %v105 = vld [vmem:[%s1 + $0x138] sm:$0xf]
  %v106 = vld [vmem:[%s1 + $0x13c] sm:$0xf]
  %v107 = vld [vmem:[%s1 + $0x140] sm:$0xf]
  %v108 = vld [vmem:[%s1 + $0x144] sm:$0xf]
  %v109 = vld [vmem:[%s1 + $0x148] sm:$0xf]
  %v110 = vld [vmem:[%s1 + $0x14c] sm:$0xf]
  %v111 = vld [vmem:[%s1 + $0x150] sm:$0xf]
  %v112 = vld [vmem:[%s1 + $0x154] sm:$0xf]
  %v113 = vld [vmem:[%s1 + $0x158] sm:$0xf]
  %v114 = vld [vmem:[%s1 + $0x15c] sm:$0xf]
  %v115 = vld [vmem:[%s1 + $0x160] sm:$0xf]
  %v116 = vld [vmem:[%s1 + $0x164] sm:$0xf]
  %v117 = vld [vmem:[%s1 + $0x168] sm:$0xf]
  %v118 = vld [vmem:[%s1 + $0x16c] sm:$0xf]
  %v119 = vld [vmem:[%s1 + $0x170] sm:$0xf]
  %v120 = vld [vmem:[%s1 + $0x174] sm:$0xf]
  %v121 = vld [vmem:[%s1 + $0x178] sm:$0xf]
  %v122 = vld [vmem:[%s1 + $0x17c] sm:$0xf]
  %v123 = vld [vmem:[%s1 + $0x180] sm:$0xf]
  %v124 = vld [vmem:[%s1 + $0x184] sm:$0xf]
  %v125 = vld [vmem:[%s1 + $0x188] sm:$0xf]
  %v126 = vld [vmem:[%s1 + $0x18c] sm:$0xf]
  %v127 = vld [vmem:[%s1 + $0x190] sm:$0xf]
  %v128 = vld [vmem:[%s1 + $0x194] sm:$0xf]
  %v129 = vld [vmem:[%s1 + $0x198] sm:$0xf]
  %v130 = vld [vmem:[%s1 + $0x19c] sm:$0xf]
  %v131 = vld [vmem:[%s1 + $0x1a0] sm:$0xf]
  %v132 = vld [vmem:[%s1 + $0x1a4] sm:$0xf]
  %v133 = vld [vmem:[%s1 + $0x1a8] sm:$0xf]
  %v134 = vld [vmem:[%s1 + $0x1ac] sm:$0xf]
  %v135 = vld [vmem:[%s1 + $0x1b0] sm:$0xf]
  %v136 = vld [vmem:[%s1 + $0x1b4] sm:$0xf]
  %v137 = vld [vmem:[%s1 + $0x1b8] sm:$0xf]
  %v138 = vld [vmem:[%s1 + $0x1bc] sm:$0xf]
  %v139 = vld [vmem:[%s1 + $0x1c0] sm:$0xf]
  %v140 = vld [vmem:[%s1 + $0x1c4] sm:$0xf]
  %v141 = vld [vmem:[%s1 + $0x1c8] sm:$0xf]
  %v142 = vld [vmem:[%s1 + $0x1cc] sm:$0xf]
  %v143 = vld [vmem:[%s1 + $0x1d0] sm:$0xf]
  %v144 = vld [vmem:[%s1 + $0x1d4] sm:$0xf]
  %v145 = vld [vmem:[%s1 + $0x1d8] sm:$0xf]
  %v146 = vld [vmem:[%s1 + $0x1dc] sm:$0xf]
  %v147 = vld [vmem:[%s1 + $0x1e0] sm:$0xf]
  %v148 = vld [vmem:[%s1 + $0x1e4] sm:$0xf]
  %v149 = vld [vmem:[%s1 + $0x1e8] sm:$0xf]
  %v150 = vld [vmem:[%s1 + $0x1ec] sm:$0xf]
  %v151 = vld [vmem:[%s1 + $0x1f0] sm:$0xf]
  %v152 = vld [vmem:[%s1 + $0x1f4] sm:$0xf]
  %v153 = vld [vmem:[%s1 + $0x1f8] sm:$0xf]
  %v154 = vld [vmem:[%s1 + $0x1fc] sm:$0xf]
  %v155 = vld [vmem:[%s1 + $0x200] sm:$0xf]
  %v156 = vld [vmem:[%s1 + $0x204] sm:$0xf]
  %v157 = vld [vmem:[%s1 + $0x208] sm:$0xf]
  %v158 = vld [vmem:[%s1 + $0x20c] sm:$0xf]
  %v159 = vld [vmem:[%s1 + $0x210] sm:$0xf]
  %v160 = vld [vmem:[%s1 + $0x214] sm:$0xf]
  %v161 = vld [vmem:[%s1 + $0x218] sm:$0xf]
  %v162 = vld [vmem:[%s1 + $0x21c] sm:$0xf]
  %v163 = vld [vmem:[%s1 + $0x220] sm:$0xf]
  %v164 = vld [vmem:[%s1 + $0x224] sm:$0xf]
  %v165 = vld [vmem:[%s1 + $0x228] sm:$0xf]
  %v166 = vld [vmem:[%s1 + $0x22c] sm:$0xf]
  %v167 = vld [vmem:[%s1 + $0x230] sm:$0xf]
  %v168 = vld [vmem:[%s1 + $0x234] sm:$0xf]
  %v169 = vld [vmem:[%s1 + $0x238] sm:$0xf]
  %v170 = vld [vmem:[%s1 + $0x23c] sm:$0xf]
  %v171 = vld [vmem:[%s1 + $0x240] sm:$0xf]
  %v172 = vld [vmem:[%s1 + $0x244] sm:$0xf]
  %v173 = vld [vmem:[%s1 + $0x248] sm:$0xf]
  %v174 = vld [vmem:[%s1 + $0x24c] sm:$0xf]
  %v175 = vld [vmem:[%s1 + $0x250] sm:$0xf]
  %v176 = vld [vmem:[%s1 + $0x254] sm:$0xf]
  %v177 = vld [vmem:[%s1 + $0x258] sm:$0xf]
  %v178 = vld [vmem:[%s1 + $0x25c] sm:$0xf]
  %v179 = vld [vmem:[%s1 + $0x260] sm:$0xf]
  %v180 = vld [vmem:[%s1 + $0x264] sm:$0xf]
  %v181 = vld [vmem:[%s1 + $0x268] sm:$0xf]
  %v182 = vld [vmem:[%s1 + $0x26c] sm:$0xf]
  %v183 = vld [vmem:[%s1 + $0x270] sm:$0xf]
  %v184 = vld [vmem:[%s1 + $0x274] sm:$0xf]
  %v185 = vld [vmem:[%s1 + $0x278] sm:$0xf]
  %v186 = vld [vmem:[%s1 + $0x27c] sm:$0xf]
  %v187 = vld [vmem:[%s1 + $0x280] sm:$0xf]
  %v188 = vld [vmem:[%s1 + $0x284] sm:$0xf]
  %v189 = vld [vmem:[%s1 + $0x288] sm:$0xf]
  %v190 = vld [vmem:[%s1 + $0x28c] sm:$0xf]
  %v191 = vld [vmem:[%s1 + $0x290] sm:$0xf]
  %v192 = vld [vmem:[%s1 + $0x294] sm:$0xf]
  %v193 = vld [vmem:[%s1 + $0x298] sm:$0xf]
  %v194 = vld [vmem:[%s1 + $0x29c] sm:$0xf]
  %v195 = vld [vmem:[%s1 + $0x2a0] sm:$0xf]
  %v196 = vld [vmem:[%s1 + $0x2a4] sm:$0xf]
  %v197 = vld [vmem:[%s1 + $0x2a8] sm:$0xf]
  %v198 = vld [vmem:[%s1 + $0x2ac] sm:$0xf]
  %v199 = vld [vmem:[%s1 + $0x2b0] sm:$0xf]
  %v200 = vld [vmem:[%s1 + $0x2b4] sm:$0xf]
  %v201 = vld [vmem:[%s1 + $0x2b8] sm:$0xf]
  %v202 = vld [vmem:[%s1 + $0x2bc] sm:$0xf]
  %v203 = vld [vmem:[%s1 + $0x2c0] sm:$0xf]
  %v204 = vld [vmem:[%s1 + $0x2c4] sm:$0xf]
  %v205 = vld [vmem:[%s1 + $0x2c8] sm:$0xf]
  %v206 = vld [vmem:[%s1 + $0x2cc] sm:$0xf]
  %v207 = vld [vmem:[%s1 + $0x2d0] sm:$0xf]
  %v208 = vld [vmem:[%s1 + $0x2d4] sm:$0xf]
  %v209 = vld [vmem:[%s1 + $0x2d8] sm:$0xf]
  %v210 = vld [vmem:[%s1 + $0x2dc] sm:$0xf]
  %v211 = vld [vmem:[%s1 + $0x2e0] sm:$0xf]
  %v212 = vld [vmem:[%s1 + $0x2e4] sm:$0xf]
  %v213 = vld [vmem:[%s1 + $0x2e8] sm:$0xf]
  %v214 = vld [vmem:[%s1 + $0x2ec] sm:$0xf]
  %v215 = vld [vmem:[%s1 + $0x2f0] sm:$0xf]
  %v216 = vld [vmem:[%s1 + $0x2f4] sm:$0xf]
  %v217 = vld [vmem:[%s1 + $0x2f8] sm:$0xf]
  %v218 = vld [vmem:[%s1 + $0x2fc] sm:$0xf]
  %v219 = vld [vmem:[%s1 + $0x300] sm:$0xf]
  %v220 = vld [vmem:[%s1 + $0x304] sm:$0xf]
  %v221 = vld [vmem:[%s1 + $0x308] sm:$0xf]
  %v222 = vld [vmem:[%s1 + $0x30c] sm:$0xf]
  %v223 = vld [vmem:[%s1 + $0x310] sm:$0xf]
  %v224 = vld [vmem:[%s1 + $0x314] sm:$0xf]
  %v225 = vld [vmem:[%s1 + $0x318] sm:$0xf]
  %v226 = vld [vmem:[%s1 + $0x31c] sm:$0xf]
  %v227 = vld [vmem:[%s1 + $0x320] sm:$0xf]
  %v228 = vld [vmem:[%s1 + $0x324] sm:$0xf]
  %v229 = vld [vmem:[%s1 + $0x328] sm:$0xf]
  %v230 = vld [vmem:[%s1 + $0x32c] sm:$0xf]
  %v231 = vld [vmem:[%s1 + $0x330] sm:$0xf]
  %v232 = vld [vmem:[%s1 + $0x334] sm:$0xf]
  %v233 = vld [vmem:[%s1 + $0x338] sm:$0xf]
  %v234 = vld [vmem:[%s1 + $0x33c] sm:$0xf]
  %v235 = vld [vmem:[%s1 + $0x340] sm:$0xf]
  %v236 = vld [vmem:[%s1 + $0x344] sm:$0xf]
  %v237 = vld [vmem:[%s1 + $0x348] sm:$0xf]
  %v238 = vld [vmem:[%s1 + $0x34c] sm:$0xf]
  %v239 = vld [vmem:[%s1 + $0x350] sm:$0xf]
  %v240 = vld [vmem:[%s1 + $0x354] sm:$0xf]
  %v241 = vld [vmem:[%s1 + $0x358] sm:$0xf]
  %v242 = vld [vmem:[%s1 + $0x35c] sm:$0xf]
  %v243 = vld [vmem:[%s1 + $0x360] sm:$0xf]
  %v244 = vld [vmem:[%s1 + $0x364] sm:$0xf]
  %v245 = vld [vmem:[%s1 + $0x368] sm:$0xf]
  %v246 = vld [vmem:[%s1 + $0x36c] sm:$0xf]
  %v247 = vld [vmem:[%s1 + $0x370] sm:$0xf]
  %v248 = vld [vmem:[%s1 + $0x374] sm:$0xf]
  %v249 = vld [vmem:[%s1 + $0x378] sm:$0xf]
  %v250 = vld [vmem:[%s1 + $0x37c] sm:$0xf]
  %v251 = vld [vmem:[%s1 + $0x380] sm:$0xf]
  %v252 = vld [vmem:[%s1 + $0x384] sm:$0xf]
  %v253 = vld [vmem:[%s1 + $0x388] sm:$0xf]
  %v254 = vld [vmem:[%s1 + $0x38c] sm:$0xf]
  %v255 = vld [vmem:[%s1 + $0x390] sm:$0xf]
  %v256 = vld [vmem:[%s1 + $0x394] sm:$0xf]
  %v257 = vld [vmem:[%s1 + $0x398] sm:$0xf]
  %v258 = vld [vmem:[%s1 + $0x39c] sm:$0xf]
  %v259 = vld [vmem:[%s1 + $0x3a0] sm:$0xf]
  %v260 = vld [vmem:[%s1 + $0x3a4] sm:$0xf]
  %v261 = vld [vmem:[%s1 + $0x3a8] sm:$0xf]
  %v262 = vld [vmem:[%s1 + $0x3ac] sm:$0xf]
  %v263 = vld [vmem:[%s1 + $0x3b0] sm:$0xf]
  %v264 = vld [vmem:[%s1 + $0x3b4] sm:$0xf]
  %v265 = vld [vmem:[%s1 + $0x3b8] sm:$0xf]
  %v266 = vld [vmem:[%s1 + $0x3bc] sm:$0xf]
  %v267 = vld [vmem:[%s1 + $0x3c0] sm:$0xf]
  %v268 = vld [vmem:[%s1 + $0x3c4] sm:$0xf]
  %v269 = vld [vmem:[%s1 + $0x3c8] sm:$0xf]
  %v270 = vld [vmem:[%s1 + $0x3cc] sm:$0xf]
  %v271 = vld [vmem:[%s1 + $0x3d0] sm:$0xf]
  %v272 = vld [vmem:[%s1 + $0x3d4] sm:$0xf]
  %v273 = vld [vmem:[%s1 + $0x3d8] sm:$0xf]
  %v274 = vld [vmem:[%s1 + $0x3dc] sm:$0xf]
  %v275 = vld [vmem:[%s1 + $0x3e0] sm:$0xf]
  %v276 = vld [vmem:[%s1 + $0x3e4] sm:$0xf]
  %v277 = vld [vmem:[%s1 + $0x3e8] sm:$0xf]
  %v278 = vld [vmem:[%s1 + $0x3ec] sm:$0xf]
  %v279 = vld [vmem:[%s1 + $0x3f0] sm:$0xf]
  %v280 = vld [vmem:[%s1 + $0x3f4] sm:$0xf]
  %v281 = vld [vmem:[%s1 + $0x3f8] sm:$0xf]
  %v282 = vld [vmem:[%s1 + $0x3fc] sm:$0xf]
  %v283 = vld [vmem:[%s1 + $0x400] sm:$0xf]
  %v284 = vld [vmem:[%s1 + $0x404] sm:$0xf]
  %v285 = vld [vmem:[%s1 + $0x408] sm:$0xf]
  %v286 = vld [vmem:[%s1 + $0x40c] sm:$0xf]
  %v287 = vld [vmem:[%s1 + $0x410] sm:$0xf]
  %v288 = vld [vmem:[%s1 + $0x414] sm:$0xf]
  %v289 = vld [vmem:[%s1 + $0x418] sm:$0xf]
  %v290 = vld [vmem:[%s1 + $0x41c] sm:$0xf]
  %v291 = vld [vmem:[%s1 + $0x420] sm:$0xf]
  %v292 = vld [vmem:[%s1 + $0x424] sm:$0xf]
  %v293 = vld [vmem:[%s1 + $0x428] sm:$0xf]
  %v294 = vld [vmem:[%s1 + $0x42c] sm:$0xf]
  %v295 = vld [vmem:[%s1 + $0x430] sm:$0xf]
  %v296 = vld [vmem:[%s1 + $0x434] sm:$0xf]
  %v297 = vld [vmem:[%s1 + $0x438] sm:$0xf]
  %v298 = vld [vmem:[%s1 + $0x43c] sm:$0xf]
  %v299 = vld [vmem:[%s1 + $0x440] sm:$0xf]
  %v300 = vld [vmem:[%s1 + $0x444] sm:$0xf]
  %v301 = vld [vmem:[%s1 + $0x448] sm:$0xf]
  %v302 = vld [vmem:[%s1 + $0x44c] sm:$0xf]
  %v303 = vld [vmem:[%s1 + $0x450] sm:$0xf]
  %v304 = vld [vmem:[%s1 + $0x454] sm:$0xf]
  %v305 = vld [vmem:[%s1 + $0x458] sm:$0xf]
  %v306 = vld [vmem:[%s1 + $0x45c] sm:$0xf]
  %v307 = vld [vmem:[%s1 + $0x460] sm:$0xf]
  %v308 = vld [vmem:[%s1 + $0x464] sm:$0xf]
  %v309 = vld [vmem:[%s1 + $0x468] sm:$0xf]
  %v310 = vld [vmem:[%s1 + $0x46c] sm:$0xf]
  %v311 = vld [vmem:[%s1 + $0x470] sm:$0xf]
  %v312 = vld [vmem:[%s1 + $0x474] sm:$0xf]
  %v313 = vld [vmem:[%s1 + $0x478] sm:$0xf]
  %v314 = vld [vmem:[%s1 + $0x47c] sm:$0xf]
  %v315 = vld [vmem:[%s1 + $0x480] sm:$0xf]
  %v316 = vld [vmem:[%s1 + $0x484] sm:$0xf]
  %v317 = vld [vmem:[%s1 + $0x488] sm:$0xf]
  %v318 = vld [vmem:[%s1 + $0x48c] sm:$0xf]
  %v319 = vld [vmem:[%s1 + $0x490] sm:$0xf]
  %v320 = vld [vmem:[%s1 + $0x494] sm:$0xf]
  %v321 = vld [vmem:[%s1 + $0x498] sm:$0xf]
  %v322 = vld [vmem:[%s1 + $0x49c] sm:$0xf]
  %v323 = vld [vmem:[%s1 + $0x4a0] sm:$0xf]
  %v324 = vld [vmem:[%s1 + $0x4a4] sm:$0xf]
  %v325 = vld [vmem:[%s1 + $0x4a8] sm:$0xf]
  %v326 = vld [vmem:[%s1 + $0x4ac] sm:$0xf]
  %v327 = vld [vmem:[%s1 + $0x4b0] sm:$0xf]
  %v328 = vld [vmem:[%s1 + $0x4b4] sm:$0xf]
  %v329 = vld [vmem:[%s1 + $0x4b8] sm:$0xf]
  %v330 = vld [vmem:[%s1 + $0x4bc] sm:$0xf]
  %v331 = vld [vmem:[%s1 + $0x4c0] sm:$0xf]
  %v332 = vld [vmem:[%s1 + $0x4c4] sm:$0xf]
  %v333 = vld [vmem:[%s1 + $0x4c8] sm:$0xf]
  %v334 = vld [vmem:[%s1 + $0x4cc] sm:$0xf]
  %v335 = vld [vmem:[%s1 + $0x4d0] sm:$0xf]
  %v336 = vld [vmem:[%s1 + $0x4d4] sm:$0xf]
  %v337 = vld [vmem:[%s1 + $0x4d8] sm:$0xf]
  %v338 = vld [vmem:[%s1 + $0x4dc] sm:$0xf]
  %v339 = vld [vmem:[%s1 + $0x4e0] sm:$0xf]
  %v340 = vld [vmem:[%s1 + $0x4e4] sm:$0xf]
  %v341 = vld [vmem:[%s1 + $0x4e8] sm:$0xf]
  %v342 = vld [vmem:[%s1 + $0x4ec] sm:$0xf]
  %v343 = vld [vmem:[%s1 + $0x4f0] sm:$0xf]
  %v344 = vld [vmem:[%s1 + $0x4f4] sm:$0xf]
  %v345 = vld [vmem:[%s1 + $0x4f8] sm:$0xf]
  %v346 = vld [vmem:[%s1 + $0x4fc] sm:$0xf]
  %v347 = vld [vmem:[%s1 + $0x500] sm:$0xf]
  %v348 = vld [vmem:[%s1 + $0x504] sm:$0xf]
  %v349 = vld [vmem:[%s1 + $0x508] sm:$0xf]
  %v350 = vld [vmem:[%s1 + $0x50c] sm:$0xf]
  %v351 = vld [vmem:[%s1 + $0x510] sm:$0xf]
  %v352 = vld [vmem:[%s1 + $0x514] sm:$0xf]
  %v353 = vld [vmem:[%s1 + $0x518] sm:$0xf]
  %v354 = vld [vmem:[%s1 + $0x51c] sm:$0xf]
  %v355 = vld [vmem:[%s1 + $0x520] sm:$0xf]
  %v356 = vld [vmem:[%s1 + $0x524] sm:$0xf]
  %v357 = vld [vmem:[%s1 + $0x528] sm:$0xf]
  %v358 = vld [vmem:[%s1 + $0x52c] sm:$0xf]
  %v359 = vld [vmem:[%s1 + $0x530] sm:$0xf]
  %v360 = vld [vmem:[%s1 + $0x534] sm:$0xf]
  %v361 = vld [vmem:[%s1 + $0x538] sm:$0xf]
  %v362 = vld [vmem:[%s1 + $0x53c] sm:$0xf]
  %v363 = vld [vmem:[%s1 + $0x540] sm:$0xf]
  %v364 = vld [vmem:[%s1 + $0x544] sm:$0xf]
  %v365 = vld [vmem:[%s1 + $0x548] sm:$0xf]
  %v366 = vld [vmem:[%s1 + $0x54c] sm:$0xf]
  %v367 = vld [vmem:[%s1 + $0x550] sm:$0xf]
  %v368 = vld [vmem:[%s1 + $0x554] sm:$0xf]
  %v369 = vld [vmem:[%s1 + $0x558] sm:$0xf]
  %v370 = vld [vmem:[%s1 + $0x55c] sm:$0xf]
  %v371 = vld [vmem:[%s1 + $0x560] sm:$0xf]
  %v372 = vld [vmem:[%s1 + $0x564] sm:$0xf]
  %v373 = vld [vmem:[%s1 + $0x568] sm:$0xf]
  %v374 = vld [vmem:[%s1 + $0x56c] sm:$0xf]
  %v375 = vld [vmem:[%s1 + $0x570] sm:$0xf]
  %v376 = vld [vmem:[%s1 + $0x574] sm:$0xf]
  %v377 = vld [vmem:[%s1 + $0x578] sm:$0xf]
  %v378 = vld [vmem:[%s1 + $0x57c] sm:$0xf]
  %v379 = vld [vmem:[%s1 + $0x580] sm:$0xf]
  %v380 = vld [vmem:[%s1 + $0x584] sm:$0xf]
  %v381 = vld [vmem:[%s1 + $0x588] sm:$0xf]
  %v382 = vld [vmem:[%s1 + $0x58c] sm:$0xf]
  %v383 = vld [vmem:[%s1 + $0x590] sm:$0xf]
  %v384 = vld [vmem:[%s1 + $0x594] sm:$0xf]
  %v385 = vld [vmem:[%s1 + $0x598] sm:$0xf]
  %v386 = vld [vmem:[%s1 + $0x59c] sm:$0xf]
  %v387 = vld [vmem:[%s1 + $0x5a0] sm:$0xf]
  %v388 = vld [vmem:[%s1 + $0x5a4] sm:$0xf]
  %v389 = vld [vmem:[%s1 + $0x5a8] sm:$0xf]
  %v390 = vld [vmem:[%s1 + $0x5ac] sm:$0xf]
  %v391 = vld [vmem:[%s1 + $0x5b0] sm:$0xf]
  %v392 = vld [vmem:[%s1 + $0x5b4] sm:$0xf]
  %v393 = vld [vmem:[%s1 + $0x5b8] sm:$0xf]
  %v394 = vld [vmem:[%s1 + $0x5bc] sm:$0xf]
  %v395 = vld [vmem:[%s1 + $0x5c0] sm:$0xf]
  %v396 = vld [vmem:[%s1 + $0x5c4] sm:$0xf]
  %v397 = vld [vmem:[%s1 + $0x5c8] sm:$0xf]
  %v398 = vld [vmem:[%s1 + $0x5cc] sm:$0xf]
  %v399 = vld [vmem:[%s1 + $0x5d0] sm:$0xf]
  %v400 = vld [vmem:[%s1 + $0x5d4] sm:$0xf]
  %v401 = vld [vmem:[%s1 + $0x5d8] sm:$0xf]
  %v402 = vld [vmem:[%s1 + $0x5dc] sm:$0xf]
  %v403 = vld [vmem:[%s1 + $0x5e0] sm:$0xf]
  %v404 = vld [vmem:[%s1 + $0x5e4] sm:$0xf]
  %v405 = vld [vmem:[%s1 + $0x5e8] sm:$0xf]
  %v406 = vld [vmem:[%s1 + $0x5ec] sm:$0xf]
  %v407 = vld [vmem:[%s1 + $0x5f0] sm:$0xf]
  %v408 = vld [vmem:[%s1 + $0x5f4] sm:$0xf]
  %v409 = vld [vmem:[%s1 + $0x5f8] sm:$0xf]
  %v410 = vld [vmem:[%s1 + $0x5fc] sm:$0xf]
  %v411 = vld [vmem:[%s1 + $0x600] sm:$0xf]
  %v412 = vld [vmem:[%s1 + $0x604] sm:$0xf]
  %v413 = vld [vmem:[%s1 + $0x608] sm:$0xf]
  %v414 = vld [vmem:[%s1 + $0x60c] sm:$0xf]
  %v415 = vld [vmem:[%s1 + $0x610] sm:$0xf]
  %v416 = vld [vmem:[%s1 + $0x614] sm:$0xf]
  %v417 = vld [vmem:[%s1 + $0x618] sm:$0xf]
  %v418 = vld [vmem:[%s1 + $0x61c] sm:$0xf]
  %v419 = vld [vmem:[%s2] sm:$0x1]
  %v421 = vperm.slane %v419, 0
  %424 = vst [vmem:[#allocation1] ss:$9 sm:$0xff] %v23
  %v425 = vld [vmem:[#allocation1] sm:$0xff]
  %v426 = vld [vmem:[#allocation1 + $0x9] sm:$0xff]
  %v427 = vld [vmem:[#allocation1 + $0x12] sm:$0xff]
  %v428 = vld [vmem:[#allocation1 + $0x1b] sm:$0xff]
  %v429 = vld [vmem:[#allocation1 + $0x24] sm:$0xff]
  %v430 = vld [vmem:[#allocation1 + $0x2d] sm:$0xff]
  %v431 = vld [vmem:[#allocation1 + $0x36] sm:$0xff]
  %v432 = vld [vmem:[#allocation1 + $0x3f] sm:$0xff]
  %434 = vst [vmem:[#allocation1] ss:$9 sm:$0xff] %v24
  %v435 = vld [vmem:[#allocation1] sm:$0xff]
  %v436 = vld [vmem:[#allocation1 + $0x9] sm:$0xff]
  %v437 = vld [vmem:[#allocation1 + $0x12] sm:$0xff]
  %v438 = vld [vmem:[#allocation1 + $0x1b] sm:$0xff]
  %v439 = vld [vmem:[#allocation1 + $0x24] sm:$0xff]
  %v440 = vld [vmem:[#allocation1 + $0x2d] sm:$0xff]
  %v441 = vld [vmem:[#allocation1 + $0x36] sm:$0xff]
  %v442 = vld [vmem:[#allocation1 + $0x3f] sm:$0xff]
  %444 = vst [vmem:[#allocation1] ss:$9 sm:$0xff] %v25
  %v445 = vld [vmem:[#allocation1] sm:$0xff]
  %v446 = vld [vmem:[#allocation1 + $0x9] sm:$0xff]
  %v447 = vld [vmem:[#allocation1 + $0x12] sm:$0xff]
  %v448 = vld [vmem:[#allocation1 + $0x1b] sm:$0xff]
  %v449 = vld [vmem:[#allocation1 + $0x24] sm:$0xff]
  %v450 = vld [vmem:[#allocation1 + $0x2d] sm:$0xff]
  %v451 = vld [vmem:[#allocation1 + $0x36] sm:$0xff]
  %v452 = vld [vmem:[#allocation1 + $0x3f] sm:$0xff]
  %454 = vst [vmem:[#allocation1] ss:$9 sm:$0xff] %v26
  %v455 = vld [vmem:[#allocation1] sm:$0xff]
  %v872 = vunpack.c.l.b16 %v27
  %v873 = vunpack.c.l.b16 %v28
  %v874 = vunpack.c.l.b16 %v29
  %v875 = vunpack.c.l.b16 %v30
  %v876 = vunpack.c.l.b16 %v31
  %v877 = vunpack.c.l.b16 %v32
  %v878 = vunpack.c.l.b16 %v33
  %v879 = vunpack.c.l.b16 %v34
  %v880 = vunpack.c.l.b16 %v35
  %v881 = vunpack.c.l.b16 %v36
  %v882 = vunpack.c.l.b16 %v37
  %v883 = vunpack.c.l.b16 %v38
  %v884 = vunpack.c.l.b16 %v39
  %v885 = vunpack.c.l.b16 %v40
  %v886 = vunpack.c.l.b16 %v41
  %v887 = vunpack.c.l.b16 %v42
  %v888 = vunpack.c.l.b16 %v43
  %v889 = vunpack.c.l.b16 %v44
  %v890 = vunpack.c.l.b16 %v45
  %v891 = vunpack.c.l.b16 %v46
  %v892 = vunpack.c.l.b16 %v47
  %v893 = vunpack.c.l.b16 %v48
  %v894 = vunpack.c.l.b16 %v49
  %v895 = vunpack.c.l.b16 %v50
  %v896 = vunpack.c.l.b16 %v51
  %v897 = vunpack.c.l.b16 %v52
  %v898 = vunpack.c.l.b16 %v53
  %v899 = vunpack.c.l.b16 %v54
  %v900 = vunpack.c.l.b16 %v55
  %v901 = vunpack.c.l.b16 %v56
  %v902 = vunpack.c.l.b16 %v57
  %v903 = vunpack.c.l.b16 %v58
  %v904 = vunpack.c.l.b16 %v59
  %v905 = vunpack.c.l.b16 %v60
  %v906 = vunpack.c.l.b16 %v61
  %v907 = vunpack.c.l.b16 %v62
  %v908 = vunpack.c.l.b16 %v63
  %v909 = vunpack.c.l.b16 %v64
  %v910 = vunpack.c.l.b16 %v65
  %v911 = vunpack.c.l.b16 %v66
  %v912 = vunpack.c.l.b16 %v67
  %v913 = vunpack.c.l.b16 %v68
  %v914 = vunpack.c.l.b16 %v69
  %v915 = vunpack.c.l.b16 %v70
  %v916 = vunpack.c.l.b16 %v71
  %v917 = vunpack.c.l.b16 %v72
  %v918 = vunpack.c.l.b16 %v73
  %v919 = vunpack.c.l.b16 %v74
  %v920 = vunpack.c.l.b16 %v75
  %v921 = vunpack.c.l.b16 %v76
  %v922 = vunpack.c.l.b16 %v77
  %v923 = vunpack.c.l.b16 %v78
  %v924 = vunpack.c.l.b16 %v79
  %v925 = vunpack.c.l.b16 %v80
  %v926 = vunpack.c.l.b16 %v81
  %v927 = vunpack.c.l.b16 %v82
  %v928 = vunpack.c.l.b16 %v83
  %v929 = vunpack.c.l.b16 %v84
  %v930 = vunpack.c.l.b16 %v85
  %v931 = vunpack.c.l.b16 %v86
  %v932 = vunpack.c.l.b16 %v87
  %v933 = vunpack.c.l.b16 %v88
  %v934 = vunpack.c.l.b16 %v89
  %v935 = vunpack.c.l.b16 %v90
  %v936 = vunpack.c.l.b16 %v91
  %v937 = vunpack.c.l.b16 %v92
  %v938 = vunpack.c.l.b16 %v93
  %v939 = vunpack.c.l.b16 %v94
  %v940 = vunpack.c.l.b16 %v95
  %v941 = vunpack.c.l.b16 %v96
  %v942 = vunpack.c.l.b16 %v97
  %v943 = vunpack.c.l.b16 %v98
  %v944 = vunpack.c.l.b16 %v99
  %v945 = vunpack.c.l.b16 %v100
  %v946 = vunpack.c.l.b16 %v101
  %v947 = vunpack.c.l.b16 %v102
  %v948 = vunpack.c.l.b16 %v103
  %v949 = vunpack.c.l.b16 %v104
  %v950 = vunpack.c.l.b16 %v105
  %v951 = vunpack.c.l.b16 %v106
  %v952 = vunpack.c.l.b16 %v107
  %v953 = vunpack.c.l.b16 %v108
  %v954 = vunpack.c.l.b16 %v109
  %v955 = vunpack.c.l.b16 %v110
  %v956 = vunpack.c.l.b16 %v111
  %v957 = vunpack.c.l.b16 %v112
  %v958 = vunpack.c.l.b16 %v113
  %v959 = vunpack.c.l.b16 %v114
  %v960 = vunpack.c.l.b16 %v115
  %v961 = vunpack.c.l.b16 %v116
  %v962 = vunpack.c.l.b16 %v117
  %v963 = vunpack.c.l.b16 %v118
  %v964 = vunpack.c.l.b16 %v119
  %v965 = vunpack.c.l.b16 %v120
  %v966 = vunpack.c.l.b16 %v121
  %v967 = vunpack.c.l.b16 %v122
  %v968 = vunpack.c.l.b16 %v123
  %v969 = vunpack.c.l.b16 %v124
  %v970 = vunpack.c.l.b16 %v125
  %v971 = vunpack.c.l.b16 %v126
  %v972 = vunpack.c.l.b16 %v127
  %v973 = vunpack.c.l.b16 %v128
  %v974 = vunpack.c.l.b16 %v129
  %v975 = vunpack.c.l.b16 %v130
  %v976 = vunpack.c.l.b16 %v131
  %v977 = vunpack.c.l.b16 %v132
  %v978 = vunpack.c.l.b16 %v133
  %v979 = vunpack.c.l.b16 %v134
  %v980 = vunpack.c.l.b16 %v135
  %v981 = vunpack.c.l.b16 %v136
  %v982 = vunpack.c.l.b16 %v137
  %v983 = vunpack.c.l.b16 %v138
  %v984 = vunpack.c.l.b16 %v139
  %v985 = vunpack.c.l.b16 %v140
  %v986 = vunpack.c.l.b16 %v141
  %v987 = vunpack.c.l.b16 %v142
  %v988 = vunpack.c.l.b16 %v143
  %v989 = vunpack.c.l.b16 %v144
  %v990 = vunpack.c.l.b16 %v145
  %v991 = vunpack.c.l.b16 %v146
  %v992 = vunpack.c.l.b16 %v147
  %v993 = vunpack.c.l.b16 %v148
  %v994 = vunpack.c.l.b16 %v149
  %v995 = vunpack.c.l.b16 %v150
  %v996 = vunpack.c.l.b16 %v151
  %v997 = vunpack.c.l.b16 %v152
  %v998 = vunpack.c.l.b16 %v153
  %v999 = vunpack.c.l.b16 %v154
  %v1000 = vunpack.c.l.b16 %v155
  %v1001 = vunpack.c.l.b16 %v156
  %v1002 = vunpack.c.l.b16 %v157
  %v1003 = vunpack.c.l.b16 %v158
  %v1004 = vunpack.c.l.b16 %v159
  %v1005 = vunpack.c.l.b16 %v160
  %v1006 = vunpack.c.l.b16 %v161
  %v1007 = vunpack.c.l.b16 %v162
  %v1008 = vunpack.c.l.b16 %v163
  %v1009 = vunpack.c.l.b16 %v164
  %v1010 = vunpack.c.l.b16 %v165
  %v1011 = vunpack.c.l.b16 %v166
  %v1012 = vunpack.c.l.b16 %v167
  %v1013 = vunpack.c.l.b16 %v168
  %v1014 = vunpack.c.l.b16 %v169
  %v1015 = vunpack.c.l.b16 %v170
  %v1016 = vunpack.c.l.b16 %v171
  %v1017 = vunpack.c.l.b16 %v172
  %v1018 = vunpack.c.l.b16 %v173
  %v1019 = vunpack.c.l.b16 %v174
  %v1020 = vunpack.c.l.b16 %v175
  %v1021 = vunpack.c.l.b16 %v176
  %v1022 = vunpack.c.l.b16 %v177
  %v1023 = vunpack.c.l.b16 %v178
  %v1024 = vunpack.c.l.b16 %v179
  %v1025 = vunpack.c.l.b16 %v180
  %v1026 = vunpack.c.l.b16 %v181
  %v1027 = vunpack.c.l.b16 %v182
  %v1028 = vunpack.c.l.b16 %v183
  %v1029 = vunpack.c.l.b16 %v184
  %v1030 = vunpack.c.l.b16 %v185
  %v1031 = vunpack.c.l.b16 %v186
  %v1032 = vunpack.c.l.b16 %v187
  %v1033 = vunpack.c.l.b16 %v188
  %v1034 = vunpack.c.l.b16 %v189
  %v1035 = vunpack.c.l.b16 %v190
  %v1036 = vunpack.c.l.b16 %v191
  %v1037 = vunpack.c.l.b16 %v192
  %v1038 = vunpack.c.l.b16 %v193
  %v1039 = vunpack.c.l.b16 %v194
  %v1040 = vunpack.c.l.b16 %v195
  %v1041 = vunpack.c.l.b16 %v196
  %v1042 = vunpack.c.l.b16 %v197
  %v1043 = vunpack.c.l.b16 %v198
  %v1044 = vunpack.c.l.b16 %v199
  %v1045 = vunpack.c.l.b16 %v200
  %v1046 = vunpack.c.l.b16 %v201
  %v1047 = vunpack.c.l.b16 %v202
  %v1048 = vunpack.c.l.b16 %v203
  %v1049 = vunpack.c.l.b16 %v204
  %v1050 = vunpack.c.l.b16 %v205
  %v1051 = vunpack.c.l.b16 %v206
  %v1052 = vunpack.c.l.b16 %v207
  %v1053 = vunpack.c.l.b16 %v208
  %v1054 = vunpack.c.l.b16 %v209
  %v1055 = vunpack.c.l.b16 %v210
  %v1056 = vunpack.c.l.b16 %v211
  %v1057 = vunpack.c.l.b16 %v212
  %v1058 = vunpack.c.l.b16 %v213
  %v1059 = vunpack.c.l.b16 %v214
  %v1060 = vunpack.c.l.b16 %v215
  %v1061 = vunpack.c.l.b16 %v216
  %v1062 = vunpack.c.l.b16 %v217
  %v1063 = vunpack.c.l.b16 %v218
  %v1064 = vunpack.c.l.b16 %v219
  %v1065 = vunpack.c.l.b16 %v220
  %v1066 = vunpack.c.l.b16 %v221
  %v1067 = vunpack.c.l.b16 %v222
  %v1068 = vunpack.c.l.b16 %v223
  %v1069 = vunpack.c.l.b16 %v224
  %v1070 = vunpack.c.l.b16 %v225
  %v1071 = vunpack.c.l.b16 %v226
  %v1072 = vunpack.c.l.b16 %v227
  %v1073 = vunpack.c.l.b16 %v228
  %v1074 = vunpack.c.l.b16 %v229
  %v1075 = vunpack.c.l.b16 %v230
  %v1076 = vunpack.c.l.b16 %v231
  %v1077 = vunpack.c.l.b16 %v232
  %v1078 = vunpack.c.l.b16 %v233
  %v1079 = vunpack.c.l.b16 %v234
  %v1080 = vunpack.c.l.b16 %v235
  %v1081 = vunpack.c.l.b16 %v236
  %v1082 = vunpack.c.l.b16 %v237
  %v1083 = vunpack.c.l.b16 %v238
  %v1084 = vunpack.c.l.b16 %v239
  %v1085 = vunpack.c.l.b16 %v240
  %v1086 = vunpack.c.l.b16 %v241
  %v1087 = vunpack.c.l.b16 %v242
  %v1088 = vunpack.c.l.b16 %v243
  %v1089 = vunpack.c.l.b16 %v244
  %v1090 = vunpack.c.l.b16 %v245
  %v1091 = vunpack.c.l.b16 %v246
  %v1092 = vunpack.c.l.b16 %v247
  %v1093 = vunpack.c.l.b16 %v248
  %v1094 = vunpack.c.l.b16 %v249
  %v1095 = vunpack.c.l.b16 %v250
  %v1096 = vunpack.c.l.b16 %v251
  %v1097 = vunpack.c.l.b16 %v252
  %v1098 = vunpack.c.l.b16 %v253
  %v1099 = vunpack.c.l.b16 %v254
  %v1100 = vunpack.c.l.b16 %v255
  %v1101 = vunpack.c.l.b16 %v256
  %v1102 = vunpack.c.l.b16 %v257
  %v1103 = vunpack.c.l.b16 %v258
  %v1104 = vunpack.c.l.b16 %v259
  %v1105 = vunpack.c.l.b16 %v260
  %v1106 = vunpack.c.l.b16 %v261
  %v1107 = vunpack.c.l.b16 %v262
  %v1108 = vunpack.c.l.b16 %v263
  %v1109 = vunpack.c.l.b16 %v264
  %v1110 = vunpack.c.l.b16 %v265
  %v1111 = vunpack.c.l.b16 %v266
  %v1112 = vunpack.c.l.b16 %v267
  %v1113 = vunpack.c.l.b16 %v268
  %v1114 = vunpack.c.l.b16 %v269
  %v1115 = vunpack.c.l.b16 %v270
  %v1116 = vunpack.c.l.b16 %v271
  %v1117 = vunpack.c.l.b16 %v272
  %v1118 = vunpack.c.l.b16 %v273
  %v1119 = vunpack.c.l.b16 %v274
  %v1120 = vunpack.c.l.b16 %v275
  %v1121 = vunpack.c.l.b16 %v276
  %v1122 = vunpack.c.l.b16 %v277
  %v1123 = vunpack.c.l.b16 %v278
  %v1124 = vunpack.c.l.b16 %v279
  %v1125 = vunpack.c.l.b16 %v280
  %v1126 = vunpack.c.l.b16 %v281
  %v1127 = vunpack.c.l.b16 %v282
  %v1128 = vunpack.c.l.b16 %v283
  %v1129 = vunpack.c.l.b16 %v284
  %v1130 = vunpack.c.l.b16 %v285
  %v1131 = vunpack.c.l.b16 %v286
  %v1132 = vunpack.c.l.b16 %v287
  %v1133 = vunpack.c.l.b16 %v288
  %v1134 = vunpack.c.l.b16 %v289
  %v1135 = vunpack.c.l.b16 %v290
  %v1136 = vunpack.c.l.b16 %v291
  %v1137 = vunpack.c.l.b16 %v292
  %v1138 = vunpack.c.l.b16 %v293
  %v1139 = vunpack.c.l.b16 %v294
  %v1140 = vunpack.c.l.b16 %v295
  %v1141 = vunpack.c.l.b16 %v296
  %v1142 = vunpack.c.l.b16 %v297
  %v1143 = vunpack.c.l.b16 %v298
  %v1144 = vunpack.c.l.b16 %v299
  %v1145 = vunpack.c.l.b16 %v300
  %v1146 = vunpack.c.l.b16 %v301
  %v1147 = vunpack.c.l.b16 %v302
  %v1148 = vunpack.c.l.b16 %v303
  %v1149 = vunpack.c.l.b16 %v304
  %v1150 = vunpack.c.l.b16 %v305
  %v1151 = vunpack.c.l.b16 %v306
  %v1152 = vunpack.c.l.b16 %v307
  %v1153 = vunpack.c.l.b16 %v308
  %v1154 = vunpack.c.l.b16 %v309
  %v1155 = vunpack.c.l.b16 %v310
  %v1156 = vunpack.c.l.b16 %v311
  %v1157 = vunpack.c.l.b16 %v312
  %v1158 = vunpack.c.l.b16 %v313
  %v1159 = vunpack.c.l.b16 %v314
  %v1160 = vunpack.c.l.b16 %v315
  %v1161 = vunpack.c.l.b16 %v316
  %v1162 = vunpack.c.l.b16 %v317
  %v1163 = vunpack.c.l.b16 %v318
  %v1164 = vunpack.c.l.b16 %v319
  %v1165 = vunpack.c.l.b16 %v320
  %v1166 = vunpack.c.l.b16 %v321
  %v1167 = vunpack.c.l.b16 %v322
  %v1168 = vunpack.c.l.b16 %v323
  %v1169 = vunpack.c.l.b16 %v324
  %v1170 = vunpack.c.l.b16 %v325
  %v1171 = vunpack.c.l.b16 %v326
  %v1172 = vunpack.c.l.b16 %v327
  %v1173 = vunpack.c.l.b16 %v328
  %v1174 = vunpack.c.l.b16 %v329
  %v1175 = vunpack.c.l.b16 %v330
  %v1176 = vunpack.c.l.b16 %v331
  %v1177 = vunpack.c.l.b16 %v332
  %v1178 = vunpack.c.l.b16 %v333
  %v1179 = vunpack.c.l.b16 %v334
  %v1180 = vunpack.c.l.b16 %v335
  %v1181 = vunpack.c.l.b16 %v336
  %v1182 = vunpack.c.l.b16 %v337
  %v1183 = vunpack.c.l.b16 %v338
  %v1184 = vunpack.c.l.b16 %v339
  %v1185 = vunpack.c.l.b16 %v340
  %v1186 = vunpack.c.l.b16 %v341
  %v1187 = vunpack.c.l.b16 %v342
  %v1188 = vunpack.c.l.b16 %v343
  %v1189 = vunpack.c.l.b16 %v344
  %v1190 = vunpack.c.l.b16 %v345
  %v1191 = vunpack.c.l.b16 %v346
  %v1192 = vunpack.c.l.b16 %v347
  %v1193 = vunpack.c.l.b16 %v348
  %v1194 = vunpack.c.l.b16 %v349
  %v1195 = vunpack.c.l.b16 %v350
  %v1196 = vunpack.c.l.b16 %v351
  %v1197 = vunpack.c.l.b16 %v352
  %v1198 = vunpack.c.l.b16 %v353
  %v1199 = vunpack.c.l.b16 %v354
  %v1200 = vunpack.c.l.b16 %v355
  %v1201 = vunpack.c.l.b16 %v356
  %v1202 = vunpack.c.l.b16 %v357
  %v1203 = vunpack.c.l.b16 %v358
  %v1204 = vunpack.c.l.b16 %v359
  %v1205 = vunpack.c.l.b16 %v360
  %v1206 = vunpack.c.l.b16 %v361
  %v1207 = vunpack.c.l.b16 %v362
  %v1208 = vunpack.c.l.b16 %v363
  %v1209 = vunpack.c.l.b16 %v364
  %v1210 = vunpack.c.l.b16 %v365
  %v1211 = vunpack.c.l.b16 %v366
  %v1212 = vunpack.c.l.b16 %v367
  %v1213 = vunpack.c.l.b16 %v368
  %v1214 = vunpack.c.l.b16 %v369
  %v1215 = vunpack.c.l.b16 %v370
  %v1216 = vunpack.c.l.b16 %v371
  %v1217 = vunpack.c.l.b16 %v372
  %v1218 = vunpack.c.l.b16 %v373
  %v1219 = vunpack.c.l.b16 %v374
  %v1220 = vunpack.c.l.b16 %v375
  %v1221 = vunpack.c.l.b16 %v376
  %v1222 = vunpack.c.l.b16 %v377
  %v1223 = vunpack.c.l.b16 %v378
  %v1224 = vunpack.c.l.b16 %v379
  %v1225 = vunpack.c.l.b16 %v380
  %v1226 = vunpack.c.l.b16 %v381
  %v1227 = vunpack.c.l.b16 %v382
  %v1228 = vunpack.c.l.b16 %v383
  %v1229 = vunpack.c.l.b16 %v384
  %v1230 = vunpack.c.l.b16 %v385
  %v1231 = vunpack.c.l.b16 %v386
  %v1232 = vunpack.c.l.b16 %v387
  %v1233 = vunpack.c.l.b16 %v388
  %v1234 = vunpack.c.l.b16 %v389
  %v1235 = vunpack.c.l.b16 %v390
  %v1236 = vunpack.c.l.b16 %v391
  %v1237 = vunpack.c.l.b16 %v392
  %v1238 = vunpack.c.l.b16 %v393
  %v1239 = vunpack.c.l.b16 %v394
  %v1240 = vunpack.c.l.b16 %v395
  %v1241 = vunpack.c.l.b16 %v396
  %v1242 = vunpack.c.l.b16 %v397
  %v1243 = vunpack.c.l.b16 %v398
  %v1244 = vunpack.c.l.b16 %v399
  %v1245 = vunpack.c.l.b16 %v400
  %v1246 = vunpack.c.l.b16 %v401
  %v1247 = vunpack.c.l.b16 %v402
  %v1248 = vunpack.c.l.b16 %v403
  %v1249 = vunpack.c.l.b16 %v404
  %v1250 = vunpack.c.l.b16 %v405
  %v1251 = vunpack.c.l.b16 %v406
  %v1252 = vunpack.c.l.b16 %v407
  %v1253 = vunpack.c.l.b16 %v408
  %v1254 = vunpack.c.l.b16 %v409
  %v1255 = vunpack.c.l.b16 %v410
  %v1256 = vunpack.c.l.b16 %v411
  %v1257 = vunpack.c.l.b16 %v412
  %v1258 = vunpack.c.l.b16 %v413
  %v1259 = vunpack.c.l.b16 %v414
  %v1260 = vunpack.c.l.b16 %v415
  %v1261 = vunpack.c.l.b16 %v416
  %v1262 = vunpack.c.l.b16 %v417
  %v1263 = vunpack.c.l.b16 %v418
  %v1264 = vpack.c.b16 %v873, %v872
  %v1265 = vpack.c.b16 %v875, %v874
  %v1266 = vpack.c.b16 %v877, %v876
  %v1267 = vpack.c.b16 %v879, %v878
  %v1268 = vpack.c.b16 %v881, %v880
  %v1269 = vpack.c.b16 %v883, %v882
  %v1270 = vpack.c.b16 %v885, %v884
  %v1271 = vpack.c.b16 %v887, %v886
  %v1272 = vpack.c.b16 %v889, %v888
  %v1273 = vpack.c.b16 %v891, %v890
  %v1274 = vpack.c.b16 %v893, %v892
  %v1275 = vpack.c.b16 %v895, %v894
  %v1276 = vpack.c.b16 %v897, %v896
  %v1277 = vpack.c.b16 %v899, %v898
  %v1278 = vpack.c.b16 %v901, %v900
  %v1279 = vpack.c.b16 %v903, %v902
  %v1280 = vpack.c.b16 %v905, %v904
  %v1281 = vpack.c.b16 %v907, %v906
  %v1282 = vpack.c.b16 %v909, %v908
  %v1283 = vpack.c.b16 %v911, %v910
  %v1284 = vpack.c.b16 %v913, %v912
  %v1285 = vpack.c.b16 %v915, %v914
  %v1286 = vpack.c.b16 %v917, %v916
  %v1287 = vpack.c.b16 %v919, %v918
  %v1288 = vpack.c.b16 %v921, %v920
  %v1289 = vpack.c.b16 %v923, %v922
  %v1290 = vpack.c.b16 %v925, %v924
  %v1291 = vpack.c.b16 %v927, %v926
  %v1292 = vpack.c.b16 %v929, %v928
  %v1293 = vpack.c.b16 %v931, %v930
  %v1294 = vpack.c.b16 %v933, %v932
  %v1295 = vpack.c.b16 %v935, %v934
  %v1296 = vpack.c.b16 %v937, %v936
  %v1297 = vpack.c.b16 %v939, %v938
  %v1298 = vpack.c.b16 %v941, %v940
  %v1299 = vpack.c.b16 %v943, %v942
  %v1300 = vpack.c.b16 %v945, %v944
  %v1301 = vpack.c.b16 %v947, %v946
  %v1302 = vpack.c.b16 %v949, %v948
  %v1303 = vpack.c.b16 %v951, %v950
  %v1304 = vpack.c.b16 %v953, %v952
  %v1305 = vpack.c.b16 %v955, %v954
  %v1306 = vpack.c.b16 %v957, %v956
  %v1307 = vpack.c.b16 %v959, %v958
  %v1308 = vpack.c.b16 %v961, %v960
  %v1309 = vpack.c.b16 %v963, %v962
  %v1310 = vpack.c.b16 %v965, %v964
  %v1311 = vpack.c.b16 %v967, %v966
  %v1312 = vpack.c.b16 %v969, %v968
  %v1313 = vpack.c.b16 %v971, %v970
  %v1314 = vpack.c.b16 %v973, %v972
  %v1315 = vpack.c.b16 %v975, %v974
  %v1316 = vpack.c.b16 %v977, %v976
  %v1317 = vpack.c.b16 %v979, %v978
  %v1318 = vpack.c.b16 %v981, %v980
  %v1319 = vpack.c.b16 %v983, %v982
  %v1320 = vpack.c.b16 %v985, %v984
  %v1321 = vpack.c.b16 %v987, %v986
  %v1322 = vpack.c.b16 %v989, %v988
  %v1323 = vpack.c.b16 %v991, %v990
  %v1324 = vpack.c.b16 %v993, %v992
  %v1325 = vpack.c.b16 %v995, %v994
  %v1326 = vpack.c.b16 %v997, %v996
  %v1327 = vpack.c.b16 %v999, %v998
  %v1328 = vpack.c.b16 %v1001, %v1000
  %v1329 = vpack.c.b16 %v1003, %v1002
  %v1330 = vpack.c.b16 %v1005, %v1004
  %v1331 = vpack.c.b16 %v1007, %v1006
  %v1332 = vpack.c.b16 %v1009, %v1008
  %v1333 = vpack.c.b16 %v1011, %v1010
  %v1334 = vpack.c.b16 %v1013, %v1012
  %v1335 = vpack.c.b16 %v1015, %v1014
  %v1336 = vpack.c.b16 %v1017, %v1016
  %v1337 = vpack.c.b16 %v1019, %v1018
  %v1338 = vpack.c.b16 %v1021, %v1020
  %v1339 = vpack.c.b16 %v1023, %v1022
  %v1340 = vpack.c.b16 %v1025, %v1024
  %v1341 = vpack.c.b16 %v1027, %v1026
  %v1342 = vpack.c.b16 %v1029, %v1028
  %v1343 = vpack.c.b16 %v1031, %v1030
  %v1344 = vpack.c.b16 %v1033, %v1032
  %v1345 = vpack.c.b16 %v1035, %v1034
  %v1346 = vpack.c.b16 %v1037, %v1036
  %v1347 = vpack.c.b16 %v1039, %v1038
  %v1348 = vpack.c.b16 %v1041, %v1040
  %v1349 = vpack.c.b16 %v1043, %v1042
  %v1350 = vpack.c.b16 %v1045, %v1044
  %v1351 = vpack.c.b16 %v1047, %v1046
  %v1352 = vpack.c.b16 %v1049, %v1048
  %v1353 = vpack.c.b16 %v1051, %v1050
  %v1354 = vpack.c.b16 %v1053, %v1052
  %v1355 = vpack.c.b16 %v1055, %v1054
  %v1356 = vpack.c.b16 %v1057, %v1056
  %v1357 = vpack.c.b16 %v1059, %v1058
  %v1358 = vpack.c.b16 %v1061, %v1060
  %v1359 = vpack.c.b16 %v1063, %v1062
  %v1360 = vpack.c.b16 %v1065, %v1064
  %v1361 = vpack.c.b16 %v1067, %v1066
  %v1362 = vpack.c.b16 %v1069, %v1068
  %v1363 = vpack.c.b16 %v1071, %v1070
  %v1364 = vpack.c.b16 %v1073, %v1072
  %v1365 = vpack.c.b16 %v1075, %v1074
  %v1366 = vpack.c.b16 %v1077, %v1076
  %v1367 = vpack.c.b16 %v1079, %v1078
  %v1368 = vpack.c.b16 %v1081, %v1080
  %v1369 = vpack.c.b16 %v1083, %v1082
  %v1370 = vpack.c.b16 %v1085, %v1084
  %v1371 = vpack.c.b16 %v1087, %v1086
  %v1372 = vpack.c.b16 %v1089, %v1088
  %v1373 = vpack.c.b16 %v1091, %v1090
  %v1374 = vpack.c.b16 %v1093, %v1092
  %v1375 = vpack.c.b16 %v1095, %v1094
  %v1376 = vpack.c.b16 %v1097, %v1096
  %v1377 = vpack.c.b16 %v1099, %v1098
  %v1378 = vpack.c.b16 %v1101, %v1100
  %v1379 = vpack.c.b16 %v1103, %v1102
  %v1380 = vpack.c.b16 %v1105, %v1104
  %v1381 = vpack.c.b16 %v1107, %v1106
  %v1382 = vpack.c.b16 %v1109, %v1108
  %v1383 = vpack.c.b16 %v1111, %v1110
  %v1384 = vpack.c.b16 %v1113, %v1112
  %v1385 = vpack.c.b16 %v1115, %v1114
  %v1386 = vpack.c.b16 %v1117, %v1116
  %v1387 = vpack.c.b16 %v1119, %v1118
  %v1388 = vpack.c.b16 %v1121, %v1120
  %v1389 = vpack.c.b16 %v1123, %v1122
  %v1390 = vpack.c.b16 %v1125, %v1124
  %v1391 = vpack.c.b16 %v1127, %v1126
  %v1392 = vpack.c.b16 %v1129, %v1128
  %v1393 = vpack.c.b16 %v1131, %v1130
  %v1394 = vpack.c.b16 %v1133, %v1132
  %v1395 = vpack.c.b16 %v1135, %v1134
  %v1396 = vpack.c.b16 %v1137, %v1136
  %v1397 = vpack.c.b16 %v1139, %v1138
  %v1398 = vpack.c.b16 %v1141, %v1140
  %v1399 = vpack.c.b16 %v1143, %v1142
  %v1400 = vpack.c.b16 %v1145, %v1144
  %v1401 = vpack.c.b16 %v1147, %v1146
  %v1402 = vpack.c.b16 %v1149, %v1148
  %v1403 = vpack.c.b16 %v1151, %v1150
  %v1404 = vpack.c.b16 %v1153, %v1152
  %v1405 = vpack.c.b16 %v1155, %v1154
  %v1406 = vpack.c.b16 %v1157, %v1156
  %v1407 = vpack.c.b16 %v1159, %v1158
  %v1408 = vpack.c.b16 %v1161, %v1160
  %v1409 = vpack.c.b16 %v1163, %v1162
  %v1410 = vpack.c.b16 %v1165, %v1164
  %v1411 = vpack.c.b16 %v1167, %v1166
  %v1412 = vpack.c.b16 %v1169, %v1168
  %v1413 = vpack.c.b16 %v1171, %v1170
  %v1414 = vpack.c.b16 %v1173, %v1172
  %v1415 = vpack.c.b16 %v1175, %v1174
  %v1416 = vpack.c.b16 %v1177, %v1176
  %v1417 = vpack.c.b16 %v1179, %v1178
  %v1418 = vpack.c.b16 %v1181, %v1180
  %v1419 = vpack.c.b16 %v1183, %v1182
  %v1420 = vpack.c.b16 %v1185, %v1184
  %v1421 = vpack.c.b16 %v1187, %v1186
  %v1422 = vpack.c.b16 %v1189, %v1188
  %v1423 = vpack.c.b16 %v1191, %v1190
  %v1424 = vpack.c.b16 %v1193, %v1192
  %v1425 = vpack.c.b16 %v1195, %v1194
  %v1426 = vpack.c.b16 %v1197, %v1196
  %v1427 = vpack.c.b16 %v1199, %v1198
  %v1428 = vpack.c.b16 %v1201, %v1200
  %v1429 = vpack.c.b16 %v1203, %v1202
  %v1430 = vpack.c.b16 %v1205, %v1204
  %v1431 = vpack.c.b16 %v1207, %v1206
  %v1432 = vpack.c.b16 %v1209, %v1208
  %v1433 = vpack.c.b16 %v1211, %v1210
  %v1434 = vpack.c.b16 %v1213, %v1212
  %v1435 = vpack.c.b16 %v1215, %v1214
  %v1436 = vpack.c.b16 %v1217, %v1216
  %v1437 = vpack.c.b16 %v1219, %v1218
  %v1438 = vpack.c.b16 %v1221, %v1220
  %v1439 = vpack.c.b16 %v1223, %v1222
  %v1440 = vpack.c.b16 %v1225, %v1224
  %v1441 = vpack.c.b16 %v1227, %v1226
  %v1442 = vpack.c.b16 %v1229, %v1228
  %v1443 = vpack.c.b16 %v1231, %v1230
  %v1444 = vpack.c.b16 %v1233, %v1232
  %v1445 = vpack.c.b16 %v1235, %v1234
  %v1446 = vpack.c.b16 %v1237, %v1236
  %v1447 = vpack.c.b16 %v1239, %v1238
  %v1448 = vpack.c.b16 %v1241, %v1240
  %v1449 = vpack.c.b16 %v1243, %v1242
  %v1450 = vpack.c.b16 %v1245, %v1244
  %v1451 = vpack.c.b16 %v1247, %v1246
  %v1452 = vpack.c.b16 %v1249, %v1248
  %v1453 = vpack.c.b16 %v1251, %v1250
  %v1454 = vpack.c.b16 %v1253, %v1252
  %v1455 = vpack.c.b16 %v1255, %v1254
  %v1456 = vpack.c.b16 %v1257, %v1256
  %v1457 = vpack.c.b16 %v1259, %v1258
  %v1458 = vpack.c.b16 %v1261, %v1260
  %v1459 = vpack.c.b16 %v1263, %v1262
  %vm1656 = vcmask 523264
  %v1657 = vsel %vm1656, %v455, 0
  %1659 = vmatpush.bf16.msra.mxu0 %v1271
  %1660 = vmatpush.bf16.msra.mxu0 %v1270
  %1661 = vmatpush.bf16.msra.mxu0 %v1269
  %1662 = vmatpush.bf16.msra.mxu0 %v1268
  %1663 = vmatpush.bf16.msra.mxu0 %v1267
  %1664 = vmatpush.bf16.msra.mxu0 %v1266
  %1665 = vmatpush.bf16.msra.mxu0 %v1265
  %1666 = vmatpush.bf16.msra.mxu0 %v1264
  %1667 = vmatmul.bf16.gmra.mxu0 %v425
  %v1668 = vpop.f32.mrf.mxu0
  %v1669 = vadd.f32 %v421, %v1668
  %v1670 = vpop.f32.mrf.mxu0
  %1671 = vdwg.mxu0
  %1672 = vmatpush.bf16.msra.mxu0 %v1279
  %1673 = vmatpush.bf16.msra.mxu0 %v1278
  %1674 = vmatpush.bf16.msra.mxu0 %v1277
  %1675 = vmatpush.bf16.msra.mxu0 %v1276
  %1676 = vmatpush.bf16.msra.mxu0 %v1275
  %1677 = vmatpush.bf16.msra.mxu0 %v1274
  %1678 = vmatpush.bf16.msra.mxu0 %v1273
  %1679 = vmatpush.bf16.msra.mxu0 %v1272
  %1680 = vmatmul.bf16.gmra.mxu0 %v426
  %v1681 = vpop.f32.mrf.mxu0
  %v1682 = vadd.f32 %v1669, %v1681
  %v1683 = vpop.f32.mrf.mxu0
  %1684 = vdwg.mxu0
  %1685 = vmatpush.bf16.msra.mxu0 %v1287
  %1686 = vmatpush.bf16.msra.mxu0 %v1286
  %1687 = vmatpush.bf16.msra.mxu0 %v1285
  %1688 = vmatpush.bf16.msra.mxu0 %v1284
  %1689 = vmatpush.bf16.msra.mxu0 %v1283
  %1690 = vmatpush.bf16.msra.mxu0 %v1282
  %1691 = vmatpush.bf16.msra.mxu0 %v1281
  %1692 = vmatpush.bf16.msra.mxu0 %v1280
  %1693 = vmatmul.bf16.gmra.mxu0 %v427
  %v1694 = vpop.f32.mrf.mxu0
  %v1695 = vadd.f32 %v1682, %v1694
  %v1696 = vpop.f32.mrf.mxu0
  %1697 = vdwg.mxu0
  %1698 = vmatpush.bf16.msra.mxu0 %v1295
  %1699 = vmatpush.bf16.msra.mxu0 %v1294
  %1700 = vmatpush.bf16.msra.mxu0 %v1293
  %1701 = vmatpush.bf16.msra.mxu0 %v1292
  %1702 = vmatpush.bf16.msra.mxu0 %v1291
  %1703 = vmatpush.bf16.msra.mxu0 %v1290
  %1704 = vmatpush.bf16.msra.mxu0 %v1289
  %1705 = vmatpush.bf16.msra.mxu0 %v1288
  %1706 = vmatmul.bf16.gmra.mxu0 %v428
  %v1707 = vpop.f32.mrf.mxu0
  %v1708 = vadd.f32 %v1695, %v1707
  %v1709 = vpop.f32.mrf.mxu0
  %1710 = vdwg.mxu0
  %1711 = vmatpush.bf16.msra.mxu0 %v1303
  %1712 = vmatpush.bf16.msra.mxu0 %v1302
  %1713 = vmatpush.bf16.msra.mxu0 %v1301
  %1714 = vmatpush.bf16.msra.mxu0 %v1300
  %1715 = vmatpush.bf16.msra.mxu0 %v1299
  %1716 = vmatpush.bf16.msra.mxu0 %v1298
  %1717 = vmatpush.bf16.msra.mxu0 %v1297
  %1718 = vmatpush.bf16.msra.mxu0 %v1296
  %1719 = vmatmul.bf16.gmra.mxu0 %v429
  %v1720 = vpop.f32.mrf.mxu0
  %v1721 = vadd.f32 %v1708, %v1720
  %v1722 = vpop.f32.mrf.mxu0
  %1723 = vdwg.mxu0
  %1724 = vmatpush.bf16.msra.mxu0 %v1311
  %1725 = vmatpush.bf16.msra.mxu0 %v1310
  %1726 = vmatpush.bf16.msra.mxu0 %v1309
  %1727 = vmatpush.bf16.msra.mxu0 %v1308
  %1728 = vmatpush.bf16.msra.mxu0 %v1307
  %1729 = vmatpush.bf16.msra.mxu0 %v1306
  %1730 = vmatpush.bf16.msra.mxu0 %v1305
  %1731 = vmatpush.bf16.msra.mxu0 %v1304
  %1732 = vmatmul.bf16.gmra.mxu0 %v430
  %v1733 = vpop.f32.mrf.mxu0
  %v1734 = vadd.f32 %v1721, %v1733
  %v1735 = vpop.f32.mrf.mxu0
  %1736 = vdwg.mxu0
  %1737 = vmatpush.bf16.msra.mxu0 %v1319
  %1738 = vmatpush.bf16.msra.mxu0 %v1318
  %1739 = vmatpush.bf16.msra.mxu0 %v1317
  %1740 = vmatpush.bf16.msra.mxu0 %v1316
  %1741 = vmatpush.bf16.msra.mxu0 %v1315
  %1742 = vmatpush.bf16.msra.mxu0 %v1314
  %1743 = vmatpush.bf16.msra.mxu0 %v1313
  %1744 = vmatpush.bf16.msra.mxu0 %v1312
  %1745 = vmatmul.bf16.gmra.mxu0 %v431
  %v1746 = vpop.f32.mrf.mxu0
  %v1747 = vadd.f32 %v1734, %v1746
  %v1748 = vpop.f32.mrf.mxu0
  %1749 = vdwg.mxu0
  %1750 = vmatpush.bf16.msra.mxu0 %v1327
  %1751 = vmatpush.bf16.msra.mxu0 %v1326
  %1752 = vmatpush.bf16.msra.mxu0 %v1325
  %1753 = vmatpush.bf16.msra.mxu0 %v1324
  %1754 = vmatpush.bf16.msra.mxu0 %v1323
  %1755 = vmatpush.bf16.msra.mxu0 %v1322
  %1756 = vmatpush.bf16.msra.mxu0 %v1321
  %1757 = vmatpush.bf16.msra.mxu0 %v1320
  %1758 = vmatmul.bf16.gmra.mxu0 %v432
  %v1759 = vpop.f32.mrf.mxu0
  %v1760 = vadd.f32 %v1747, %v1759
  %v1761 = vpop.f32.mrf.mxu0
  %1762 = vdwg.mxu0
  %1763 = vmatpush.bf16.msra.mxu0 %v1335
  %1764 = vmatpush.bf16.msra.mxu0 %v1334
  %1765 = vmatpush.bf16.msra.mxu0 %v1333
  %1766 = vmatpush.bf16.msra.mxu0 %v1332
  %1767 = vmatpush.bf16.msra.mxu0 %v1331
  %1768 = vmatpush.bf16.msra.mxu0 %v1330
  %1769 = vmatpush.bf16.msra.mxu0 %v1329
  %1770 = vmatpush.bf16.msra.mxu0 %v1328
  %1771 = vmatmul.bf16.gmra.mxu0 %v435
  %v1772 = vpop.f32.mrf.mxu0
  %v1773 = vadd.f32 %v1760, %v1772
  %v1774 = vpop.f32.mrf.mxu0
  %1775 = vdwg.mxu0
  %1776 = vmatpush.bf16.msra.mxu0 %v1343
  %1777 = vmatpush.bf16.msra.mxu0 %v1342
  %1778 = vmatpush.bf16.msra.mxu0 %v1341
  %1779 = vmatpush.bf16.msra.mxu0 %v1340
  %1780 = vmatpush.bf16.msra.mxu0 %v1339
  %1781 = vmatpush.bf16.msra.mxu0 %v1338
  %1782 = vmatpush.bf16.msra.mxu0 %v1337
  %1783 = vmatpush.bf16.msra.mxu0 %v1336
  %1784 = vmatmul.bf16.gmra.mxu0 %v436
  %v1785 = vpop.f32.mrf.mxu0
  %v1786 = vadd.f32 %v1773, %v1785
  %v1787 = vpop.f32.mrf.mxu0
  %1788 = vdwg.mxu0
  %1789 = vmatpush.bf16.msra.mxu0 %v1351
  %1790 = vmatpush.bf16.msra.mxu0 %v1350
  %1791 = vmatpush.bf16.msra.mxu0 %v1349
  %1792 = vmatpush.bf16.msra.mxu0 %v1348
  %1793 = vmatpush.bf16.msra.mxu0 %v1347
  %1794 = vmatpush.bf16.msra.mxu0 %v1346
  %1795 = vmatpush.bf16.msra.mxu0 %v1345
  %1796 = vmatpush.bf16.msra.mxu0 %v1344
  %1797 = vmatmul.bf16.gmra.mxu0 %v437
  %v1798 = vpop.f32.mrf.mxu0
  %v1799 = vadd.f32 %v1786, %v1798
  %v1800 = vpop.f32.mrf.mxu0
  %1801 = vdwg.mxu0
  %1802 = vmatpush.bf16.msra.mxu0 %v1359
  %1803 = vmatpush.bf16.msra.mxu0 %v1358
  %1804 = vmatpush.bf16.msra.mxu0 %v1357
  %1805 = vmatpush.bf16.msra.mxu0 %v1356
  %1806 = vmatpush.bf16.msra.mxu0 %v1355
  %1807 = vmatpush.bf16.msra.mxu0 %v1354
  %1808 = vmatpush.bf16.msra.mxu0 %v1353
  %1809 = vmatpush.bf16.msra.mxu0 %v1352
  %1810 = vmatmul.bf16.gmra.mxu0 %v438
  %v1811 = vpop.f32.mrf.mxu0
  %v1812 = vadd.f32 %v1799, %v1811
  %v1813 = vpop.f32.mrf.mxu0
  %1814 = vdwg.mxu0
  %1815 = vmatpush.bf16.msra.mxu0 %v1367
  %1816 = vmatpush.bf16.msra.mxu0 %v1366
  %1817 = vmatpush.bf16.msra.mxu0 %v1365
  %1818 = vmatpush.bf16.msra.mxu0 %v1364
  %1819 = vmatpush.bf16.msra.mxu0 %v1363
  %1820 = vmatpush.bf16.msra.mxu0 %v1362
  %1821 = vmatpush.bf16.msra.mxu0 %v1361
  %1822 = vmatpush.bf16.msra.mxu0 %v1360
  %1823 = vmatmul.bf16.gmra.mxu0 %v439
  %v1824 = vpop.f32.mrf.mxu0
  %v1825 = vadd.f32 %v1812, %v1824
  %v1826 = vpop.f32.mrf.mxu0
  %1827 = vdwg.mxu0
  %1828 = vmatpush.bf16.msra.mxu0 %v1375
  %1829 = vmatpush.bf16.msra.mxu0 %v1374
  %1830 = vmatpush.bf16.msra.mxu0 %v1373
  %1831 = vmatpush.bf16.msra.mxu0 %v1372
  %1832 = vmatpush.bf16.msra.mxu0 %v1371
  %1833 = vmatpush.bf16.msra.mxu0 %v1370
  %1834 = vmatpush.bf16.msra.mxu0 %v1369
  %1835 = vmatpush.bf16.msra.mxu0 %v1368
  %1836 = vmatmul.bf16.gmra.mxu0 %v440
  %v1837 = vpop.f32.mrf.mxu0
  %v1838 = vadd.f32 %v1825, %v1837
  %v1839 = vpop.f32.mrf.mxu0
  %1840 = vdwg.mxu0
  %1841 = vmatpush.bf16.msra.mxu0 %v1383
  %1842 = vmatpush.bf16.msra.mxu0 %v1382
  %1843 = vmatpush.bf16.msra.mxu0 %v1381
  %1844 = vmatpush.bf16.msra.mxu0 %v1380
  %1845 = vmatpush.bf16.msra.mxu0 %v1379
  %1846 = vmatpush.bf16.msra.mxu0 %v1378
  %1847 = vmatpush.bf16.msra.mxu0 %v1377
  %1848 = vmatpush.bf16.msra.mxu0 %v1376
  %1849 = vmatmul.bf16.gmra.mxu0 %v441
  %v1850 = vpop.f32.mrf.mxu0
  %v1851 = vadd.f32 %v1838, %v1850
  %v1852 = vpop.f32.mrf.mxu0
  %1853 = vdwg.mxu0
  %1854 = vmatpush.bf16.msra.mxu0 %v1391
  %1855 = vmatpush.bf16.msra.mxu0 %v1390
  %1856 = vmatpush.bf16.msra.mxu0 %v1389
  %1857 = vmatpush.bf16.msra.mxu0 %v1388
  %1858 = vmatpush.bf16.msra.mxu0 %v1387
  %1859 = vmatpush.bf16.msra.mxu0 %v1386
  %1860 = vmatpush.bf16.msra.mxu0 %v1385
  %1861 = vmatpush.bf16.msra.mxu0 %v1384
  %1862 = vmatmul.bf16.gmra.mxu0 %v442
  %v1863 = vpop.f32.mrf.mxu0
  %v1864 = vadd.f32 %v1851, %v1863
  %v1865 = vpop.f32.mrf.mxu0
  %1866 = vdwg.mxu0
  %1867 = vmatpush.bf16.msra.mxu0 %v1399
  %1868 = vmatpush.bf16.msra.mxu0 %v1398
  %1869 = vmatpush.bf16.msra.mxu0 %v1397
  %1870 = vmatpush.bf16.msra.mxu0 %v1396
  %1871 = vmatpush.bf16.msra.mxu0 %v1395
  %1872 = vmatpush.bf16.msra.mxu0 %v1394
  %1873 = vmatpush.bf16.msra.mxu0 %v1393
  %1874 = vmatpush.bf16.msra.mxu0 %v1392
  %1875 = vmatmul.bf16.gmra.mxu0 %v445
  %v1876 = vpop.f32.mrf.mxu0
  %v1877 = vadd.f32 %v1864, %v1876
  %v1878 = vpop.f32.mrf.mxu0
  %1879 = vdwg.mxu0
  %1880 = vmatpush.bf16.msra.mxu0 %v1407
  %1881 = vmatpush.bf16.msra.mxu0 %v1406
  %1882 = vmatpush.bf16.msra.mxu0 %v1405
  %1883 = vmatpush.bf16.msra.mxu0 %v1404
  %1884 = vmatpush.bf16.msra.mxu0 %v1403
  %1885 = vmatpush.bf16.msra.mxu0 %v1402
  %1886 = vmatpush.bf16.msra.mxu0 %v1401
  %1887 = vmatpush.bf16.msra.mxu0 %v1400
  %1888 = vmatmul.bf16.gmra.mxu0 %v446
  %v1889 = vpop.f32.mrf.mxu0
  %v1890 = vadd.f32 %v1877, %v1889
  %v1891 = vpop.f32.mrf.mxu0
  %1892 = vdwg.mxu0
  %1893 = vmatpush.bf16.msra.mxu0 %v1415
  %1894 = vmatpush.bf16.msra.mxu0 %v1414
  %1895 = vmatpush.bf16.msra.mxu0 %v1413
  %1896 = vmatpush.bf16.msra.mxu0 %v1412
  %1897 = vmatpush.bf16.msra.mxu0 %v1411
  %1898 = vmatpush.bf16.msra.mxu0 %v1410
  %1899 = vmatpush.bf16.msra.mxu0 %v1409
  %1900 = vmatpush.bf16.msra.mxu0 %v1408
  %1901 = vmatmul.bf16.gmra.mxu0 %v447
  %v1902 = vpop.f32.mrf.mxu0
  %v1903 = vadd.f32 %v1890, %v1902
  %v1904 = vpop.f32.mrf.mxu0
  %1905 = vdwg.mxu0
  %1906 = vmatpush.bf16.msra.mxu0 %v1423
  %1907 = vmatpush.bf16.msra.mxu0 %v1422
  %1908 = vmatpush.bf16.msra.mxu0 %v1421
  %1909 = vmatpush.bf16.msra.mxu0 %v1420
  %1910 = vmatpush.bf16.msra.mxu0 %v1419
  %1911 = vmatpush.bf16.msra.mxu0 %v1418
  %1912 = vmatpush.bf16.msra.mxu0 %v1417
  %1913 = vmatpush.bf16.msra.mxu0 %v1416
  %1914 = vmatmul.bf16.gmra.mxu0 %v448
  %v1915 = vpop.f32.mrf.mxu0
  %v1916 = vadd.f32 %v1903, %v1915
  %v1917 = vpop.f32.mrf.mxu0
  %1918 = vdwg.mxu0
  %1919 = vmatpush.bf16.msra.mxu0 %v1431
  %1920 = vmatpush.bf16.msra.mxu0 %v1430
  %1921 = vmatpush.bf16.msra.mxu0 %v1429
  %1922 = vmatpush.bf16.msra.mxu0 %v1428
  %1923 = vmatpush.bf16.msra.mxu0 %v1427
  %1924 = vmatpush.bf16.msra.mxu0 %v1426
  %1925 = vmatpush.bf16.msra.mxu0 %v1425
  %1926 = vmatpush.bf16.msra.mxu0 %v1424
  %1927 = vmatmul.bf16.gmra.mxu0 %v449
  %v1928 = vpop.f32.mrf.mxu0
  %v1929 = vadd.f32 %v1916, %v1928
  %v1930 = vpop.f32.mrf.mxu0
  %1931 = vdwg.mxu0
  %1932 = vmatpush.bf16.msra.mxu0 %v1439
  %1933 = vmatpush.bf16.msra.mxu0 %v1438
  %1934 = vmatpush.bf16.msra.mxu0 %v1437
  %1935 = vmatpush.bf16.msra.mxu0 %v1436
  %1936 = vmatpush.bf16.msra.mxu0 %v1435
  %1937 = vmatpush.bf16.msra.mxu0 %v1434
  %1938 = vmatpush.bf16.msra.mxu0 %v1433
  %1939 = vmatpush.bf16.msra.mxu0 %v1432
  %1940 = vmatmul.bf16.gmra.mxu0 %v450
  %v1941 = vpop.f32.mrf.mxu0
  %v1942 = vadd.f32 %v1929, %v1941
  %v1943 = vpop.f32.mrf.mxu0
  %1944 = vdwg.mxu0
  %1945 = vmatpush.bf16.msra.mxu0 %v1447
  %1946 = vmatpush.bf16.msra.mxu0 %v1446
  %1947 = vmatpush.bf16.msra.mxu0 %v1445
  %1948 = vmatpush.bf16.msra.mxu0 %v1444
  %1949 = vmatpush.bf16.msra.mxu0 %v1443
  %1950 = vmatpush.bf16.msra.mxu0 %v1442
  %1951 = vmatpush.bf16.msra.mxu0 %v1441
  %1952 = vmatpush.bf16.msra.mxu0 %v1440
  %1953 = vmatmul.bf16.gmra.mxu0 %v451
  %v1954 = vpop.f32.mrf.mxu0
  %v1955 = vadd.f32 %v1942, %v1954
  %v1956 = vpop.f32.mrf.mxu0
  %1957 = vdwg.mxu0
  %1958 = vmatpush.bf16.msra.mxu0 %v1455
  %1959 = vmatpush.bf16.msra.mxu0 %v1454
  %1960 = vmatpush.bf16.msra.mxu0 %v1453
  %1961 = vmatpush.bf16.msra.mxu0 %v1452
  %1962 = vmatpush.bf16.msra.mxu0 %v1451
  %1963 = vmatpush.bf16.msra.mxu0 %v1450
  %1964 = vmatpush.bf16.msra.mxu0 %v1449
  %1965 = vmatpush.bf16.msra.mxu0 %v1448
  %1966 = vmatmul.bf16.gmra.mxu0 %v452
  %v1967 = vpop.f32.mrf.mxu0
  %v1968 = vadd.f32 %v1955, %v1967
  %v1969 = vpop.f32.mrf.mxu0
  %1970 = vdwg.mxu0
  %1971 = vmatpush.bf16.msra.mxu0 0
  %1972 = vmatpush.bf16.msra.mxu0 0
  %1973 = vmatpush.bf16.msra.mxu0 0
  %1974 = vmatpush.bf16.msra.mxu0 0
  %1975 = vmatpush.bf16.msra.mxu0 %v1459
  %1976 = vmatpush.bf16.msra.mxu0 %v1458
  %1977 = vmatpush.bf16.msra.mxu0 %v1457
  %1978 = vmatpush.bf16.msra.mxu0 %v1456
  %1979 = vmatmul.bf16.gmra.mxu0 %v1657
  %v1980 = vpop.f32.mrf.mxu0
  %v1981 = vadd.f32 %v1968, %v1980
  %v1982 = vpop.f32.mrf.mxu0
  %1983 = vdwg.mxu0
  %v1984 = vmax.f32 %v1981, 0.0
  %v1985 = vpack.c.bf16 %v1984, %v1984
  %v1986 = vld [vmem:[%s3] sm:$0xf]
  %v1987 = vld [vmem:[%s3 + $0x4] sm:$0xf]
  %v1988 = vld [vmem:[%s3 + $0x8] sm:$0xf]
  %v1989 = vld [vmem:[%s3 + $0xc] sm:$0xf]
  %v1990 = vld [vmem:[%s3 + $0x10] sm:$0xf]
  %v1991 = vld [vmem:[%s3 + $0x14] sm:$0xf]
  %v1992 = vld [vmem:[%s3 + $0x18] sm:$0xf]
  %v1993 = vld [vmem:[%s3 + $0x1c] sm:$0xf]
  %v1994 = vld [vmem:[%s3 + $0x20] sm:$0xf]
  %v1995 = vld [vmem:[%s3 + $0x24] sm:$0xf]
  %v1996 = vld [vmem:[%s3 + $0x28] sm:$0xf]
  %v1997 = vld [vmem:[%s3 + $0x2c] sm:$0xf]
  %v1998 = vld [vmem:[%s3 + $0x30] sm:$0xf]
  %v1999 = vld [vmem:[%s3 + $0x34] sm:$0xf]
  %v2000 = vld [vmem:[%s3 + $0x38] sm:$0xf]
  %v2001 = vld [vmem:[%s3 + $0x3c] sm:$0xf]
  %v2002 = vld [vmem:[#allocation2] sm:$0x1]
  %v2004 = vperm.slane %v2002, 0
  %v2022 = vunpack.c.l.b16 %v1986
  %v2023 = vunpack.c.l.b16 %v1987
  %v2024 = vunpack.c.l.b16 %v1988
  %v2025 = vunpack.c.l.b16 %v1989
  %v2026 = vunpack.c.l.b16 %v1990
  %v2027 = vunpack.c.l.b16 %v1991
  %v2028 = vunpack.c.l.b16 %v1992
  %v2029 = vunpack.c.l.b16 %v1993
  %v2030 = vunpack.c.l.b16 %v1994
  %v2031 = vunpack.c.l.b16 %v1995
  %v2032 = vunpack.c.l.b16 %v1996
  %v2033 = vunpack.c.l.b16 %v1997
  %v2034 = vunpack.c.l.b16 %v1998
  %v2035 = vunpack.c.l.b16 %v1999
  %v2036 = vunpack.c.l.b16 %v2000
  %v2037 = vunpack.c.l.b16 %v2001
  %v2038 = vpack.c.b16 %v2023, %v2022
  %v2039 = vpack.c.b16 %v2025, %v2024
  %v2040 = vpack.c.b16 %v2027, %v2026
  %v2041 = vpack.c.b16 %v2029, %v2028
  %v2042 = vpack.c.b16 %v2031, %v2030
  %v2043 = vpack.c.b16 %v2033, %v2032
  %v2044 = vpack.c.b16 %v2035, %v2034
  %v2045 = vpack.c.b16 %v2037, %v2036
  %2054 = vmatpush.bf16.msra.mxu0 %v2045
  %2055 = vmatpush.bf16.msra.mxu0 %v2044
  %2056 = vmatpush.bf16.msra.mxu0 %v2043
  %2057 = vmatpush.bf16.msra.mxu0 %v2042
  %2058 = vmatpush.bf16.msra.mxu0 %v2041
  %2059 = vmatpush.bf16.msra.mxu0 %v2040
  %2060 = vmatpush.bf16.msra.mxu0 %v2039
  %2061 = vmatpush.bf16.msra.mxu0 %v2038
  %2062 = vmatmul.bf16.gmra.mxu0 %v1985
  %v2063 = vpop.f32.mrf.mxu0
  %v2064 = vadd.f32 %v2004, %v2063
  %v2065 = vpop.f32.mrf.mxu0
  %2066 = vdwg.mxu0
  %v2067 = vsub.f32 0.0, %v2064
  %v2068 = vmul.f32 %v2067, 1.442695
  %v2069 = vpow.pop %v2068
  %v2070 = vadd.f32 %v2069, 1.0
  %v2071 = vrcp.pop %v2070
  %vm2072 = vcmask 1024
  %2073 = vst.msk [vmem:[%s5] sm:$0x3] %vm2072, %v2071
  // Predicated region
  $region22: #{d_curr_forward.5} parent=0 // pred_check
    _
  $region23: #{d_curr_forward.5} parent=0 // pred_check_branch
    %2075 = sbr.rel (0) target = $region25
  $region24: #{d_curr_forward.5} parent=0 // pred_region
    _
  $region25: #{d_curr_forward.5} parent=0 // pred_fallthru
    _
  // Predicated region
  $region26: #{d_curr_forward.5} parent=0 // pred_check
    _
  $region27: #{d_curr_forward.5} parent=0 // pred_check_branch
    %2077 = sbr.rel (0) target = $region29
  $region28: #{d_curr_forward.5} parent=0 // pred_region
    _
  $region29: #{d_curr_forward.5} parent=0 // pred_fallthru
    _

</llo_original>
